<compile_context>
chip_gen: v6e
topology: v6e:2x2x1
jax: 0.10.0
libtpu: 0.0.40
codegen_flags: <defaults>
</compile_context>

<pallas_src>
import functools

import numpy as np
import jax
import jax.numpy as jnp
from jax import lax
from jax.experimental import pallas as pl
from jax.experimental.pallas import tpu as pltpu


# ---------------------------------------------------------------------------
# Pallas kernel
# ---------------------------------------------------------------------------
def segrnn_kernel(xseg_ref,    # (n_enc, C, TB, W)  pre-segmented, normalized input
                  xlast_ref,   # (C, TB, 1)         last lookback value per row
                  pw_ref,      # (W, H)             segment-projection weight
                  pb_ref,      # (1, H)             segment-projection bias
                  wih_ref,     # (H, 3H)            fused GRU input weights  [r|z|n]
                  whh_ref,     # (H, 3H)            fused GRU hidden weights [r|z|n]
                  bih_ref,     # (1, 3H)            b_ih + [b_hh_r | b_hh_z | 0] folded
                  bhhn_ref,    # (1, H)             b_hh for the n gate (stays inside r*(.))
                  posg_ref,    # (n_dec, C, 3H)     pos @ W_ih + folded bias (param-folded)
                  rw_ref,      # (H, W)             sequence-recovery weight
                  rb_ref,      # (1, W)             sequence-recovery bias
                  out_ref,     # (C, TB, horizon)
                  gi_scratch,  # VMEM (n_enc, C*TB, 3H)  staged encoder input gates
                  *, hidden, window, n_enc, n_dec, enc_chunk, op_dtype):
    f32 = jnp.float32
    H, W = hidden, window
    _, C, TB, _ = xseg_ref.shape
    rows = C * TB
    horizon = n_dec * W

    pw = pw_ref[...]
    pb = pb_ref[...]
    wih = wih_ref[...]
    whh = whh_ref[...]
    bih = bih_ref[...]
    bhhn = bhhn_ref[...]

    # ----- encoder input-side work, batched out of the serial recurrence -----
    # segment projection + input-side gates for a chunk of segments, staged into
    # VMEM scratch with a single unmasked store per chunk.
    def precompute(seg_block):                              # (ch, C, TB, W)
        ch = seg_block.shape[0]
        segs = seg_block.reshape(ch * rows, W).astype(op_dtype)
        u = jnp.maximum(
            jnp.dot(segs, pw, preferred_element_type=f32) + pb, 0.0)
        gi = jnp.dot(u.astype(op_dtype), wih, preferred_element_type=f32) + bih
        return gi.reshape(ch, rows, 3 * H).astype(gi_scratch.dtype)

    if enc_chunk == n_enc:
        gi_scratch[...] = precompute(xseg_ref[...])
    else:
        # Chunked so the transient gi value never doubles the scratch footprint.
        def chunk_step(k, carry):
            s0 = k * enc_chunk
            gi_scratch[pl.ds(s0, enc_chunk)] = precompute(
                xseg_ref[pl.ds(s0, enc_chunk)])
            return carry
        lax.fori_loop(0, n_enc // enc_chunk, chunk_step, 0)

    def gru_from_gates(gi, ghx, h_prev):
        # PyTorch GRU with the input-side gates (plus folded b_hh[r], b_hh[z])
        # precomputed and the hidden-side matmul passed bias-free:
        #   r = s(gi_r + h W_hr); z = s(gi_z + h W_hz)
        #   n = tanh(gi_n + r * (h W_hn + b_hn));  h' = (1-z)*n + z*h
        r = jax.nn.sigmoid(gi[..., :H] + ghx[..., :H])
        z = jax.nn.sigmoid(gi[..., H:2 * H] + ghx[..., H:2 * H])
        n = jnp.tanh(gi[..., 2 * H:] + r * (ghx[..., 2 * H:] + bhhn))
        return (1.0 - z) * n + z * h_prev

    # ----- encoder recurrence: only h @ W_hh remains on the serial chain -----
    def enc_step(t, h):
        ghx = jnp.dot(h.astype(op_dtype), whh, preferred_element_type=f32)
        return gru_from_gates(gi_scratch[t], ghx, h)

    h = lax.fori_loop(0, n_enc, enc_step, jnp.zeros((rows, H), f32),
                      unroll=n_enc <= 8)

    # ----- decoder: all n_dec steps in parallel, seeded from the same h ------
    # hidden-side gates computed ONCE; positional gates broadcast over the batch
    # tile and the decode steps implicitly (no tile/concat copies).
    ghx = jnp.dot(h.astype(op_dtype), whh, preferred_element_type=f32)   # (rows, 3H)
    hd = gru_from_gates(posg_ref[...][:, :, None, :],        # (n_dec, C, 1, 3H)
                        ghx.reshape(1, C, TB, 3 * H),
                        h.reshape(1, C, TB, H))               # (n_dec, C, TB, H)

    # Sequence recovery: one batched matmul, then pack into a lane-dense
    # (rows, horizon) slab and store the whole tile with a single store.
    y = (jnp.dot(hd.reshape(n_dec * rows, H).astype(op_dtype), rw_ref[...],
                 preferred_element_type=f32) + rb_ref[...])   # (n_dec*rows, W)
    y = jnp.concatenate([y[d * rows:(d + 1) * rows, :] for d in range(n_dec)],
                        axis=-1)                              # (rows, horizon)
    x_last = xlast_ref[...].reshape(rows, 1)
    out_ref[...] = (y + x_last).reshape(C, TB, horizon)


# ---------------------------------------------------------------------------
# Tiling heuristics (generation-aware VMEM budgeting)
# ---------------------------------------------------------------------------
def _divisors(n):
    return [d for d in range(1, n + 1) if n % d == 0]


def _choose_enc_chunk(n_enc, rows, H, W, max_bytes=8 << 20):
    """Largest divisor of n_enc whose precompute transient stays under max_bytes."""
    best = 1
    for ch in _divisors(n_enc):
        if ch * rows * (W + 4 * H) * 4 <= max_bytes:
            best = ch
    return best


def _vmem_bytes(TB, C, H, W, n_enc, n_dec, op_bytes):
    """Rough per-grid-step VMEM footprint (with headroom), for TB selection."""
    rows = TB * C
    horizon = n_dec * W
    f = 4
    enc_chunk = _choose_enc_chunk(n_enc, rows, H, W)
    io = 2 * (n_enc * rows * W + rows) * f + 2 * rows * horizon * f   # dbl-buf tiles
    weights = ((W * H + 2 * H * 3 * H + H * W) * op_bytes
               + (H + 3 * H + H + W + n_dec * C * 3 * H) * f)
    scratch = n_enc * rows * 3 * H * op_bytes
    transient = (enc_chunk * rows * (W + 4 * H) * f
                 + n_dec * rows * (4 * H + W) * f
                 + rows * horizon * f
                 + rows * 4 * H * f)
    return io + weights + scratch + transient


def _choose_batch_block(batch, C, H, W, n_enc, n_dec, op_bytes,
                        target_rows=256, vmem_budget=40 << 20):
    """Pick TB: divides batch, TB % 8 == 0 (or TB == batch) so block shapes obey
    the (8,128) rule and reshapes are free, rows near the MXU target, per-tile
    VMEM under the v7x-safe budget, and >= 2 grid steps when batch allows."""
    cands = [d for d in _divisors(batch) if d == batch or d % 8 == 0]
    ok = [tb for tb in cands
          if _vmem_bytes(tb, C, H, W, n_enc, n_dec, op_bytes) <= vmem_budget]
    if not ok:
        return min(cands)   # degenerate batch; may exceed the budget

    def pick(pred):
        xs = [tb for tb in ok if pred(tb)]
        return max(xs) if xs else None

    tb = pick(lambda t: t * C <= target_rows and batch // t >= 2)
    if tb is None:
        tb = pick(lambda t: t * C <= target_rows)
    if tb is None:
        tb = min(ok)
    return tb


# ---------------------------------------------------------------------------
# Wrapper: parameter fusion/folding, layout prep, grid & BlockSpecs
# ---------------------------------------------------------------------------
def segrnn_forward(x, params, *, num_channels, lookback, horizon, window, hidden,
                   batch_block=None, operand_dtype=jnp.float32):
    assert lookback % window == 0 and horizon % window == 0
    n_enc = lookback // window
    n_dec = horizon // window
    batch = x.shape[0]
    C, H, W = num_channels, hidden, window
    assert x.shape == (batch, C, lookback)
    f32 = jnp.float32
    hp = jax.lax.Precision.HIGHEST
    op_bytes = jnp.dtype(operand_dtype).itemsize

    if batch_block is None:
        TB = _choose_batch_block(batch, C, H, W, n_enc, n_dec, op_bytes)
    else:
        TB = batch_block
    assert batch % TB == 0 and (TB == batch or TB % 8 == 0), (
        "batch_block must divide batch and be a multiple of 8 (or the full batch)")
    rows = TB * C

    # ---- input prep in HBM via XLA (done once): flatten batch x channel as ----
    # ---- (C, batch), subtract last value, segment t-major ---------------------
    xt = jnp.transpose(x.astype(f32), (1, 0, 2))              # (C, batch, L)
    x_last = xt[:, :, lookback - 1:lookback]                   # (C, batch, 1)
    xseg = (xt - x_last).reshape(C, batch, n_enc, W)
    xseg = jnp.transpose(xseg, (2, 0, 1, 3))                    # (n_enc, C, batch, W)

    # ---- parameter fusion / folding -------------------------------------------
    # Fuse the three GRU gate weights along the lane axis: (H, 3H).
    wih_f = jnp.concatenate([params["w_ih"][g] for g in range(3)], axis=-1)
    whh_f = jnp.concatenate([params["w_hh"][g] for g in range(3)], axis=-1)
    # Fold b_hh for the r/z gates into the input-side bias; b_hh[n] MUST stay
    # inside r*(.) (PyTorch GRU semantics) and is passed separately.
    bih_fold = jnp.concatenate([params["b_ih"][0] + params["b_hh"][0],
                                params["b_ih"][1] + params["b_hh"][1],
                                params["b_ih"][2]], axis=-1)     # (1, 3H)
    bhh_n = params["b_hh"][2]                                    # (1, H)

    # PositionalEmbedding (C, n_dec, H); fold the batch-invariant decoder
    # input-side gate matmul (pos @ W_ih + bias) into the parameters so the
    # kernel never sees a batch-replicated positional tensor.
    half = H // 2
    pe = jnp.concatenate([
        jnp.broadcast_to(params["rel_emb"][None], (C, n_dec, half)),
        jnp.broadcast_to(params["chan_emb"][:, None, :], (C, n_dec, H - half)),
    ], axis=-1)
    posg = (jnp.dot(pe.reshape(C * n_dec, H), wih_f, precision=hp)
            + bih_fold).reshape(C, n_dec, 3 * H)
    posg = jnp.transpose(posg, (1, 0, 2)).astype(f32)            # (n_dec, C, 3H)

    # MXU operand dtype for the big weights; biases / posg stay f32 (added after
    # f32 accumulation) and all elementwise gate math stays f32 (v5e-safe).
    pw = params["proj_w"].astype(operand_dtype)
    wih = wih_f.astype(operand_dtype)
    whh = whh_f.astype(operand_dtype)
    rw = params["rec_w"].astype(operand_dtype)
    pb = params["proj_b"].astype(f32)
    rb = params["rec_b"].astype(f32)
    bih_fold = bih_fold.astype(f32)
    bhh_n = bhh_n.astype(f32)

    enc_chunk = _choose_enc_chunk(n_enc, rows, H, W)

    kernel = functools.partial(segrnn_kernel, hidden=H, window=W, n_enc=n_enc,
                               n_dec=n_dec, enc_chunk=enc_chunk,
                               op_dtype=operand_dtype)

    def build(single_buffer_weights):
        def wspec(shape):
            idx = lambda b: (0,) * len(shape)   # noqa: E731
            if single_buffer_weights:
                # Revisited every grid step (constant index map): one buffer is
                # enough; frees the 2x weight VMEM reservation (matters on v7x).
                return pl.BlockSpec(shape, idx, pipeline_mode=pl.Buffered(1))
            return pl.BlockSpec(shape, idx)

        in_specs = [
            pl.BlockSpec((n_enc, C, TB, W), lambda b: (0, 0, b, 0)),
            pl.BlockSpec((C, TB, 1), lambda b: (0, b, 0)),
            wspec((W, H)),
            wspec((1, H)),
            wspec((H, 3 * H)),
            wspec((H, 3 * H)),
            wspec((1, 3 * H)),
            wspec((1, H)),
            wspec((n_dec, C, 3 * H)),
            wspec((H, W)),
            wspec((1, W)),
        ]
        return pl.pallas_call(
            kernel,
            out_shape=jax.ShapeDtypeStruct((C, batch, horizon), f32),
            grid=(batch // TB,),
            in_specs=in_specs,
            out_specs=pl.BlockSpec((C, TB, horizon), lambda b: (0, b, 0)),
            scratch_shapes=[pltpu.VMEM((n_enc, rows, 3 * H), operand_dtype)],
            compiler_params=pltpu.CompilerParams(
                dimension_semantics=("parallel",),
                vmem_limit_bytes=48 * 1024 * 1024),
        )

    args = (xseg, x_last, pw, pb, wih, whh, bih_fold, bhh_n, posg, rw, rb)
    try:
        out_cbh = build(True)(*args)
    except Exception:
        # Single-buffered weight blocks unsupported on this jax/libtpu; fall back
        # to default double-buffering (identical results, slightly more VMEM).
        out_cbh = build(False)(*args)

    return jnp.transpose(out_cbh, (1, 0, 2))                    # (batch, C, horizon)


# ---------------------------------------------------------------------------
# Pure-JAX reference (mirrors the PyTorch forward exactly) for validation
# ---------------------------------------------------------------------------
def segrnn_reference(x, params, *, num_channels, lookback, horizon, window, hidden):
    n_enc = lookback // window
    n_dec = horizon // window
    batch = x.shape[0]
    m = batch * num_channels
    hp = jax.lax.Precision.HIGHEST

    def gru_cell(u, h):
        r = jax.nn.sigmoid(jnp.dot(u, params["w_ih"][0], precision=hp) + params["b_ih"][0]
                           + jnp.dot(h, params["w_hh"][0], precision=hp) + params["b_hh"][0])
        z = jax.nn.sigmoid(jnp.dot(u, params["w_ih"][1], precision=hp) + params["b_ih"][1]
                           + jnp.dot(h, params["w_hh"][1], precision=hp) + params["b_hh"][1])
        n = jnp.tanh(jnp.dot(u, params["w_ih"][2], precision=hp) + params["b_ih"][2]
                     + r * (jnp.dot(h, params["w_hh"][2], precision=hp) + params["b_hh"][2]))
        return (1.0 - z) * n + z * h

    x2 = x.reshape(m, lookback).astype(jnp.float32)
    x_last = x2[:, -1:]
    segs = (x2 - x_last).reshape(m, n_enc, window)
    u_all = jax.nn.relu(
        jnp.einsum("msw,wh->msh", segs, params["proj_w"], precision=hp) + params["proj_b"])

    h = jnp.zeros((m, hidden), jnp.float32)
    for t in range(n_enc):
        h = gru_cell(u_all[:, t, :], h)

    half = hidden // 2
    pe = jnp.concatenate([
        jnp.broadcast_to(params["rel_emb"][None], (num_channels, n_dec, half)),
        jnp.broadcast_to(params["chan_emb"][:, None, :],
                         (num_channels, n_dec, hidden - half)),
    ], axis=-1)
    pos = jnp.broadcast_to(pe[None], (batch, num_channels, n_dec, hidden)).reshape(m, n_dec, hidden)

    outs = []
    for d in range(n_dec):
        hd = gru_cell(pos[:, d, :], h)
        yd = jnp.dot(hd, params["rec_w"], precision=hp) + params["rec_b"]
        outs.append(yd + x_last)
    y = jnp.stack(outs, axis=1)                      # (M, n_dec, W)
    return y.reshape(batch, num_channels, horizon)


# ---------------------------------------------------------------------------
# Deterministic parameter construction (synthetic, not a checkpoint load)
# ---------------------------------------------------------------------------
def make_params(key, *, num_channels, window, hidden, n_dec):
    ks = jax.random.split(key, 10)
    s = 0.1
    half = hidden // 2
    return {
        "proj_w": s * jax.random.normal(ks[0], (window, hidden), jnp.float32),
        "proj_b": s * jax.random.normal(ks[1], (1, hidden), jnp.float32),
        "w_ih":   s * jax.random.normal(ks[2], (3, hidden, hidden), jnp.float32),
        "w_hh":   s * jax.random.normal(ks[3], (3, hidden, hidden), jnp.float32),
        "b_ih":   s * jax.random.normal(ks[4], (3, 1, hidden), jnp.float32),
        "b_hh":   s * jax.random.normal(ks[5], (3, 1, hidden), jnp.float32),
        "rel_emb":     jax.random.normal(ks[6], (n_dec, half), jnp.float32),
        "chan_emb":    jax.random.normal(ks[7], (num_channels, hidden - half), jnp.float32),
        "rec_w":  s * jax.random.normal(ks[8], (hidden, window), jnp.float32),
        "rec_b":  s * jax.random.normal(ks[9], (1, window), jnp.float32),
    }


if __name__ == "__main__":
    BATCH = 2
    NUM_CHANNELS = 4
    LOOKBACK = 16
    HORIZON = 8
    WINDOW = 4          # divides both lookback and horizon
    HIDDEN = 32
    N_DEC = HORIZON // WINDOW

    key = jax.random.PRNGKey(0)
    k_x, k_p = jax.random.split(key)
    x = jax.random.normal(k_x, (BATCH, NUM_CHANNELS, LOOKBACK), jnp.float32)
    params = make_params(k_p, num_channels=NUM_CHANNELS, window=WINDOW,
                         hidden=HIDDEN, n_dec=N_DEC)

    cfg = dict(num_channels=NUM_CHANNELS, lookback=LOOKBACK, horizon=HORIZON,
               window=WINDOW, hidden=HIDDEN)

    ref = jax.block_until_ready(segrnn_reference(x, params, **cfg))

    # Default accuracy contract: f32 MXU operands, f32 accumulation/gate math.
    out = jax.block_until_ready(segrnn_forward(x, params, **cfg))
    assert out.shape == (BATCH, NUM_CHANNELS, HORIZON)
    np.testing.assert_allclose(np.asarray(out), np.asarray(ref), rtol=5e-3, atol=5e-3)

    # bf16-operand fast path (recommended for v6e/v7x): bf16 MXU operands and
    # bf16 gi scratch, f32 accumulation and f32 elementwise gate math.
    out_bf16 = jax.block_until_ready(
        segrnn_forward(x, params, operand_dtype=jnp.bfloat16, **cfg))
    np.testing.assert_allclose(np.asarray(out_bf16), np.asarray(ref),
                               rtol=5e-2, atol=5e-2)

    print("KERNEL_OK")
</pallas_src>

<mosaic_0001>
module attributes {stable_mosaic.version = 11 : i64} {
  func.func @segrnn_kernel(%arg0: i32, %arg1: memref<4x4x2x4xf32, #tpu.memory_space<vmem>>, %arg2: memref<4x2x1xf32, #tpu.memory_space<vmem>>, %arg3: memref<4x32xf32, #tpu.memory_space<vmem>>, %arg4: memref<1x32xf32, #tpu.memory_space<vmem>>, %arg5: memref<32x96xf32, #tpu.memory_space<vmem>>, %arg6: memref<32x96xf32, #tpu.memory_space<vmem>>, %arg7: memref<1x96xf32, #tpu.memory_space<vmem>>, %arg8: memref<1x32xf32, #tpu.memory_space<vmem>>, %arg9: memref<2x4x96xf32, #tpu.memory_space<vmem>>, %arg10: memref<32x4xf32, #tpu.memory_space<vmem>>, %arg11: memref<1x4xf32, #tpu.memory_space<vmem>>, %arg12: memref<4x2x8xf32, #tpu.memory_space<vmem>>, %arg13: memref<4x8x96xf32, #tpu.memory_space<vmem>>) attributes {dimension_semantics = [#tpu.dimension_semantics<parallel>], iteration_bounds = array<i64: 1>, scalar_prefetch = 0 : i64, scratch_operands = 1 : i64, tpu.core_type = #tpu.core_type<tc>, window_params = [{transform_indices = @transform_0, window_bounds = array<i64: 4, 4, 2, 4>}, {transform_indices = @transform_1, window_bounds = array<i64: 4, 2, 1>}, {pipeline_mode = #tpu.pipeline_mode<synchronous>, transform_indices = @transform_2, window_bounds = array<i64: 4, 32>}, {pipeline_mode = #tpu.pipeline_mode<synchronous>, transform_indices = @transform_3, window_bounds = array<i64: 1, 32>}, {pipeline_mode = #tpu.pipeline_mode<synchronous>, transform_indices = @transform_4, window_bounds = array<i64: 32, 96>}, {pipeline_mode = #tpu.pipeline_mode<synchronous>, transform_indices = @transform_5, window_bounds = array<i64: 32, 96>}, {pipeline_mode = #tpu.pipeline_mode<synchronous>, transform_indices = @transform_6, window_bounds = array<i64: 1, 96>}, {pipeline_mode = #tpu.pipeline_mode<synchronous>, transform_indices = @transform_7, window_bounds = array<i64: 1, 32>}, {pipeline_mode = #tpu.pipeline_mode<synchronous>, transform_indices = @transform_8, window_bounds = array<i64: 2, 4, 96>}, {pipeline_mode = #tpu.pipeline_mode<synchronous>, transform_indices = @transform_9, window_bounds = array<i64: 32, 4>}, {pipeline_mode = #tpu.pipeline_mode<synchronous>, transform_indices = @transform_10, window_bounds = array<i64: 1, 4>}, {transform_indices = @transform_11, window_bounds = array<i64: 4, 2, 8>}]} {
    %c0 = arith.constant 0 : index
    %c0_0 = arith.constant 0 : index
    %0 = vector.load %arg3[%c0, %c0_0] : memref<4x32xf32, #tpu.memory_space<vmem>>, vector<4x32xf32>
    %c0_1 = arith.constant 0 : index
    %c0_2 = arith.constant 0 : index
    %1 = vector.load %arg4[%c0_1, %c0_2] : memref<1x32xf32, #tpu.memory_space<vmem>>, vector<1x32xf32>
    %c0_3 = arith.constant 0 : index
    %c0_4 = arith.constant 0 : index
    %2 = vector.load %arg5[%c0_3, %c0_4] : memref<32x96xf32, #tpu.memory_space<vmem>>, vector<32x96xf32>
    %c0_5 = arith.constant 0 : index
    %c0_6 = arith.constant 0 : index
    %3 = vector.load %arg6[%c0_5, %c0_6] : memref<32x96xf32, #tpu.memory_space<vmem>>, vector<32x96xf32>
    %c0_7 = arith.constant 0 : index
    %c0_8 = arith.constant 0 : index
    %4 = vector.load %arg7[%c0_7, %c0_8] : memref<1x96xf32, #tpu.memory_space<vmem>>, vector<1x96xf32>
    %c0_9 = arith.constant 0 : index
    %c0_10 = arith.constant 0 : index
    %5 = vector.load %arg8[%c0_9, %c0_10] : memref<1x32xf32, #tpu.memory_space<vmem>>, vector<1x32xf32>
    %c0_11 = arith.constant 0 : index
    %c0_12 = arith.constant 0 : index
    %c0_13 = arith.constant 0 : index
    %c0_14 = arith.constant 0 : index
    %6 = vector.load %arg1[%c0_11, %c0_12, %c0_13, %c0_14] : memref<4x4x2x4xf32, #tpu.memory_space<vmem>>, vector<4x4x2x4xf32>
    %7 = vector.shape_cast %6 : vector<4x4x2x4xf32> to vector<32x4xf32>
    %cst = arith.constant dense<0.000000e+00> : vector<32x32xf32>
    %8 = tpu.matmul %7, %0, %cst {dimension_numbers = #tpu.dot_dimension_numbers<[1], [0], [0], [1], [0, 0, 1, 1], [], []>} : vector<32x4xf32>, vector<4x32xf32>, vector<32x32xf32> -> vector<32x32xf32>
    %9 = vector.broadcast %1 : vector<1x32xf32> to vector<32x32xf32>
    %10 = arith.addf %8, %9 : vector<32x32xf32>
    %cst_15 = arith.constant 0.000000e+00 : f32
    %11 = vector.broadcast %cst_15 : f32 to vector<32x32xf32>
    %12 = arith.maximumf %10, %11 : vector<32x32xf32>
    %cst_16 = arith.constant dense<0.000000e+00> : vector<32x96xf32>
    %13 = tpu.matmul %12, %2, %cst_16 {dimension_numbers = #tpu.dot_dimension_numbers<[1], [0], [0], [1], [0, 0, 1, 1], [], []>} : vector<32x32xf32>, vector<32x96xf32>, vector<32x96xf32> -> vector<32x96xf32>
    %14 = vector.broadcast %4 : vector<1x96xf32> to vector<32x96xf32>
    %15 = arith.addf %13, %14 : vector<32x96xf32>
    %16 = vector.shape_cast %15 : vector<32x96xf32> to vector<4x8x96xf32>
    %c0_17 = arith.constant 0 : index
    %c0_18 = arith.constant 0 : index
    %c0_19 = arith.constant 0 : index
    %17 = vector.load %arg13[%c0_17, %c0_18, %c0_19] : memref<4x8x96xf32, #tpu.memory_space<vmem>>, vector<4x8x96xf32>
    tpu.vector_store %arg13[%c0_17, %c0_18, %c0_19], %16 {strides = array<i32>} : memref<4x8x96xf32, #tpu.memory_space<vmem>>, vector<4x8x96xf32>,
    %cst_20 = arith.constant 0.000000e+00 : f32
    %18 = vector.broadcast %cst_20 : f32 to vector<8x32xf32>
    %c0_i32 = arith.constant 0 : i32
    %cst_21 = arith.constant dense<0.000000e+00> : vector<8x96xf32>
    %19 = tpu.matmul %18, %3, %cst_21 {dimension_numbers = #tpu.dot_dimension_numbers<[1], [0], [0], [1], [0, 0, 1, 1], [], []>} : vector<8x32xf32>, vector<32x96xf32>, vector<8x96xf32> -> vector<8x96xf32>
    %20 = arith.index_cast %c0_i32 : i32 to index
    %c0_22 = arith.constant 0 : index
    %c0_23 = arith.constant 0 : index
    %21 = vector.load %arg13[%20, %c0_22, %c0_23] : memref<4x8x96xf32, #tpu.memory_space<vmem>>, vector<1x8x96xf32>
    %22 = vector.shape_cast %21 : vector<1x8x96xf32> to vector<8x96xf32>
    %23 = vector.extract_strided_slice %22 {offsets = [0, 0], sizes = [8, 32], strides = [1, 1]} : vector<8x96xf32> to vector<8x32xf32>
    %24 = vector.extract_strided_slice %19 {offsets = [0, 0], sizes = [8, 32], strides = [1, 1]} : vector<8x96xf32> to vector<8x32xf32>
    %25 = arith.addf %23, %24 : vector<8x32xf32>
    %26 = arith.negf %25 : vector<8x32xf32>
    %27 = math.exp %26 : vector<8x32xf32>
    %cst_24 = arith.constant 1.000000e+00 : f32
    %28 = vector.broadcast %cst_24 : f32 to vector<8x32xf32>
    %29 = arith.addf %28, %27 : vector<8x32xf32>
    %30 = arith.divf %28, %29 : vector<8x32xf32>
    %31 = vector.extract_strided_slice %22 {offsets = [0, 32], sizes = [8, 32], strides = [1, 1]} : vector<8x96xf32> to vector<8x32xf32>
    %32 = vector.extract_strided_slice %19 {offsets = [0, 32], sizes = [8, 32], strides = [1, 1]} : vector<8x96xf32> to vector<8x32xf32>
    %33 = arith.addf %31, %32 : vector<8x32xf32>
    %34 = arith.negf %33 : vector<8x32xf32>
    %35 = math.exp %34 : vector<8x32xf32>
    %cst_25 = arith.constant 1.000000e+00 : f32
    %36 = vector.broadcast %cst_25 : f32 to vector<8x32xf32>
    %37 = arith.addf %36, %35 : vector<8x32xf32>
    %38 = arith.divf %36, %37 : vector<8x32xf32>
    %39 = vector.extract_strided_slice %22 {offsets = [0, 64], sizes = [8, 32], strides = [1, 1]} : vector<8x96xf32> to vector<8x32xf32>
    %40 = vector.extract_strided_slice %19 {offsets = [0, 64], sizes = [8, 32], strides = [1, 1]} : vector<8x96xf32> to vector<8x32xf32>
    %41 = vector.broadcast %5 : vector<1x32xf32> to vector<8x32xf32>
    %42 = arith.addf %40, %41 : vector<8x32xf32>
    %43 = arith.mulf %30, %42 : vector<8x32xf32>
    %44 = arith.addf %39, %43 : vector<8x32xf32>
    %45 = math.tanh %44 : vector<8x32xf32>
    %cst_26 = arith.constant 1.000000e+00 : f32
    %46 = vector.broadcast %cst_26 : f32 to vector<8x32xf32>
    %47 = arith.subf %46, %38 : vector<8x32xf32>
    %48 = arith.mulf %47, %45 : vector<8x32xf32>
    %49 = arith.mulf %38, %18 : vector<8x32xf32>
    %50 = arith.addf %48, %49 : vector<8x32xf32>
    %c1_i32 = arith.constant 1 : i32
    %cst_27 = arith.constant dense<0.000000e+00> : vector<8x96xf32>
    %51 = tpu.matmul %50, %3, %cst_27 {dimension_numbers = #tpu.dot_dimension_numbers<[1], [0], [0], [1], [0, 0, 1, 1], [], []>} : vector<8x32xf32>, vector<32x96xf32>, vector<8x96xf32> -> vector<8x96xf32>
    %52 = arith.index_cast %c1_i32 : i32 to index
    %c0_28 = arith.constant 0 : index
    %c0_29 = arith.constant 0 : index
    %53 = vector.load %arg13[%52, %c0_28, %c0_29] : memref<4x8x96xf32, #tpu.memory_space<vmem>>, vector<1x8x96xf32>
    %54 = vector.shape_cast %53 : vector<1x8x96xf32> to vector<8x96xf32>
    %55 = vector.extract_strided_slice %54 {offsets = [0, 0], sizes = [8, 32], strides = [1, 1]} : vector<8x96xf32> to vector<8x32xf32>
    %56 = vector.extract_strided_slice %51 {offsets = [0, 0], sizes = [8, 32], strides = [1, 1]} : vector<8x96xf32> to vector<8x32xf32>
    %57 = arith.addf %55, %56 : vector<8x32xf32>
    %58 = arith.negf %57 : vector<8x32xf32>
    %59 = math.exp %58 : vector<8x32xf32>
    %cst_30 = arith.constant 1.000000e+00 : f32
    %60 = vector.broadcast %cst_30 : f32 to vector<8x32xf32>
    %61 = arith.addf %60, %59 : vector<8x32xf32>
    %62 = arith.divf %60, %61 : vector<8x32xf32>
    %63 = vector.extract_strided_slice %54 {offsets = [0, 32], sizes = [8, 32], strides = [1, 1]} : vector<8x96xf32> to vector<8x32xf32>
    %64 = vector.extract_strided_slice %51 {offsets = [0, 32], sizes = [8, 32], strides = [1, 1]} : vector<8x96xf32> to vector<8x32xf32>
    %65 = arith.addf %63, %64 : vector<8x32xf32>
    %66 = arith.negf %65 : vector<8x32xf32>
    %67 = math.exp %66 : vector<8x32xf32>
    %cst_31 = arith.constant 1.000000e+00 : f32
    %68 = vector.broadcast %cst_31 : f32 to vector<8x32xf32>
    %69 = arith.addf %68, %67 : vector<8x32xf32>
    %70 = arith.divf %68, %69 : vector<8x32xf32>
    %71 = vector.extract_strided_slice %54 {offsets = [0, 64], sizes = [8, 32], strides = [1, 1]} : vector<8x96xf32> to vector<8x32xf32>
    %72 = vector.extract_strided_slice %51 {offsets = [0, 64], sizes = [8, 32], strides = [1, 1]} : vector<8x96xf32> to vector<8x32xf32>
    %73 = vector.broadcast %5 : vector<1x32xf32> to vector<8x32xf32>
    %74 = arith.addf %72, %73 : vector<8x32xf32>
    %75 = arith.mulf %62, %74 : vector<8x32xf32>
    %76 = arith.addf %71, %75 : vector<8x32xf32>
    %77 = math.tanh %76 : vector<8x32xf32>
    %cst_32 = arith.constant 1.000000e+00 : f32
    %78 = vector.broadcast %cst_32 : f32 to vector<8x32xf32>
    %79 = arith.subf %78, %70 : vector<8x32xf32>
    %80 = arith.mulf %79, %77 : vector<8x32xf32>
    %81 = arith.mulf %70, %50 : vector<8x32xf32>
    %82 = arith.addf %80, %81 : vector<8x32xf32>
    %c2_i32 = arith.constant 2 : i32
    %cst_33 = arith.constant dense<0.000000e+00> : vector<8x96xf32>
    %83 = tpu.matmul %82, %3, %cst_33 {dimension_numbers = #tpu.dot_dimension_numbers<[1], [0], [0], [1], [0, 0, 1, 1], [], []>} : vector<8x32xf32>, vector<32x96xf32>, vector<8x96xf32> -> vector<8x96xf32>
    %84 = arith.index_cast %c2_i32 : i32 to index
    %c0_34 = arith.constant 0 : index
    %c0_35 = arith.constant 0 : index
    %85 = vector.load %arg13[%84, %c0_34, %c0_35] : memref<4x8x96xf32, #tpu.memory_space<vmem>>, vector<1x8x96xf32>
    %86 = vector.shape_cast %85 : vector<1x8x96xf32> to vector<8x96xf32>
    %87 = vector.extract_strided_slice %86 {offsets = [0, 0], sizes = [8, 32], strides = [1, 1]} : vector<8x96xf32> to vector<8x32xf32>
    %88 = vector.extract_strided_slice %83 {offsets = [0, 0], sizes = [8, 32], strides = [1, 1]} : vector<8x96xf32> to vector<8x32xf32>
    %89 = arith.addf %87, %88 : vector<8x32xf32>
    %90 = arith.negf %89 : vector<8x32xf32>
    %91 = math.exp %90 : vector<8x32xf32>
    %cst_36 = arith.constant 1.000000e+00 : f32
    %92 = vector.broadcast %cst_36 : f32 to vector<8x32xf32>
    %93 = arith.addf %92, %91 : vector<8x32xf32>
    %94 = arith.divf %92, %93 : vector<8x32xf32>
    %95 = vector.extract_strided_slice %86 {offsets = [0, 32], sizes = [8, 32], strides = [1, 1]} : vector<8x96xf32> to vector<8x32xf32>
    %96 = vector.extract_strided_slice %83 {offsets = [0, 32], sizes = [8, 32], strides = [1, 1]} : vector<8x96xf32> to vector<8x32xf32>
    %97 = arith.addf %95, %96 : vector<8x32xf32>
    %98 = arith.negf %97 : vector<8x32xf32>
    %99 = math.exp %98 : vector<8x32xf32>
    %cst_37 = arith.constant 1.000000e+00 : f32
    %100 = vector.broadcast %cst_37 : f32 to vector<8x32xf32>
    %101 = arith.addf %100, %99 : vector<8x32xf32>
    %102 = arith.divf %100, %101 : vector<8x32xf32>
    %103 = vector.extract_strided_slice %86 {offsets = [0, 64], sizes = [8, 32], strides = [1, 1]} : vector<8x96xf32> to vector<8x32xf32>
    %104 = vector.extract_strided_slice %83 {offsets = [0, 64], sizes = [8, 32], strides = [1, 1]} : vector<8x96xf32> to vector<8x32xf32>
    %105 = vector.broadcast %5 : vector<1x32xf32> to vector<8x32xf32>
    %106 = arith.addf %104, %105 : vector<8x32xf32>
    %107 = arith.mulf %94, %106 : vector<8x32xf32>
    %108 = arith.addf %103, %107 : vector<8x32xf32>
    %109 = math.tanh %108 : vector<8x32xf32>
    %cst_38 = arith.constant 1.000000e+00 : f32
    %110 = vector.broadcast %cst_38 : f32 to vector<8x32xf32>
    %111 = arith.subf %110, %102 : vector<8x32xf32>
    %112 = arith.mulf %111, %109 : vector<8x32xf32>
    %113 = arith.mulf %102, %82 : vector<8x32xf32>
    %114 = arith.addf %112, %113 : vector<8x32xf32>
    %c3_i32 = arith.constant 3 : i32
    %cst_39 = arith.constant dense<0.000000e+00> : vector<8x96xf32>
    %115 = tpu.matmul %114, %3, %cst_39 {dimension_numbers = #tpu.dot_dimension_numbers<[1], [0], [0], [1], [0, 0, 1, 1], [], []>} : vector<8x32xf32>, vector<32x96xf32>, vector<8x96xf32> -> vector<8x96xf32>
    %116 = arith.index_cast %c3_i32 : i32 to index
    %c0_40 = arith.constant 0 : index
    %c0_41 = arith.constant 0 : index
    %117 = vector.load %arg13[%116, %c0_40, %c0_41] : memref<4x8x96xf32, #tpu.memory_space<vmem>>, vector<1x8x96xf32>
    %118 = vector.shape_cast %117 : vector<1x8x96xf32> to vector<8x96xf32>
    %119 = vector.extract_strided_slice %118 {offsets = [0, 0], sizes = [8, 32], strides = [1, 1]} : vector<8x96xf32> to vector<8x32xf32>
    %120 = vector.extract_strided_slice %115 {offsets = [0, 0], sizes = [8, 32], strides = [1, 1]} : vector<8x96xf32> to vector<8x32xf32>
    %121 = arith.addf %119, %120 : vector<8x32xf32>
    %122 = arith.negf %121 : vector<8x32xf32>
    %123 = math.exp %122 : vector<8x32xf32>
    %cst_42 = arith.constant 1.000000e+00 : f32
    %124 = vector.broadcast %cst_42 : f32 to vector<8x32xf32>
    %125 = arith.addf %124, %123 : vector<8x32xf32>
    %126 = arith.divf %124, %125 : vector<8x32xf32>
    %127 = vector.extract_strided_slice %118 {offsets = [0, 32], sizes = [8, 32], strides = [1, 1]} : vector<8x96xf32> to vector<8x32xf32>
    %128 = vector.extract_strided_slice %115 {offsets = [0, 32], sizes = [8, 32], strides = [1, 1]} : vector<8x96xf32> to vector<8x32xf32>
    %129 = arith.addf %127, %128 : vector<8x32xf32>
    %130 = arith.negf %129 : vector<8x32xf32>
    %131 = math.exp %130 : vector<8x32xf32>
    %cst_43 = arith.constant 1.000000e+00 : f32
    %132 = vector.broadcast %cst_43 : f32 to vector<8x32xf32>
    %133 = arith.addf %132, %131 : vector<8x32xf32>
    %134 = arith.divf %132, %133 : vector<8x32xf32>
    %135 = vector.extract_strided_slice %118 {offsets = [0, 64], sizes = [8, 32], strides = [1, 1]} : vector<8x96xf32> to vector<8x32xf32>
    %136 = vector.extract_strided_slice %115 {offsets = [0, 64], sizes = [8, 32], strides = [1, 1]} : vector<8x96xf32> to vector<8x32xf32>
    %137 = vector.broadcast %5 : vector<1x32xf32> to vector<8x32xf32>
    %138 = arith.addf %136, %137 : vector<8x32xf32>
    %139 = arith.mulf %126, %138 : vector<8x32xf32>
    %140 = arith.addf %135, %139 : vector<8x32xf32>
    %141 = math.tanh %140 : vector<8x32xf32>
    %cst_44 = arith.constant 1.000000e+00 : f32
    %142 = vector.broadcast %cst_44 : f32 to vector<8x32xf32>
    %143 = arith.subf %142, %134 : vector<8x32xf32>
    %144 = arith.mulf %143, %141 : vector<8x32xf32>
    %145 = arith.mulf %134, %114 : vector<8x32xf32>
    %146 = arith.addf %144, %145 : vector<8x32xf32>
    %c4_i32 = arith.constant 4 : i32
    %cst_45 = arith.constant dense<0.000000e+00> : vector<8x96xf32>
    %147 = tpu.matmul %146, %3, %cst_45 {dimension_numbers = #tpu.dot_dimension_numbers<[1], [0], [0], [1], [0, 0, 1, 1], [], []>} : vector<8x32xf32>, vector<32x96xf32>, vector<8x96xf32> -> vector<8x96xf32>
    %c0_46 = arith.constant 0 : index
    %c0_47 = arith.constant 0 : index
    %c0_48 = arith.constant 0 : index
    %148 = vector.load %arg9[%c0_46, %c0_47, %c0_48] : memref<2x4x96xf32, #tpu.memory_space<vmem>>, vector<2x4x96xf32>
    %149 = vector.shape_cast %148 : vector<2x4x96xf32> to vector<2x4x1x96xf32>
    %150 = vector.shape_cast %147 : vector<8x96xf32> to vector<1x4x2x96xf32>
    %151 = vector.shape_cast %146 : vector<8x32xf32> to vector<1x4x2x32xf32>
    %152 = vector.extract_strided_slice %149 {offsets = [0, 0, 0, 0], sizes = [2, 4, 1, 32], strides = [1, 1, 1, 1]} : vector<2x4x1x96xf32> to vector<2x4x1x32xf32>
    %153 = vector.extract_strided_slice %150 {offsets = [0, 0, 0, 0], sizes = [1, 4, 2, 32], strides = [1, 1, 1, 1]} : vector<1x4x2x96xf32> to vector<1x4x2x32xf32>
    %154 = vector.broadcast %152 : vector<2x4x1x32xf32> to vector<2x4x2x32xf32>
    %155 = vector.broadcast %153 : vector<1x4x2x32xf32> to vector<2x4x2x32xf32>
    %156 = arith.addf %154, %155 : vector<2x4x2x32xf32>
    %157 = arith.negf %156 : vector<2x4x2x32xf32>
    %158 = math.exp %157 : vector<2x4x2x32xf32>
    %cst_49 = arith.constant 1.000000e+00 : f32
    %159 = vector.broadcast %cst_49 : f32 to vector<2x4x2x32xf32>
    %160 = arith.addf %159, %158 : vector<2x4x2x32xf32>
    %161 = arith.divf %159, %160 : vector<2x4x2x32xf32>
    %162 = vector.extract_strided_slice %149 {offsets = [0, 0, 0, 32], sizes = [2, 4, 1, 32], strides = [1, 1, 1, 1]} : vector<2x4x1x96xf32> to vector<2x4x1x32xf32>
    %163 = vector.extract_strided_slice %150 {offsets = [0, 0, 0, 32], sizes = [1, 4, 2, 32], strides = [1, 1, 1, 1]} : vector<1x4x2x96xf32> to vector<1x4x2x32xf32>
    %164 = vector.broadcast %162 : vector<2x4x1x32xf32> to vector<2x4x2x32xf32>
    %165 = vector.broadcast %163 : vector<1x4x2x32xf32> to vector<2x4x2x32xf32>
    %166 = arith.addf %164, %165 : vector<2x4x2x32xf32>
    %167 = arith.negf %166 : vector<2x4x2x32xf32>
    %168 = math.exp %167 : vector<2x4x2x32xf32>
    %cst_50 = arith.constant 1.000000e+00 : f32
    %169 = vector.broadcast %cst_50 : f32 to vector<2x4x2x32xf32>
    %170 = arith.addf %169, %168 : vector<2x4x2x32xf32>
    %171 = arith.divf %169, %170 : vector<2x4x2x32xf32>
    %172 = vector.extract_strided_slice %149 {offsets = [0, 0, 0, 64], sizes = [2, 4, 1, 32], strides = [1, 1, 1, 1]} : vector<2x4x1x96xf32> to vector<2x4x1x32xf32>
    %173 = vector.extract_strided_slice %150 {offsets = [0, 0, 0, 64], sizes = [1, 4, 2, 32], strides = [1, 1, 1, 1]} : vector<1x4x2x96xf32> to vector<1x4x2x32xf32>
    %174 = vector.shape_cast %5 : vector<1x32xf32> to vector<1x1x1x32xf32>
    %175 = vector.broadcast %174 : vector<1x1x1x32xf32> to vector<1x4x2x32xf32>
    %176 = arith.addf %173, %175 : vector<1x4x2x32xf32>
    %177 = vector.broadcast %176 : vector<1x4x2x32xf32> to vector<2x4x2x32xf32>
    %178 = arith.mulf %161, %177 : vector<2x4x2x32xf32>
    %179 = vector.broadcast %172 : vector<2x4x1x32xf32> to vector<2x4x2x32xf32>
    %180 = arith.addf %179, %178 : vector<2x4x2x32xf32>
    %181 = math.tanh %180 : vector<2x4x2x32xf32>
    %cst_51 = arith.constant 1.000000e+00 : f32
    %182 = vector.broadcast %cst_51 : f32 to vector<2x4x2x32xf32>
    %183 = arith.subf %182, %171 : vector<2x4x2x32xf32>
    %184 = arith.mulf %183, %181 : vector<2x4x2x32xf32>
    %185 = vector.broadcast %151 : vector<1x4x2x32xf32> to vector<2x4x2x32xf32>
    %186 = arith.mulf %171, %185 : vector<2x4x2x32xf32>
    %187 = arith.addf %184, %186 : vector<2x4x2x32xf32>
    %188 = vector.shape_cast %187 : vector<2x4x2x32xf32> to vector<16x32xf32>
    %c0_52 = arith.constant 0 : index
    %c0_53 = arith.constant 0 : index
    %189 = vector.load %arg10[%c0_52, %c0_53] : memref<32x4xf32, #tpu.memory_space<vmem>>, vector<32x4xf32>
    %cst_54 = arith.constant dense<0.000000e+00> : vector<16x4xf32>
    %190 = tpu.matmul %188, %189, %cst_54 {dimension_numbers = #tpu.dot_dimension_numbers<[1], [0], [0], [1], [0, 0, 1, 1], [], []>} : vector<16x32xf32>, vector<32x4xf32>, vector<16x4xf32> -> vector<16x4xf32>
    %c0_55 = arith.constant 0 : index
    %c0_56 = arith.constant 0 : index
    %191 = vector.load %arg11[%c0_55, %c0_56] : memref<1x4xf32, #tpu.memory_space<vmem>>, vector<1x4xf32>
    %192 = vector.broadcast %191 : vector<1x4xf32> to vector<16x4xf32>
    %193 = arith.addf %190, %192 : vector<16x4xf32>
    %194 = vector.extract_strided_slice %193 {offsets = [0, 0], sizes = [8, 4], strides = [1, 1]} : vector<16x4xf32> to vector<8x4xf32>
    %195 = vector.extract_strided_slice %193 {offsets = [8, 0], sizes = [8, 4], strides = [1, 1]} : vector<16x4xf32> to vector<8x4xf32>
    %196 = tpu.concatenate %194, %195 in 1 : vector<8x4xf32>, vector<8x4xf32> -> vector<8x8xf32>
    %c0_57 = arith.constant 0 : index
    %c0_58 = arith.constant 0 : index
    %c0_59 = arith.constant 0 : index
    %197 = vector.load %arg2[%c0_57, %c0_58, %c0_59] : memref<4x2x1xf32, #tpu.memory_space<vmem>>, vector<4x2x1xf32>
    %198 = vector.shape_cast %197 : vector<4x2x1xf32> to vector<8x1xf32>
    %199 = vector.broadcast %198 : vector<8x1xf32> to vector<8x8xf32>
    %200 = arith.addf %196, %199 : vector<8x8xf32>
    %201 = vector.shape_cast %200 : vector<8x8xf32> to vector<4x2x8xf32>
    %c0_60 = arith.constant 0 : index
    %c0_61 = arith.constant 0 : index
    %c0_62 = arith.constant 0 : index
    %202 = vector.load %arg12[%c0_60, %c0_61, %c0_62] : memref<4x2x8xf32, #tpu.memory_space<vmem>>, vector<4x2x8xf32>
    tpu.vector_store %arg12[%c0_60, %c0_61, %c0_62], %201 {strides = array<i32>} : memref<4x2x8xf32, #tpu.memory_space<vmem>>, vector<4x2x8xf32>,
    return
  }
  func.func @transform_0(%arg0: i32) -> (i32, i32, i32, i32) {
    %c0_i32 = arith.constant 0 : i32
    %c0_i32_0 = arith.constant 0 : i32
    %c0_i32_1 = arith.constant 0 : i32
    %c0_i32_2 = arith.constant 0 : i32
    return %c0_i32, %c0_i32_0, %arg0, %c0_i32_1 : i32, i32, i32, i32
  }
  func.func @transform_1(%arg0: i32) -> (i32, i32, i32) {
    %c0_i32 = arith.constant 0 : i32
    %c0_i32_0 = arith.constant 0 : i32
    %c0_i32_1 = arith.constant 0 : i32
    return %c0_i32, %arg0, %c0_i32_0 : i32, i32, i32
  }
  func.func @transform_2(%arg0: i32) -> (i32, i32) {
    %c0_i32 = arith.constant 0 : i32
    %c0_i32_0 = arith.constant 0 : i32
    %c0_i32_1 = arith.constant 0 : i32
    return %c0_i32, %c0_i32_0 : i32, i32
  }
  func.func @transform_3(%arg0: i32) -> (i32, i32) {
    %c0_i32 = arith.constant 0 : i32
    %c0_i32_0 = arith.constant 0 : i32
    %c0_i32_1 = arith.constant 0 : i32
    return %c0_i32, %c0_i32_0 : i32, i32
  }
  func.func @transform_4(%arg0: i32) -> (i32, i32) {
    %c0_i32 = arith.constant 0 : i32
    %c0_i32_0 = arith.constant 0 : i32
    %c0_i32_1 = arith.constant 0 : i32
    return %c0_i32, %c0_i32_0 : i32, i32
  }
  func.func @transform_5(%arg0: i32) -> (i32, i32) {
    %c0_i32 = arith.constant 0 : i32
    %c0_i32_0 = arith.constant 0 : i32
    %c0_i32_1 = arith.constant 0 : i32
    return %c0_i32, %c0_i32_0 : i32, i32
  }
  func.func @transform_6(%arg0: i32) -> (i32, i32) {
    %c0_i32 = arith.constant 0 : i32
    %c0_i32_0 = arith.constant 0 : i32
    %c0_i32_1 = arith.constant 0 : i32
    return %c0_i32, %c0_i32_0 : i32, i32
  }
  func.func @transform_7(%arg0: i32) -> (i32, i32) {
    %c0_i32 = arith.constant 0 : i32
    %c0_i32_0 = arith.constant 0 : i32
    %c0_i32_1 = arith.constant 0 : i32
    return %c0_i32, %c0_i32_0 : i32, i32
  }
  func.func @transform_8(%arg0: i32) -> (i32, i32, i32) {
    %c0_i32 = arith.constant 0 : i32
    %c0_i32_0 = arith.constant 0 : i32
    %c0_i32_1 = arith.constant 0 : i32
    %c0_i32_2 = arith.constant 0 : i32
    return %c0_i32, %c0_i32_0, %c0_i32_1 : i32, i32, i32
  }
  func.func @transform_9(%arg0: i32) -> (i32, i32) {
    %c0_i32 = arith.constant 0 : i32
    %c0_i32_0 = arith.constant 0 : i32
    %c0_i32_1 = arith.constant 0 : i32
    return %c0_i32, %c0_i32_0 : i32, i32
  }
  func.func @transform_10(%arg0: i32) -> (i32, i32) {
    %c0_i32 = arith.constant 0 : i32
    %c0_i32_0 = arith.constant 0 : i32
    %c0_i32_1 = arith.constant 0 : i32
    return %c0_i32, %c0_i32_0 : i32, i32
  }
  func.func @transform_11(%arg0: i32) -> (i32, i32, i32) {
    %c0_i32 = arith.constant 0 : i32
    %c0_i32_0 = arith.constant 0 : i32
    %c0_i32_1 = arith.constant 0 : i32
    return %c0_i32, %arg0, %c0_i32_0 : i32, i32, i32
  }
}

module attributes {stable_mosaic.version = 11 : i64} {
  func.func @segrnn_kernel(%arg0: i32, %arg1: memref<4x4x2x4xf32, #tpu.memory_space<vmem>>, %arg2: memref<4x2x1xf32, #tpu.memory_space<vmem>>, %arg3: memref<4x32xf32, #tpu.memory_space<vmem>>, %arg4: memref<1x32xf32, #tpu.memory_space<vmem>>, %arg5: memref<32x96xf32, #tpu.memory_space<vmem>>, %arg6: memref<32x96xf32, #tpu.memory_space<vmem>>, %arg7: memref<1x96xf32, #tpu.memory_space<vmem>>, %arg8: memref<1x32xf32, #tpu.memory_space<vmem>>, %arg9: memref<2x4x96xf32, #tpu.memory_space<vmem>>, %arg10: memref<32x4xf32, #tpu.memory_space<vmem>>, %arg11: memref<1x4xf32, #tpu.memory_space<vmem>>, %arg12: memref<4x2x8xf32, #tpu.memory_space<vmem>>, %arg13: memref<4x8x96xf32, #tpu.memory_space<vmem>>) attributes {dimension_semantics = [#tpu.dimension_semantics<parallel>], iteration_bounds = array<i64: 1>, scalar_prefetch = 0 : i64, scratch_operands = 1 : i64, tpu.core_type = #tpu.core_type<tc>, window_params = [{transform_indices = @transform_0, window_bounds = array<i64: 4, 4, 2, 4>}, {transform_indices = @transform_1, window_bounds = array<i64: 4, 2, 1>}, {pipeline_mode = #tpu.pipeline_mode<synchronous>, transform_indices = @transform_2, window_bounds = array<i64: 4, 32>}, {pipeline_mode = #tpu.pipeline_mode<synchronous>, transform_indices = @transform_3, window_bounds = array<i64: 1, 32>}, {pipeline_mode = #tpu.pipeline_mode<synchronous>, transform_indices = @transform_4, window_bounds = array<i64: 32, 96>}, {pipeline_mode = #tpu.pipeline_mode<synchronous>, transform_indices = @transform_5, window_bounds = array<i64: 32, 96>}, {pipeline_mode = #tpu.pipeline_mode<synchronous>, transform_indices = @transform_6, window_bounds = array<i64: 1, 96>}, {pipeline_mode = #tpu.pipeline_mode<synchronous>, transform_indices = @transform_7, window_bounds = array<i64: 1, 32>}, {pipeline_mode = #tpu.pipeline_mode<synchronous>, transform_indices = @transform_8, window_bounds = array<i64: 2, 4, 96>}, {pipeline_mode = #tpu.pipeline_mode<synchronous>, transform_indices = @transform_9, window_bounds = array<i64: 32, 4>}, {pipeline_mode = #tpu.pipeline_mode<synchronous>, transform_indices = @transform_10, window_bounds = array<i64: 1, 4>}, {transform_indices = @transform_11, window_bounds = array<i64: 4, 2, 8>}]} {
    %c0 = arith.constant 0 : index
    %c0_0 = arith.constant 0 : index
    %0 = vector.load %arg3[%c0, %c0_0] : memref<4x32xf32, #tpu.memory_space<vmem>>, vector<4x32xf32>
    %c0_1 = arith.constant 0 : index
    %c0_2 = arith.constant 0 : index
    %1 = vector.load %arg4[%c0_1, %c0_2] : memref<1x32xf32, #tpu.memory_space<vmem>>, vector<1x32xf32>
    %c0_3 = arith.constant 0 : index
    %c0_4 = arith.constant 0 : index
    %2 = vector.load %arg5[%c0_3, %c0_4] : memref<32x96xf32, #tpu.memory_space<vmem>>, vector<32x96xf32>
    %c0_5 = arith.constant 0 : index
    %c0_6 = arith.constant 0 : index
    %3 = vector.load %arg6[%c0_5, %c0_6] : memref<32x96xf32, #tpu.memory_space<vmem>>, vector<32x96xf32>
    %c0_7 = arith.constant 0 : index
    %c0_8 = arith.constant 0 : index
    %4 = vector.load %arg7[%c0_7, %c0_8] : memref<1x96xf32, #tpu.memory_space<vmem>>, vector<1x96xf32>
    %c0_9 = arith.constant 0 : index
    %c0_10 = arith.constant 0 : index
    %5 = vector.load %arg8[%c0_9, %c0_10] : memref<1x32xf32, #tpu.memory_space<vmem>>, vector<1x32xf32>
    %c0_11 = arith.constant 0 : index
    %c0_12 = arith.constant 0 : index
    %c0_13 = arith.constant 0 : index
    %c0_14 = arith.constant 0 : index
    %6 = vector.load %arg1[%c0_11, %c0_12, %c0_13, %c0_14] : memref<4x4x2x4xf32, #tpu.memory_space<vmem>>, vector<4x4x2x4xf32>
    %7 = vector.shape_cast %6 : vector<4x4x2x4xf32> to vector<32x4xf32>
    %cst = arith.constant dense<0.000000e+00> : vector<32x32xf32>
    %8 = tpu.matmul %7, %0, %cst {dimension_numbers = #tpu.dot_dimension_numbers<[1], [0], [0], [1], [0, 0, 1, 1], [], []>} : vector<32x4xf32>, vector<4x32xf32>, vector<32x32xf32> -> vector<32x32xf32>
    %9 = vector.broadcast %1 : vector<1x32xf32> to vector<32x32xf32>
    %10 = arith.addf %8, %9 : vector<32x32xf32>
    %cst_15 = arith.constant 0.000000e+00 : f32
    %11 = vector.broadcast %cst_15 : f32 to vector<32x32xf32>
    %12 = arith.maximumf %10, %11 : vector<32x32xf32>
    %cst_16 = arith.constant dense<0.000000e+00> : vector<32x96xf32>
    %13 = tpu.matmul %12, %2, %cst_16 {dimension_numbers = #tpu.dot_dimension_numbers<[1], [0], [0], [1], [0, 0, 1, 1], [], []>} : vector<32x32xf32>, vector<32x96xf32>, vector<32x96xf32> -> vector<32x96xf32>
    %14 = vector.broadcast %4 : vector<1x96xf32> to vector<32x96xf32>
    %15 = arith.addf %13, %14 : vector<32x96xf32>
    %16 = vector.shape_cast %15 : vector<32x96xf32> to vector<4x8x96xf32>
    %c0_17 = arith.constant 0 : index
    %c0_18 = arith.constant 0 : index
    %c0_19 = arith.constant 0 : index
    %17 = vector.load %arg13[%c0_17, %c0_18, %c0_19] : memref<4x8x96xf32, #tpu.memory_space<vmem>>, vector<4x8x96xf32>
    tpu.vector_store %arg13[%c0_17, %c0_18, %c0_19], %16 {strides = array<i32>} : memref<4x8x96xf32, #tpu.memory_space<vmem>>, vector<4x8x96xf32>,
    %cst_20 = arith.constant 0.000000e+00 : f32
    %18 = vector.broadcast %cst_20 : f32 to vector<8x32xf32>
    %c0_i32 = arith.constant 0 : i32
    %cst_21 = arith.constant dense<0.000000e+00> : vector<8x96xf32>
    %19 = tpu.matmul %18, %3, %cst_21 {dimension_numbers = #tpu.dot_dimension_numbers<[1], [0], [0], [1], [0, 0, 1, 1], [], []>} : vector<8x32xf32>, vector<32x96xf32>, vector<8x96xf32> -> vector<8x96xf32>
    %20 = arith.index_cast %c0_i32 : i32 to index
    %c0_22 = arith.constant 0 : index
    %c0_23 = arith.constant 0 : index
    %21 = vector.load %arg13[%20, %c0_22, %c0_23] : memref<4x8x96xf32, #tpu.memory_space<vmem>>, vector<1x8x96xf32>
    %22 = vector.shape_cast %21 : vector<1x8x96xf32> to vector<8x96xf32>
    %23 = vector.extract_strided_slice %22 {offsets = [0, 0], sizes = [8, 32], strides = [1, 1]} : vector<8x96xf32> to vector<8x32xf32>
    %24 = vector.extract_strided_slice %19 {offsets = [0, 0], sizes = [8, 32], strides = [1, 1]} : vector<8x96xf32> to vector<8x32xf32>
    %25 = arith.addf %23, %24 : vector<8x32xf32>
    %26 = arith.negf %25 : vector<8x32xf32>
    %27 = math.exp %26 : vector<8x32xf32>
    %cst_24 = arith.constant 1.000000e+00 : f32
    %28 = vector.broadcast %cst_24 : f32 to vector<8x32xf32>
    %29 = arith.addf %28, %27 : vector<8x32xf32>
    %30 = arith.divf %28, %29 : vector<8x32xf32>
    %31 = vector.extract_strided_slice %22 {offsets = [0, 32], sizes = [8, 32], strides = [1, 1]} : vector<8x96xf32> to vector<8x32xf32>
    %32 = vector.extract_strided_slice %19 {offsets = [0, 32], sizes = [8, 32], strides = [1, 1]} : vector<8x96xf32> to vector<8x32xf32>
    %33 = arith.addf %31, %32 : vector<8x32xf32>
    %34 = arith.negf %33 : vector<8x32xf32>
    %35 = math.exp %34 : vector<8x32xf32>
    %cst_25 = arith.constant 1.000000e+00 : f32
    %36 = vector.broadcast %cst_25 : f32 to vector<8x32xf32>
    %37 = arith.addf %36, %35 : vector<8x32xf32>
    %38 = arith.divf %36, %37 : vector<8x32xf32>
    %39 = vector.extract_strided_slice %22 {offsets = [0, 64], sizes = [8, 32], strides = [1, 1]} : vector<8x96xf32> to vector<8x32xf32>
    %40 = vector.extract_strided_slice %19 {offsets = [0, 64], sizes = [8, 32], strides = [1, 1]} : vector<8x96xf32> to vector<8x32xf32>
    %41 = vector.broadcast %5 : vector<1x32xf32> to vector<8x32xf32>
    %42 = arith.addf %40, %41 : vector<8x32xf32>
    %43 = arith.mulf %30, %42 : vector<8x32xf32>
    %44 = arith.addf %39, %43 : vector<8x32xf32>
    %45 = math.tanh %44 : vector<8x32xf32>
    %cst_26 = arith.constant 1.000000e+00 : f32
    %46 = vector.broadcast %cst_26 : f32 to vector<8x32xf32>
    %47 = arith.subf %46, %38 : vector<8x32xf32>
    %48 = arith.mulf %47, %45 : vector<8x32xf32>
    %49 = arith.mulf %38, %18 : vector<8x32xf32>
    %50 = arith.addf %48, %49 : vector<8x32xf32>
    %c1_i32 = arith.constant 1 : i32
    %cst_27 = arith.constant dense<0.000000e+00> : vector<8x96xf32>
    %51 = tpu.matmul %50, %3, %cst_27 {dimension_numbers = #tpu.dot_dimension_numbers<[1], [0], [0], [1], [0, 0, 1, 1], [], []>} : vector<8x32xf32>, vector<32x96xf32>, vector<8x96xf32> -> vector<8x96xf32>
    %52 = arith.index_cast %c1_i32 : i32 to index
    %c0_28 = arith.constant 0 : index
    %c0_29 = arith.constant 0 : index
    %53 = vector.load %arg13[%52, %c0_28, %c0_29] : memref<4x8x96xf32, #tpu.memory_space<vmem>>, vector<1x8x96xf32>
    %54 = vector.shape_cast %53 : vector<1x8x96xf32> to vector<8x96xf32>
    %55 = vector.extract_strided_slice %54 {offsets = [0, 0], sizes = [8, 32], strides = [1, 1]} : vector<8x96xf32> to vector<8x32xf32>
    %56 = vector.extract_strided_slice %51 {offsets = [0, 0], sizes = [8, 32], strides = [1, 1]} : vector<8x96xf32> to vector<8x32xf32>
    %57 = arith.addf %55, %56 : vector<8x32xf32>
    %58 = arith.negf %57 : vector<8x32xf32>
    %59 = math.exp %58 : vector<8x32xf32>
    %cst_30 = arith.constant 1.000000e+00 : f32
    %60 = vector.broadcast %cst_30 : f32 to vector<8x32xf32>
    %61 = arith.addf %60, %59 : vector<8x32xf32>
    %62 = arith.divf %60, %61 : vector<8x32xf32>
    %63 = vector.extract_strided_slice %54 {offsets = [0, 32], sizes = [8, 32], strides = [1, 1]} : vector<8x96xf32> to vector<8x32xf32>
    %64 = vector.extract_strided_slice %51 {offsets = [0, 32], sizes = [8, 32], strides = [1, 1]} : vector<8x96xf32> to vector<8x32xf32>
    %65 = arith.addf %63, %64 : vector<8x32xf32>
    %66 = arith.negf %65 : vector<8x32xf32>
    %67 = math.exp %66 : vector<8x32xf32>
    %cst_31 = arith.constant 1.000000e+00 : f32
    %68 = vector.broadcast %cst_31 : f32 to vector<8x32xf32>
    %69 = arith.addf %68, %67 : vector<8x32xf32>
    %70 = arith.divf %68, %69 : vector<8x32xf32>
    %71 = vector.extract_strided_slice %54 {offsets = [0, 64], sizes = [8, 32], strides = [1, 1]} : vector<8x96xf32> to vector<8x32xf32>
    %72 = vector.extract_strided_slice %51 {offsets = [0, 64], sizes = [8, 32], strides = [1, 1]} : vector<8x96xf32> to vector<8x32xf32>
    %73 = vector.broadcast %5 : vector<1x32xf32> to vector<8x32xf32>
    %74 = arith.addf %72, %73 : vector<8x32xf32>
    %75 = arith.mulf %62, %74 : vector<8x32xf32>
    %76 = arith.addf %71, %75 : vector<8x32xf32>
    %77 = math.tanh %76 : vector<8x32xf32>
    %cst_32 = arith.constant 1.000000e+00 : f32
    %78 = vector.broadcast %cst_32 : f32 to vector<8x32xf32>
    %79 = arith.subf %78, %70 : vector<8x32xf32>
    %80 = arith.mulf %79, %77 : vector<8x32xf32>
    %81 = arith.mulf %70, %50 : vector<8x32xf32>
    %82 = arith.addf %80, %81 : vector<8x32xf32>
    %c2_i32 = arith.constant 2 : i32
    %cst_33 = arith.constant dense<0.000000e+00> : vector<8x96xf32>
    %83 = tpu.matmul %82, %3, %cst_33 {dimension_numbers = #tpu.dot_dimension_numbers<[1], [0], [0], [1], [0, 0, 1, 1], [], []>} : vector<8x32xf32>, vector<32x96xf32>, vector<8x96xf32> -> vector<8x96xf32>
    %84 = arith.index_cast %c2_i32 : i32 to index
    %c0_34 = arith.constant 0 : index
    %c0_35 = arith.constant 0 : index
    %85 = vector.load %arg13[%84, %c0_34, %c0_35] : memref<4x8x96xf32, #tpu.memory_space<vmem>>, vector<1x8x96xf32>
    %86 = vector.shape_cast %85 : vector<1x8x96xf32> to vector<8x96xf32>
    %87 = vector.extract_strided_slice %86 {offsets = [0, 0], sizes = [8, 32], strides = [1, 1]} : vector<8x96xf32> to vector<8x32xf32>
    %88 = vector.extract_strided_slice %83 {offsets = [0, 0], sizes = [8, 32], strides = [1, 1]} : vector<8x96xf32> to vector<8x32xf32>
    %89 = arith.addf %87, %88 : vector<8x32xf32>
    %90 = arith.negf %89 : vector<8x32xf32>
    %91 = math.exp %90 : vector<8x32xf32>
    %cst_36 = arith.constant 1.000000e+00 : f32
    %92 = vector.broadcast %cst_36 : f32 to vector<8x32xf32>
    %93 = arith.addf %92, %91 : vector<8x32xf32>
    %94 = arith.divf %92, %93 : vector<8x32xf32>
    %95 = vector.extract_strided_slice %86 {offsets = [0, 32], sizes = [8, 32], strides = [1, 1]} : vector<8x96xf32> to vector<8x32xf32>
    %96 = vector.extract_strided_slice %83 {offsets = [0, 32], sizes = [8, 32], strides = [1, 1]} : vector<8x96xf32> to vector<8x32xf32>
    %97 = arith.addf %95, %96 : vector<8x32xf32>
    %98 = arith.negf %97 : vector<8x32xf32>
    %99 = math.exp %98 : vector<8x32xf32>
    %cst_37 = arith.constant 1.000000e+00 : f32
    %100 = vector.broadcast %cst_37 : f32 to vector<8x32xf32>
    %101 = arith.addf %100, %99 : vector<8x32xf32>
    %102 = arith.divf %100, %101 : vector<8x32xf32>
    %103 = vector.extract_strided_slice %86 {offsets = [0, 64], sizes = [8, 32], strides = [1, 1]} : vector<8x96xf32> to vector<8x32xf32>
    %104 = vector.extract_strided_slice %83 {offsets = [0, 64], sizes = [8, 32], strides = [1, 1]} : vector<8x96xf32> to vector<8x32xf32>
    %105 = vector.broadcast %5 : vector<1x32xf32> to vector<8x32xf32>
    %106 = arith.addf %104, %105 : vector<8x32xf32>
    %107 = arith.mulf %94, %106 : vector<8x32xf32>
    %108 = arith.addf %103, %107 : vector<8x32xf32>
    %109 = math.tanh %108 : vector<8x32xf32>
    %cst_38 = arith.constant 1.000000e+00 : f32
    %110 = vector.broadcast %cst_38 : f32 to vector<8x32xf32>
    %111 = arith.subf %110, %102 : vector<8x32xf32>
    %112 = arith.mulf %111, %109 : vector<8x32xf32>
    %113 = arith.mulf %102, %82 : vector<8x32xf32>
    %114 = arith.addf %112, %113 : vector<8x32xf32>
    %c3_i32 = arith.constant 3 : i32
    %cst_39 = arith.constant dense<0.000000e+00> : vector<8x96xf32>
    %115 = tpu.matmul %114, %3, %cst_39 {dimension_numbers = #tpu.dot_dimension_numbers<[1], [0], [0], [1], [0, 0, 1, 1], [], []>} : vector<8x32xf32>, vector<32x96xf32>, vector<8x96xf32> -> vector<8x96xf32>
    %116 = arith.index_cast %c3_i32 : i32 to index
    %c0_40 = arith.constant 0 : index
    %c0_41 = arith.constant 0 : index
    %117 = vector.load %arg13[%116, %c0_40, %c0_41] : memref<4x8x96xf32, #tpu.memory_space<vmem>>, vector<1x8x96xf32>
    %118 = vector.shape_cast %117 : vector<1x8x96xf32> to vector<8x96xf32>
    %119 = vector.extract_strided_slice %118 {offsets = [0, 0], sizes = [8, 32], strides = [1, 1]} : vector<8x96xf32> to vector<8x32xf32>
    %120 = vector.extract_strided_slice %115 {offsets = [0, 0], sizes = [8, 32], strides = [1, 1]} : vector<8x96xf32> to vector<8x32xf32>
    %121 = arith.addf %119, %120 : vector<8x32xf32>
    %122 = arith.negf %121 : vector<8x32xf32>
    %123 = math.exp %122 : vector<8x32xf32>
    %cst_42 = arith.constant 1.000000e+00 : f32
    %124 = vector.broadcast %cst_42 : f32 to vector<8x32xf32>
    %125 = arith.addf %124, %123 : vector<8x32xf32>
    %126 = arith.divf %124, %125 : vector<8x32xf32>
    %127 = vector.extract_strided_slice %118 {offsets = [0, 32], sizes = [8, 32], strides = [1, 1]} : vector<8x96xf32> to vector<8x32xf32>
    %128 = vector.extract_strided_slice %115 {offsets = [0, 32], sizes = [8, 32], strides = [1, 1]} : vector<8x96xf32> to vector<8x32xf32>
    %129 = arith.addf %127, %128 : vector<8x32xf32>
    %130 = arith.negf %129 : vector<8x32xf32>
    %131 = math.exp %130 : vector<8x32xf32>
    %cst_43 = arith.constant 1.000000e+00 : f32
    %132 = vector.broadcast %cst_43 : f32 to vector<8x32xf32>
    %133 = arith.addf %132, %131 : vector<8x32xf32>
    %134 = arith.divf %132, %133 : vector<8x32xf32>
    %135 = vector.extract_strided_slice %118 {offsets = [0, 64], sizes = [8, 32], strides = [1, 1]} : vector<8x96xf32> to vector<8x32xf32>
    %136 = vector.extract_strided_slice %115 {offsets = [0, 64], sizes = [8, 32], strides = [1, 1]} : vector<8x96xf32> to vector<8x32xf32>
    %137 = vector.broadcast %5 : vector<1x32xf32> to vector<8x32xf32>
    %138 = arith.addf %136, %137 : vector<8x32xf32>
    %139 = arith.mulf %126, %138 : vector<8x32xf32>
    %140 = arith.addf %135, %139 : vector<8x32xf32>
    %141 = math.tanh %140 : vector<8x32xf32>
    %cst_44 = arith.constant 1.000000e+00 : f32
    %142 = vector.broadcast %cst_44 : f32 to vector<8x32xf32>
    %143 = arith.subf %142, %134 : vector<8x32xf32>
    %144 = arith.mulf %143, %141 : vector<8x32xf32>
    %145 = arith.mulf %134, %114 : vector<8x32xf32>
    %146 = arith.addf %144, %145 : vector<8x32xf32>
    %c4_i32 = arith.constant 4 : i32
    %cst_45 = arith.constant dense<0.000000e+00> : vector<8x96xf32>
    %147 = tpu.matmul %146, %3, %cst_45 {dimension_numbers = #tpu.dot_dimension_numbers<[1], [0], [0], [1], [0, 0, 1, 1], [], []>} : vector<8x32xf32>, vector<32x96xf32>, vector<8x96xf32> -> vector<8x96xf32>
    %c0_46 = arith.constant 0 : index
    %c0_47 = arith.constant 0 : index
    %c0_48 = arith.constant 0 : index
    %148 = vector.load %arg9[%c0_46, %c0_47, %c0_48] : memref<2x4x96xf32, #tpu.memory_space<vmem>>, vector<2x4x96xf32>
    %149 = vector.shape_cast %148 : vector<2x4x96xf32> to vector<2x4x1x96xf32>
    %150 = vector.shape_cast %147 : vector<8x96xf32> to vector<1x4x2x96xf32>
    %151 = vector.shape_cast %146 : vector<8x32xf32> to vector<1x4x2x32xf32>
    %152 = vector.extract_strided_slice %149 {offsets = [0, 0, 0, 0], sizes = [2, 4, 1, 32], strides = [1, 1, 1, 1]} : vector<2x4x1x96xf32> to vector<2x4x1x32xf32>
    %153 = vector.extract_strided_slice %150 {offsets = [0, 0, 0, 0], sizes = [1, 4, 2, 32], strides = [1, 1, 1, 1]} : vector<1x4x2x96xf32> to vector<1x4x2x32xf32>
    %154 = vector.broadcast %152 : vector<2x4x1x32xf32> to vector<2x4x2x32xf32>
    %155 = vector.broadcast %153 : vector<1x4x2x32xf32> to vector<2x4x2x32xf32>
    %156 = arith.addf %154, %155 : vector<2x4x2x32xf32>
    %157 = arith.negf %156 : vector<2x4x2x32xf32>
    %158 = math.exp %157 : vector<2x4x2x32xf32>
    %cst_49 = arith.constant 1.000000e+00 : f32
    %159 = vector.broadcast %cst_49 : f32 to vector<2x4x2x32xf32>
    %160 = arith.addf %159, %158 : vector<2x4x2x32xf32>
    %161 = arith.divf %159, %160 : vector<2x4x2x32xf32>
    %162 = vector.extract_strided_slice %149 {offsets = [0, 0, 0, 32], sizes = [2, 4, 1, 32], strides = [1, 1, 1, 1]} : vector<2x4x1x96xf32> to vector<2x4x1x32xf32>
    %163 = vector.extract_strided_slice %150 {offsets = [0, 0, 0, 32], sizes = [1, 4, 2, 32], strides = [1, 1, 1, 1]} : vector<1x4x2x96xf32> to vector<1x4x2x32xf32>
    %164 = vector.broadcast %162 : vector<2x4x1x32xf32> to vector<2x4x2x32xf32>
    %165 = vector.broadcast %163 : vector<1x4x2x32xf32> to vector<2x4x2x32xf32>
    %166 = arith.addf %164, %165 : vector<2x4x2x32xf32>
    %167 = arith.negf %166 : vector<2x4x2x32xf32>
    %168 = math.exp %167 : vector<2x4x2x32xf32>
    %cst_50 = arith.constant 1.000000e+00 : f32
    %169 = vector.broadcast %cst_50 : f32 to vector<2x4x2x32xf32>
    %170 = arith.addf %169, %168 : vector<2x4x2x32xf32>
    %171 = arith.divf %169, %170 : vector<2x4x2x32xf32>
    %172 = vector.extract_strided_slice %149 {offsets = [0, 0, 0, 64], sizes = [2, 4, 1, 32], strides = [1, 1, 1, 1]} : vector<2x4x1x96xf32> to vector<2x4x1x32xf32>
    %173 = vector.extract_strided_slice %150 {offsets = [0, 0, 0, 64], sizes = [1, 4, 2, 32], strides = [1, 1, 1, 1]} : vector<1x4x2x96xf32> to vector<1x4x2x32xf32>
    %174 = vector.shape_cast %5 : vector<1x32xf32> to vector<1x1x1x32xf32>
    %175 = vector.broadcast %174 : vector<1x1x1x32xf32> to vector<1x4x2x32xf32>
    %176 = arith.addf %173, %175 : vector<1x4x2x32xf32>
    %177 = vector.broadcast %176 : vector<1x4x2x32xf32> to vector<2x4x2x32xf32>
    %178 = arith.mulf %161, %177 : vector<2x4x2x32xf32>
    %179 = vector.broadcast %172 : vector<2x4x1x32xf32> to vector<2x4x2x32xf32>
    %180 = arith.addf %179, %178 : vector<2x4x2x32xf32>
    %181 = math.tanh %180 : vector<2x4x2x32xf32>
    %cst_51 = arith.constant 1.000000e+00 : f32
    %182 = vector.broadcast %cst_51 : f32 to vector<2x4x2x32xf32>
    %183 = arith.subf %182, %171 : vector<2x4x2x32xf32>
    %184 = arith.mulf %183, %181 : vector<2x4x2x32xf32>
    %185 = vector.broadcast %151 : vector<1x4x2x32xf32> to vector<2x4x2x32xf32>
    %186 = arith.mulf %171, %185 : vector<2x4x2x32xf32>
    %187 = arith.addf %184, %186 : vector<2x4x2x32xf32>
    %188 = vector.shape_cast %187 : vector<2x4x2x32xf32> to vector<16x32xf32>
    %c0_52 = arith.constant 0 : index
    %c0_53 = arith.constant 0 : index
    %189 = vector.load %arg10[%c0_52, %c0_53] : memref<32x4xf32, #tpu.memory_space<vmem>>, vector<32x4xf32>
    %cst_54 = arith.constant dense<0.000000e+00> : vector<16x4xf32>
    %190 = tpu.matmul %188, %189, %cst_54 {dimension_numbers = #tpu.dot_dimension_numbers<[1], [0], [0], [1], [0, 0, 1, 1], [], []>} : vector<16x32xf32>, vector<32x4xf32>, vector<16x4xf32> -> vector<16x4xf32>
    %c0_55 = arith.constant 0 : index
    %c0_56 = arith.constant 0 : index
    %191 = vector.load %arg11[%c0_55, %c0_56] : memref<1x4xf32, #tpu.memory_space<vmem>>, vector<1x4xf32>
    %192 = vector.broadcast %191 : vector<1x4xf32> to vector<16x4xf32>
    %193 = arith.addf %190, %192 : vector<16x4xf32>
    %194 = vector.extract_strided_slice %193 {offsets = [0, 0], sizes = [8, 4], strides = [1, 1]} : vector<16x4xf32> to vector<8x4xf32>
    %195 = vector.extract_strided_slice %193 {offsets = [8, 0], sizes = [8, 4], strides = [1, 1]} : vector<16x4xf32> to vector<8x4xf32>
    %196 = tpu.concatenate %194, %195 in 1 : vector<8x4xf32>, vector<8x4xf32> -> vector<8x8xf32>
    %c0_57 = arith.constant 0 : index
    %c0_58 = arith.constant 0 : index
    %c0_59 = arith.constant 0 : index
    %197 = vector.load %arg2[%c0_57, %c0_58, %c0_59] : memref<4x2x1xf32, #tpu.memory_space<vmem>>, vector<4x2x1xf32>
    %198 = vector.shape_cast %197 : vector<4x2x1xf32> to vector<8x1xf32>
    %199 = vector.broadcast %198 : vector<8x1xf32> to vector<8x8xf32>
    %200 = arith.addf %196, %199 : vector<8x8xf32>
    %201 = vector.shape_cast %200 : vector<8x8xf32> to vector<4x2x8xf32>
    %c0_60 = arith.constant 0 : index
    %c0_61 = arith.constant 0 : index
    %c0_62 = arith.constant 0 : index
    %202 = vector.load %arg12[%c0_60, %c0_61, %c0_62] : memref<4x2x8xf32, #tpu.memory_space<vmem>>, vector<4x2x8xf32>
    tpu.vector_store %arg12[%c0_60, %c0_61, %c0_62], %201 {strides = array<i32>} : memref<4x2x8xf32, #tpu.memory_space<vmem>>, vector<4x2x8xf32>,
    return
  }
  func.func @transform_0(%arg0: i32) -> (i32, i32, i32, i32) {
    %c0_i32 = arith.constant 0 : i32
    %c0_i32_0 = arith.constant 0 : i32
    %c0_i32_1 = arith.constant 0 : i32
    %c0_i32_2 = arith.constant 0 : i32
    return %c0_i32, %c0_i32_0, %arg0, %c0_i32_1 : i32, i32, i32, i32
  }
  func.func @transform_1(%arg0: i32) -> (i32, i32, i32) {
    %c0_i32 = arith.constant 0 : i32
    %c0_i32_0 = arith.constant 0 : i32
    %c0_i32_1 = arith.constant 0 : i32
    return %c0_i32, %arg0, %c0_i32_0 : i32, i32, i32
  }
  func.func @transform_2(%arg0: i32) -> (i32, i32) {
    %c0_i32 = arith.constant 0 : i32
    %c0_i32_0 = arith.constant 0 : i32
    %c0_i32_1 = arith.constant 0 : i32
    return %c0_i32, %c0_i32_0 : i32, i32
  }
  func.func @transform_3(%arg0: i32) -> (i32, i32) {
    %c0_i32 = arith.constant 0 : i32
    %c0_i32_0 = arith.constant 0 : i32
    %c0_i32_1 = arith.constant 0 : i32
    return %c0_i32, %c0_i32_0 : i32, i32
  }
  func.func @transform_4(%arg0: i32) -> (i32, i32) {
    %c0_i32 = arith.constant 0 : i32
    %c0_i32_0 = arith.constant 0 : i32
    %c0_i32_1 = arith.constant 0 : i32
    return %c0_i32, %c0_i32_0 : i32, i32
  }
  func.func @transform_5(%arg0: i32) -> (i32, i32) {
    %c0_i32 = arith.constant 0 : i32
    %c0_i32_0 = arith.constant 0 : i32
    %c0_i32_1 = arith.constant 0 : i32
    return %c0_i32, %c0_i32_0 : i32, i32
  }
  func.func @transform_6(%arg0: i32) -> (i32, i32) {
    %c0_i32 = arith.constant 0 : i32
    %c0_i32_0 = arith.constant 0 : i32
    %c0_i32_1 = arith.constant 0 : i32
    return %c0_i32, %c0_i32_0 : i32, i32
  }
  func.func @transform_7(%arg0: i32) -> (i32, i32) {
    %c0_i32 = arith.constant 0 : i32
    %c0_i32_0 = arith.constant 0 : i32
    %c0_i32_1 = arith.constant 0 : i32
    return %c0_i32, %c0_i32_0 : i32, i32
  }
  func.func @transform_8(%arg0: i32) -> (i32, i32, i32) {
    %c0_i32 = arith.constant 0 : i32
    %c0_i32_0 = arith.constant 0 : i32
    %c0_i32_1 = arith.constant 0 : i32
    %c0_i32_2 = arith.constant 0 : i32
    return %c0_i32, %c0_i32_0, %c0_i32_1 : i32, i32, i32
  }
  func.func @transform_9(%arg0: i32) -> (i32, i32) {
    %c0_i32 = arith.constant 0 : i32
    %c0_i32_0 = arith.constant 0 : i32
    %c0_i32_1 = arith.constant 0 : i32
    return %c0_i32, %c0_i32_0 : i32, i32
  }
  func.func @transform_10(%arg0: i32) -> (i32, i32) {
    %c0_i32 = arith.constant 0 : i32
    %c0_i32_0 = arith.constant 0 : i32
    %c0_i32_1 = arith.constant 0 : i32
    return %c0_i32, %c0_i32_0 : i32, i32
  }
  func.func @transform_11(%arg0: i32) -> (i32, i32, i32) {
    %c0_i32 = arith.constant 0 : i32
    %c0_i32_0 = arith.constant 0 : i32
    %c0_i32_1 = arith.constant 0 : i32
    return %c0_i32, %arg0, %c0_i32_0 : i32, i32, i32
  }
}

</mosaic_0001>

<llo_original>
// kernel: tpu_custom_call.1
$region0: #{tpu_custom_call.1}
  #allocation0 [shape = 'u32[]', space=smem, size = 0x4, offset = 0x4, fixed_abs, tag = 'smem constant byte address 0x4 - core index']
  #allocation1 [shape = 'u32[144,128]{1,0:T(1,128)}', space=vmem, size = 0x12000, scoped, tag = 'internal scratch']
  #allocation2 [shape = 'f32[4,8,96]{2,1,0:T(8,128)}', space=vmem, size = 0x4000, scoped, tag = 'scratch operand']
  %s0 = inlined_call_operand.vmem [shape: f32[4,4,2,4], index: 0, kind: input, shape index: {}]
  %s1 = inlined_call_operand.vmem [shape: f32[4,2,1], index: 1, kind: input, shape index: {}]
  %s2 = inlined_call_operand.vmem [shape: f32[4,32], index: 2, kind: input, shape index: {}]
  %s3 = inlined_call_operand.vmem [shape: f32[1,32], index: 3, kind: input, shape index: {}]
  %s4 = inlined_call_operand.hbm [shape: f32[32,96], index: 4, kind: input, shape index: {}]
  %s5 = inlined_call_operand.hbm [shape: f32[32,96], index: 5, kind: input, shape index: {}]
  %s6 = inlined_call_operand.vmem [shape: f32[1,96], index: 6, kind: input, shape index: {}]
  %s7 = inlined_call_operand.vmem [shape: f32[1,32], index: 7, kind: input, shape index: {}]
  %s8 = inlined_call_operand.vmem [shape: f32[2,4,96], index: 8, kind: input, shape index: {}]
  %s9 = inlined_call_operand.vmem [shape: f32[32,4], index: 9, kind: input, shape index: {}]
  %s10 = inlined_call_operand.vmem [shape: f32[1,4], index: 10, kind: input, shape index: {}]
  %s11 = inlined_call_operand.hbm [shape: f32[4,2,8], index: 11, kind: output, shape index: {}]
  %s12 = sld [smem:[#allocation0]]
  $region62: #{tpu_custom_call.1} parent=0
    _
  %s14 = ssub.s32 1, %s12
  %s15 = scalar_select 0, %s14, %s12
  $region1: #{tpu_custom_call.1} parent=0
    #allocation3 [shape = 'u8[16384]{0}', space=vmem, size = 0x4000, scoped, tag = 'input window, operand 4, single buffered']
    #allocation4 [shape = 's32[1]{0}', space=sflag, size = 0x4, scoped, tag = 'scoped memory for tpu_custom_call.1']
    #allocation5 [shape = 's32[1]{0}', space=sflag, size = 0x4, scoped, tag = 'scoped memory for tpu_custom_call.1']
    #allocation6 [shape = 'u8[16384]{0}', space=vmem, size = 0x4000, scoped, tag = 'input window, operand 5, single buffered']
    #allocation7 [shape = 's32[1]{0}', space=sflag, size = 0x4, scoped, tag = 'scoped memory for tpu_custom_call.1']
    #allocation8 [shape = 'u8[4096]{0}', space=vmem, size = 0x1000, scoped, tag = 'output window, operand 0, single buffered']
    %16 = vsyncpa [#allocation4], 0
    %17 = vsyncpa [#allocation7], 0
    %18 = vsyncpa [#allocation5], 0
    // Predicated region
    $region2: #{tpu_custom_call.1} parent=1 // pred_check
      _
    $region3: #{tpu_custom_call.1} parent=1 // pred_check_branch
      %20 = sbr.rel (0) target = $region5
    $region4: #{tpu_custom_call.1} parent=1 // pred_region
      _
    $region5: #{tpu_custom_call.1} parent=1 // pred_fallthru
      _
    // Predicated region
    $region6: #{tpu_custom_call.1} parent=1 // pred_check
      _
    $region7: #{tpu_custom_call.1} parent=1 // pred_check_branch
      %22 = sbr.rel (0) target = $region9
    $region8: #{tpu_custom_call.1} parent=1 // pred_region
      _
    $region9: #{tpu_custom_call.1} parent=1 // pred_fallthru
      _
    // Predicated region
    $region10: #{tpu_custom_call.1} parent=1 // pred_check
      _
    $region11: #{tpu_custom_call.1} parent=1 // pred_check_branch
      %24 = sbr.rel (0) target = $region13
    $region12: #{tpu_custom_call.1} parent=1 // pred_region
      _
    $region13: #{tpu_custom_call.1} parent=1 // pred_fallthru
      _
    // Predicated region
    $region14: #{tpu_custom_call.1} parent=1 // pred_check
      _
    $region15: #{tpu_custom_call.1} parent=1 // pred_check_branch
      %26 = sbr.rel (0) target = $region17
    $region16: #{tpu_custom_call.1} parent=1 // pred_region
      _
    $region17: #{tpu_custom_call.1} parent=1 // pred_fallthru
      _
    // Predicated region
    $region18: #{tpu_custom_call.1} parent=1 // pred_check
      _
    $region19: #{tpu_custom_call.1} parent=1 // pred_check_branch
      %28 = sbr.rel (0) target = $region21
    $region20: #{tpu_custom_call.1} parent=1 // pred_region
      %s30 = ssub.s32 512, 512
      %31 = vsyncadd [#allocation4], %s30
      %s32 = sshll.u32 [#allocation3], 4
      %s33 = int_to_ptr.vmem [resolvable:$true] %s32
      %38 = dma.hbm_to_vmem [thread:$0]  %s4, 512, %s33, [#allocation4], 128, 128, 8
    $region21: #{tpu_custom_call.1} parent=1 // pred_fallthru
      _
    // Predicated region
    $region22: #{tpu_custom_call.1} parent=1 // pred_check
      _
    $region23: #{tpu_custom_call.1} parent=1 // pred_check_branch
      %40 = sbr.rel (0) target = $region25
    $region24: #{tpu_custom_call.1} parent=1 // pred_region
      %s42 = ssub.s32 512, 512
      %43 = vsyncadd [#allocation7], %s42
      %s44 = sshll.u32 [#allocation6], 4
      %s45 = int_to_ptr.vmem [resolvable:$true] %s44
      %50 = dma.hbm_to_vmem [thread:$0]  %s5, 512, %s45, [#allocation7], 128, 128, 8
    $region25: #{tpu_custom_call.1} parent=1 // pred_fallthru
      _
    // Predicated region
    $region26: #{tpu_custom_call.1} parent=1 // pred_check
      _
    $region27: #{tpu_custom_call.1} parent=1 // pred_check_branch
      %52 = sbr.rel (0) target = $region29
    $region28: #{tpu_custom_call.1} parent=1 // pred_region
      _
    $region29: #{tpu_custom_call.1} parent=1 // pred_fallthru
      _
    // Predicated region
    $region30: #{tpu_custom_call.1} parent=1 // pred_check
      _
    $region31: #{tpu_custom_call.1} parent=1 // pred_check_branch
      %54 = sbr.rel (0) target = $region33
    $region32: #{tpu_custom_call.1} parent=1 // pred_region
      _
    $region33: #{tpu_custom_call.1} parent=1 // pred_fallthru
      _
    // Predicated region
    $region34: #{tpu_custom_call.1} parent=1 // pred_check
      _
    $region35: #{tpu_custom_call.1} parent=1 // pred_check_branch
      %56 = sbr.rel (0) target = $region37
    $region36: #{tpu_custom_call.1} parent=1 // pred_region
      _
    $region37: #{tpu_custom_call.1} parent=1 // pred_fallthru
      _
    // Predicated region
    $region38: #{tpu_custom_call.1} parent=1 // pred_check
      _
    $region39: #{tpu_custom_call.1} parent=1 // pred_check_branch
      %58 = sbr.rel (0) target = $region41
    $region40: #{tpu_custom_call.1} parent=1 // pred_region
      _
    $region41: #{tpu_custom_call.1} parent=1 // pred_fallthru
      _
    // Predicated region
    $region42: #{tpu_custom_call.1} parent=1 // pred_check
      _
    $region43: #{tpu_custom_call.1} parent=1 // pred_check_branch
      %60 = sbr.rel (0) target = $region45
    $region44: #{tpu_custom_call.1} parent=1 // pred_region
      _
    $region45: #{tpu_custom_call.1} parent=1 // pred_fallthru
      _
    // Predicated region
    $region46: #{tpu_custom_call.1} parent=1 // pred_check
      _
    $region47: #{tpu_custom_call.1} parent=1 // pred_check_branch
      %62 = sbr.rel (0) target = $region49
    $region48: #{tpu_custom_call.1} parent=1 // pred_region
      %63 = dma.done [#allocation4], 512
    $region49: #{tpu_custom_call.1} parent=1 // pred_fallthru
      _
    // Predicated region
    $region50: #{tpu_custom_call.1} parent=1 // pred_check
      _
    $region51: #{tpu_custom_call.1} parent=1 // pred_check_branch
      %65 = sbr.rel (0) target = $region53
    $region52: #{tpu_custom_call.1} parent=1 // pred_region
      %66 = dma.done [#allocation7], 512
    $region53: #{tpu_custom_call.1} parent=1 // pred_fallthru
      _
    %v67 = vld [vmem:[%s2] sm:$0xf]
    %v68 = vld [vmem:[%s3] sm:$0x1]
    %v69 = vld [vmem:[#allocation3] sm:$0xff]
    %v70 = vld [vmem:[#allocation3 + $0x8] sm:$0xff]
    %v71 = vld [vmem:[#allocation3 + $0x10] sm:$0xff]
    %v72 = vld [vmem:[#allocation3 + $0x18] sm:$0xff]
    %v73 = vld [vmem:[#allocation6] sm:$0xff]
    %v74 = vld [vmem:[#allocation6 + $0x8] sm:$0xff]
    %v75 = vld [vmem:[#allocation6 + $0x10] sm:$0xff]
    %v76 = vld [vmem:[#allocation6 + $0x18] sm:$0xff]
    %v77 = vld [vmem:[%s6] sm:$0x1]
    %v78 = vld [vmem:[%s7] sm:$0x1]
    %v79 = vld [vmem:[%s0] sm:$0x3]
    %v80 = vld [vmem:[%s0 + $0x2] sm:$0x3]
    %v81 = vld [vmem:[%s0 + $0x4] sm:$0x3]
    %v82 = vld [vmem:[%s0 + $0x6] sm:$0x3]
    %v83 = vld [vmem:[%s0 + $0x8] sm:$0x3]
    %v84 = vld [vmem:[%s0 + $0xa] sm:$0x3]
    %v85 = vld [vmem:[%s0 + $0xc] sm:$0x3]
    %v86 = vld [vmem:[%s0 + $0xe] sm:$0x3]
    %v87 = vld [vmem:[%s0 + $0x10] sm:$0x3]
    %v88 = vld [vmem:[%s0 + $0x12] sm:$0x3]
    %v89 = vld [vmem:[%s0 + $0x14] sm:$0x3]
    %v90 = vld [vmem:[%s0 + $0x16] sm:$0x3]
    %v91 = vld [vmem:[%s0 + $0x18] sm:$0x3]
    %v92 = vld [vmem:[%s0 + $0x1a] sm:$0x3]
    %v93 = vld [vmem:[%s0 + $0x1c] sm:$0x3]
    %v94 = vld [vmem:[%s0 + $0x1e] sm:$0x3]
    %v96 = vlaneseq
    %v97 = vshrl.u32 %v96, 7
    %v98 = vsub.s32 0, %v97
    %v99 = vrot.slane %v68, %v98
    %v117 = vcombine.low %v79, %v80
    %v118 = vcombine.low %v81, %v82
    %v120 = vunpack.c.l.s4 1983009808
    %v121 = vunpack.c.0.s8 %v120
    %v122 = vlaneseq
    %v123 = vshrl.u32 %v122, 7
    %v124 = vsub.s32 %v121, %v123
    %v125 = vrot.slane %v117, %v124
    %v127 = vunpack.c.l.s4 1983009808
    %v128 = vunpack.c.0.s8 %v127
    %v129 = vlaneseq
    %v130 = vshrl.u32 %v129, 7
    %v131 = vsub.s32 %v128, %v130
    %v132 = vrot.slane %v118, %v131
    %v133 = vcombine.low %v125, %v132
    %v134 = vcombine.low %v83, %v84
    %v135 = vcombine.low %v85, %v86
    %v137 = vunpack.c.l.s4 1983009808
    %v138 = vunpack.c.0.s8 %v137
    %v139 = vlaneseq
    %v140 = vshrl.u32 %v139, 7
    %v141 = vsub.s32 %v138, %v140
    %v142 = vrot.slane %v134, %v141
    %v144 = vunpack.c.l.s4 1983009808
    %v145 = vunpack.c.0.s8 %v144
    %v146 = vlaneseq
    %v147 = vshrl.u32 %v146, 7
    %v148 = vsub.s32 %v145, %v147
    %v149 = vrot.slane %v135, %v148
    %v150 = vcombine.low %v142, %v149
    %v151 = vcombine.low %v87, %v88
    %v152 = vcombine.low %v89, %v90
    %v154 = vunpack.c.l.s4 1983009808
    %v155 = vunpack.c.0.s8 %v154
    %v156 = vlaneseq
    %v157 = vshrl.u32 %v156, 7
    %v158 = vsub.s32 %v155, %v157
    %v159 = vrot.slane %v151, %v158
    %v161 = vunpack.c.l.s4 1983009808
    %v162 = vunpack.c.0.s8 %v161
    %v163 = vlaneseq
    %v164 = vshrl.u32 %v163, 7
    %v165 = vsub.s32 %v162, %v164
    %v166 = vrot.slane %v152, %v165
    %v167 = vcombine.low %v159, %v166
    %v168 = vcombine.low %v91, %v92
    %v169 = vcombine.low %v93, %v94
    %v171 = vunpack.c.l.s4 1983009808
    %v172 = vunpack.c.0.s8 %v171
    %v173 = vlaneseq
    %v174 = vshrl.u32 %v173, 7
    %v175 = vsub.s32 %v172, %v174
    %v176 = vrot.slane %v168, %v175
    %v178 = vunpack.c.l.s4 1983009808
    %v179 = vunpack.c.0.s8 %v178
    %v180 = vlaneseq
    %v181 = vshrl.u32 %v180, 7
    %v182 = vsub.s32 %v179, %v181
    %v183 = vrot.slane %v169, %v182
    %v184 = vcombine.low %v176, %v183
    %vm185 = vcmask 31744
    %v186 = vsel %vm185, %v133, 0
    %v188 = vsel %vm185, %v150, 0
    %v190 = vsel %vm185, %v167, 0
    %v192 = vsel %vm185, %v184, 0
    %vm194 = vcmask 1043456
    %v196 = vsel %vm194, %v67, 0
    %198 = vmatprep.subr.mxu0 0.0
    %199 = vmatpush1.msra.mxu0 0.0
    %200 = vmatprep.subr.mxu0 0.0
    %201 = vmatpush1.msra.mxu0 0.0
    %202 = vmatprep.subr.mxu0 0.0
    %203 = vmatpush1.msra.mxu0 0.0
    %204 = vmatprep.subr.mxu0 0.0
    %205 = vmatpush1.msra.mxu0 0.0
    %206 = vmatprep.subr.mxu0 0.0
    %207 = vmatpush1.msra.mxu0 0.0
    %208 = vmatprep.subr.mxu0 0.0
    %209 = vmatpush1.msra.mxu0 0.0
    %210 = vmatprep.subr.mxu0 0.0
    %211 = vmatpush1.msra.mxu0 0.0
    %212 = vmatprep.subr.mxu0 0.0
    %213 = vmatpush1.msra.mxu0 0.0
    %214 = vmatprep.subr.mxu0 0.0
    %215 = vmatpush1.msra.mxu0 0.0
    %216 = vmatprep.subr.mxu0 0.0
    %217 = vmatpush1.msra.mxu0 0.0
    %218 = vmatprep.subr.mxu0 0.0
    %219 = vmatpush1.msra.mxu0 0.0
    %220 = vmatprep.subr.mxu0 0.0
    %221 = vmatpush1.msra.mxu0 0.0
    %222 = vmatprep.subr.mxu0 0.0
    %223 = vmatpush1.msra.mxu0 0.0
    %224 = vmatprep.subr.mxu0 0.0
    %225 = vmatpush1.msra.mxu0 0.0
    %226 = vmatprep.subr.mxu0 0.0
    %227 = vmatpush1.msra.mxu0 0.0
    %228 = vmatprep.subr.mxu0 0.0
    %229 = vmatpush1.msra.mxu0 %v196
    %230 = vmatprep.subr.mxu0 0.0
    %231 = vmatpush2.msra.mxu0 0.0
    %232 = vmatprep.subr.mxu0 0.0
    %233 = vmatpush2.msra.mxu0 0.0
    %234 = vmatprep.subr.mxu0 0.0
    %235 = vmatpush2.msra.mxu0 0.0
    %236 = vmatprep.subr.mxu0 0.0
    %237 = vmatpush2.msra.mxu0 0.0
    %238 = vmatprep.subr.mxu0 0.0
    %239 = vmatpush2.msra.mxu0 0.0
    %240 = vmatprep.subr.mxu0 0.0
    %241 = vmatpush2.msra.mxu0 0.0
    %242 = vmatprep.subr.mxu0 0.0
    %243 = vmatpush2.msra.mxu0 0.0
    %244 = vmatprep.subr.mxu0 0.0
    %245 = vmatpush2.msra.mxu0 0.0
    %246 = vmatprep.subr.mxu0 0.0
    %247 = vmatpush2.msra.mxu0 0.0
    %248 = vmatprep.subr.mxu0 0.0
    %249 = vmatpush2.msra.mxu0 0.0
    %250 = vmatprep.subr.mxu0 0.0
    %251 = vmatpush2.msra.mxu0 0.0
    %252 = vmatprep.subr.mxu0 0.0
    %253 = vmatpush2.msra.mxu0 0.0
    %254 = vmatprep.subr.mxu0 0.0
    %255 = vmatpush2.msra.mxu0 0.0
    %256 = vmatprep.subr.mxu0 0.0
    %257 = vmatpush2.msra.mxu0 0.0
    %258 = vmatprep.subr.mxu0 0.0
    %259 = vmatpush2.msra.mxu0 0.0
    %260 = vmatprep.subr.mxu0 0.0
    %261 = vmatpush2.msra.mxu0 0.0
    %262 = vmatprep.mubr.f32.mxu0 0.0
    %263 = vmatmul.mubr.f32.gmra.mxu0 %v186
    %v264 = vpop.f32.mrf.mxu0
    %v265 = vadd.f32 %v99, %v264
    %v266 = vpop.f32.mrf.mxu0
    %267 = vmatprep.mubr.f32.mxu0 0.0
    %268 = vmatmul.mubr.f32.gmra.mxu0 %v188
    %v269 = vpop.f32.mrf.mxu0
    %v270 = vadd.f32 %v99, %v269
    %v271 = vpop.f32.mrf.mxu0
    %272 = vmatprep.mubr.f32.mxu0 0.0
    %273 = vmatmul.mubr.f32.gmra.mxu0 %v190
    %v274 = vpop.f32.mrf.mxu0
    %v275 = vadd.f32 %v99, %v274
    %v276 = vpop.f32.mrf.mxu0
    %277 = vmatprep.mubr.f32.mxu0 0.0
    %278 = vmatmul.mubr.f32.gmra.mxu0 %v192
    %v279 = vpop.f32.mrf.mxu0
    %v280 = vadd.f32 %v99, %v279
    %v281 = vpop.f32.mrf.mxu0
    %282 = vdwg.mxu0
    %v283 = vmax.f32 %v265, 0.0
    %v284 = vmax.f32 %v270, 0.0
    %v285 = vmax.f32 %v275, 0.0
    %v286 = vmax.f32 %v280, 0.0
    %v288 = vlaneseq
    %v289 = vshrl.u32 %v288, 7
    %v290 = vsub.s32 0, %v289
    %v291 = vrot.slane %v77, %v290
    %vm293 = vcmask 261120
    %v295 = vsel %vm293, %v283, 0
    %v298 = vsel %vm293, %v284, 0
    %v301 = vsel %vm293, %v285, 0
    %v304 = vsel %vm293, %v286, 0
    %306 = vmatprep.subr.mxu0 0.0
    %307 = vmatpush1.msra.mxu0 0.0
    %308 = vmatprep.subr.mxu0 0.0
    %309 = vmatpush1.msra.mxu0 0.0
    %310 = vmatprep.subr.mxu0 0.0
    %311 = vmatpush1.msra.mxu0 0.0
    %312 = vmatprep.subr.mxu0 0.0
    %313 = vmatpush1.msra.mxu0 0.0
    %314 = vmatprep.subr.mxu0 0.0
    %315 = vmatpush1.msra.mxu0 0.0
    %316 = vmatprep.subr.mxu0 0.0
    %317 = vmatpush1.msra.mxu0 0.0
    %318 = vmatprep.subr.mxu0 0.0
    %319 = vmatpush1.msra.mxu0 0.0
    %320 = vmatprep.subr.mxu0 0.0
    %321 = vmatpush1.msra.mxu0 0.0
    %322 = vmatprep.subr.mxu0 0.0
    %323 = vmatpush1.msra.mxu0 0.0
    %324 = vmatprep.subr.mxu0 0.0
    %325 = vmatpush1.msra.mxu0 0.0
    %326 = vmatprep.subr.mxu0 0.0
    %327 = vmatpush1.msra.mxu0 0.0
    %328 = vmatprep.subr.mxu0 0.0
    %329 = vmatpush1.msra.mxu0 0.0
    %330 = vmatprep.subr.mxu0 0.0
    %331 = vmatpush1.msra.mxu0 %v72
    %332 = vmatprep.subr.mxu0 0.0
    %333 = vmatpush1.msra.mxu0 %v71
    %334 = vmatprep.subr.mxu0 0.0
    %335 = vmatpush1.msra.mxu0 %v70
    %336 = vmatprep.subr.mxu0 0.0
    %337 = vmatpush1.msra.mxu0 %v69
    %338 = vmatprep.subr.mxu0 0.0
    %339 = vmatpush2.msra.mxu0 0.0
    %340 = vmatprep.subr.mxu0 0.0
    %341 = vmatpush2.msra.mxu0 0.0
    %342 = vmatprep.subr.mxu0 0.0
    %343 = vmatpush2.msra.mxu0 0.0
    %344 = vmatprep.subr.mxu0 0.0
    %345 = vmatpush2.msra.mxu0 0.0
    %346 = vmatprep.subr.mxu0 0.0
    %347 = vmatpush2.msra.mxu0 0.0
    %348 = vmatprep.subr.mxu0 0.0
    %349 = vmatpush2.msra.mxu0 0.0
    %350 = vmatprep.subr.mxu0 0.0
    %351 = vmatpush2.msra.mxu0 0.0
    %352 = vmatprep.subr.mxu0 0.0
    %353 = vmatpush2.msra.mxu0 0.0
    %354 = vmatprep.subr.mxu0 0.0
    %355 = vmatpush2.msra.mxu0 0.0
    %356 = vmatprep.subr.mxu0 0.0
    %357 = vmatpush2.msra.mxu0 0.0
    %358 = vmatprep.subr.mxu0 0.0
    %359 = vmatpush2.msra.mxu0 0.0
    %360 = vmatprep.subr.mxu0 0.0
    %361 = vmatpush2.msra.mxu0 0.0
    %362 = vmatprep.subr.mxu0 0.0
    %363 = vmatpush2.msra.mxu0 0.0
    %364 = vmatprep.subr.mxu0 0.0
    %365 = vmatpush2.msra.mxu0 0.0
    %366 = vmatprep.subr.mxu0 0.0
    %367 = vmatpush2.msra.mxu0 0.0
    %368 = vmatprep.subr.mxu0 0.0
    %369 = vmatpush2.msra.mxu0 0.0
    %370 = vmatprep.mubr.f32.mxu0 0.0
    %371 = vmatmul.mubr.f32.gmra.mxu0 %v295
    %v372 = vpop.f32.mrf.mxu0
    %v373 = vadd.f32 %v291, %v372
    %v374 = vpop.f32.mrf.mxu0
    %375 = vmatprep.mubr.f32.mxu0 0.0
    %376 = vmatmul.mubr.f32.gmra.mxu0 %v298
    %v377 = vpop.f32.mrf.mxu0
    %v378 = vadd.f32 %v291, %v377
    %v379 = vpop.f32.mrf.mxu0
    %380 = vmatprep.mubr.f32.mxu0 0.0
    %381 = vmatmul.mubr.f32.gmra.mxu0 %v301
    %v382 = vpop.f32.mrf.mxu0
    %v383 = vadd.f32 %v291, %v382
    %v384 = vpop.f32.mrf.mxu0
    %385 = vmatprep.mubr.f32.mxu0 0.0
    %386 = vmatmul.mubr.f32.gmra.mxu0 %v304
    %v387 = vpop.f32.mrf.mxu0
    %v388 = vadd.f32 %v291, %v387
    %v389 = vpop.f32.mrf.mxu0
    %390 = vdwg.mxu0
    %vm391 = vcmask 785408
    %392 = vst.msk [vmem:[#allocation2] sm:$0xff] %vm391, %v373
    %393 = vst.msk [vmem:[#allocation2 + $0x8] sm:$0xff] %vm391, %v378
    %394 = vst.msk [vmem:[#allocation2 + $0x10] sm:$0xff] %vm391, %v383
    %395 = vst.msk [vmem:[#allocation2 + $0x18] sm:$0xff] %vm391, %v388
    %v397 = vsel %vm293, 0.0, 0
    %399 = vmatprep.subr.mxu0 0.0
    %400 = vmatpush1.msra.mxu0 0.0
    %401 = vmatprep.subr.mxu0 0.0
    %402 = vmatpush1.msra.mxu0 0.0
    %403 = vmatprep.subr.mxu0 0.0
    %404 = vmatpush1.msra.mxu0 0.0
    %405 = vmatprep.subr.mxu0 0.0
    %406 = vmatpush1.msra.mxu0 0.0
    %407 = vmatprep.subr.mxu0 0.0
    %408 = vmatpush1.msra.mxu0 0.0
    %409 = vmatprep.subr.mxu0 0.0
    %410 = vmatpush1.msra.mxu0 0.0
    %411 = vmatprep.subr.mxu0 0.0
    %412 = vmatpush1.msra.mxu0 0.0
    %413 = vmatprep.subr.mxu0 0.0
    %414 = vmatpush1.msra.mxu0 0.0
    %415 = vmatprep.subr.mxu0 0.0
    %416 = vmatpush1.msra.mxu0 0.0
    %417 = vmatprep.subr.mxu0 0.0
    %418 = vmatpush1.msra.mxu0 0.0
    %419 = vmatprep.subr.mxu0 0.0
    %420 = vmatpush1.msra.mxu0 0.0
    %421 = vmatprep.subr.mxu0 0.0
    %422 = vmatpush1.msra.mxu0 0.0
    %423 = vmatprep.subr.mxu0 0.0
    %424 = vmatpush1.msra.mxu0 %v76
    %425 = vmatprep.subr.mxu0 0.0
    %426 = vmatpush1.msra.mxu0 %v75
    %427 = vmatprep.subr.mxu0 0.0
    %428 = vmatpush1.msra.mxu0 %v74
    %429 = vmatprep.subr.mxu0 0.0
    %430 = vmatpush1.msra.mxu0 %v73
    %431 = vmatprep.subr.mxu0 0.0
    %432 = vmatpush2.msra.mxu0 0.0
    %433 = vmatprep.subr.mxu0 0.0
    %434 = vmatpush2.msra.mxu0 0.0
    %435 = vmatprep.subr.mxu0 0.0
    %436 = vmatpush2.msra.mxu0 0.0
    %437 = vmatprep.subr.mxu0 0.0
    %438 = vmatpush2.msra.mxu0 0.0
    %439 = vmatprep.subr.mxu0 0.0
    %440 = vmatpush2.msra.mxu0 0.0
    %441 = vmatprep.subr.mxu0 0.0
    %442 = vmatpush2.msra.mxu0 0.0
    %443 = vmatprep.subr.mxu0 0.0
    %444 = vmatpush2.msra.mxu0 0.0
    %445 = vmatprep.subr.mxu0 0.0
    %446 = vmatpush2.msra.mxu0 0.0
    %447 = vmatprep.subr.mxu0 0.0
    %448 = vmatpush2.msra.mxu0 0.0
    %449 = vmatprep.subr.mxu0 0.0
    %450 = vmatpush2.msra.mxu0 0.0
    %451 = vmatprep.subr.mxu0 0.0
    %452 = vmatpush2.msra.mxu0 0.0
    %453 = vmatprep.subr.mxu0 0.0
    %454 = vmatpush2.msra.mxu0 0.0
    %455 = vmatprep.subr.mxu0 0.0
    %456 = vmatpush2.msra.mxu0 0.0
    %457 = vmatprep.subr.mxu0 0.0
    %458 = vmatpush2.msra.mxu0 0.0
    %459 = vmatprep.subr.mxu0 0.0
    %460 = vmatpush2.msra.mxu0 0.0
    %461 = vmatprep.subr.mxu0 0.0
    %462 = vmatpush2.msra.mxu0 0.0
    %463 = vmatprep.mubr.f32.mxu0 0.0
    %464 = vmatmul.mubr.f32.gmra.mxu0 %v397
    %v465 = vpop.f32.mrf.mxu0
    %v466 = vadd.f32 0.0, %v465
    %v467 = vpop.f32.mrf.mxu0
    %468 = vdwg.mxu0
    %v469 = vld [vmem:[#allocation2] sm:$0xff]
    %v470 = vadd.f32 %v469, %v466
    %v471 = vxor.u32 %v470, 2147483648
    %v472 = vmul.f32 %v471, 1.442695
    %v473 = vpow.pop %v472
    %v474 = vadd.f32 %v473, 1.0
    %v475 = vrcp.pop %v474
    %v476 = vmul.f32 1.0, %v475
    %v478 = vlaneseq
    %v479 = vshrl.u32 %v478, 7
    %v480 = vsub.s32 0, %v479
    %v481 = vrot.slane %v78, %v480
    %482 = vrot.lane.b32.xlu0 %v481, 64
    %v483 = vpop.permute.xlu0 %482
    %v485 = vadd.f32 %v466, %v483
    %487 = vrot.lane.b32.xlu0 %v485, 64
    %v488 = vpop.permute.xlu0 %487
    %v490 = vmul.f32 %v476, %v488
    %492 = vrot.lane.b32.xlu0 %v490, 64
    %v493 = vpop.permute.xlu0 %492
    %v495 = vadd.f32 %v469, %v493
    %v496 = vtanh.pop %v495
    %v497 = vsub.f32 1.0, %v476
    %499 = vrot.lane.b32.xlu0 %v496, 96
    %v500 = vpop.permute.xlu0 %499
    %v502 = vmul.f32 %v497, %v500
    %v503 = vmul.f32 %v476, 0.0
    %v504 = vadd.f32 %v502, %v503
    %506 = vrot.lane.b32.xlu0 %v504, 96
    %v507 = vpop.permute.xlu0 %506
    %v508 = vsel %vm293, %v507, 0
    %510 = vmatprep.subr.mxu0 0.0
    %511 = vmatpush1.msra.mxu0 0.0
    %512 = vmatprep.subr.mxu0 0.0
    %513 = vmatpush1.msra.mxu0 0.0
    %514 = vmatprep.subr.mxu0 0.0
    %515 = vmatpush1.msra.mxu0 0.0
    %516 = vmatprep.subr.mxu0 0.0
    %517 = vmatpush1.msra.mxu0 0.0
    %518 = vmatprep.subr.mxu0 0.0
    %519 = vmatpush1.msra.mxu0 0.0
    %520 = vmatprep.subr.mxu0 0.0
    %521 = vmatpush1.msra.mxu0 0.0
    %522 = vmatprep.subr.mxu0 0.0
    %523 = vmatpush1.msra.mxu0 0.0
    %524 = vmatprep.subr.mxu0 0.0
    %525 = vmatpush1.msra.mxu0 0.0
    %526 = vmatprep.subr.mxu0 0.0
    %527 = vmatpush1.msra.mxu0 0.0
    %528 = vmatprep.subr.mxu0 0.0
    %529 = vmatpush1.msra.mxu0 0.0
    %530 = vmatprep.subr.mxu0 0.0
    %531 = vmatpush1.msra.mxu0 0.0
    %532 = vmatprep.subr.mxu0 0.0
    %533 = vmatpush1.msra.mxu0 0.0
    %534 = vmatprep.subr.mxu0 0.0
    %535 = vmatpush1.msra.mxu0 %v76
    %536 = vmatprep.subr.mxu0 0.0
    %537 = vmatpush1.msra.mxu0 %v75
    %538 = vmatprep.subr.mxu0 0.0
    %539 = vmatpush1.msra.mxu0 %v74
    %540 = vmatprep.subr.mxu0 0.0
    %541 = vmatpush1.msra.mxu0 %v73
    %542 = vmatprep.subr.mxu0 0.0
    %543 = vmatpush2.msra.mxu0 0.0
    %544 = vmatprep.subr.mxu0 0.0
    %545 = vmatpush2.msra.mxu0 0.0
    %546 = vmatprep.subr.mxu0 0.0
    %547 = vmatpush2.msra.mxu0 0.0
    %548 = vmatprep.subr.mxu0 0.0
    %549 = vmatpush2.msra.mxu0 0.0
    %550 = vmatprep.subr.mxu0 0.0
    %551 = vmatpush2.msra.mxu0 0.0
    %552 = vmatprep.subr.mxu0 0.0
    %553 = vmatpush2.msra.mxu0 0.0
    %554 = vmatprep.subr.mxu0 0.0
    %555 = vmatpush2.msra.mxu0 0.0
    %556 = vmatprep.subr.mxu0 0.0
    %557 = vmatpush2.msra.mxu0 0.0
    %558 = vmatprep.subr.mxu0 0.0
    %559 = vmatpush2.msra.mxu0 0.0
    %560 = vmatprep.subr.mxu0 0.0
    %561 = vmatpush2.msra.mxu0 0.0
    %562 = vmatprep.subr.mxu0 0.0
    %563 = vmatpush2.msra.mxu0 0.0
    %564 = vmatprep.subr.mxu0 0.0
    %565 = vmatpush2.msra.mxu0 0.0
    %566 = vmatprep.subr.mxu0 0.0
    %567 = vmatpush2.msra.mxu0 0.0
    %568 = vmatprep.subr.mxu0 0.0
    %569 = vmatpush2.msra.mxu0 0.0
    %570 = vmatprep.subr.mxu0 0.0
    %571 = vmatpush2.msra.mxu0 0.0
    %572 = vmatprep.subr.mxu0 0.0
    %573 = vmatpush2.msra.mxu0 0.0
    %574 = vmatprep.mubr.f32.mxu0 0.0
    %575 = vmatmul.mubr.f32.gmra.mxu0 %v508
    %v576 = vpop.f32.mrf.mxu0
    %v577 = vadd.f32 0.0, %v576
    %v578 = vpop.f32.mrf.mxu0
    %579 = vdwg.mxu0
    %s580 = scalar_lea.vmem [#allocation2], 8
    %v581 = vld [vmem:[%s580] sm:$0xff]
    %v582 = vadd.f32 %v581, %v577
    %v583 = vxor.u32 %v582, 2147483648
    %v584 = vmul.f32 %v583, 1.442695
    %v585 = vpow.pop %v584
    %v586 = vadd.f32 %v585, 1.0
    %v587 = vrcp.pop %v586
    %v588 = vmul.f32 1.0, %v587
    %v589 = vadd.f32 %v577, %v483
    %591 = vrot.lane.b32.xlu0 %v589, 64
    %v592 = vpop.permute.xlu0 %591
    %v594 = vmul.f32 %v588, %v592
    %596 = vrot.lane.b32.xlu0 %v594, 64
    %v597 = vpop.permute.xlu0 %596
    %v599 = vadd.f32 %v581, %v597
    %v600 = vtanh.pop %v599
    %v601 = vsub.f32 1.0, %v588
    %603 = vrot.lane.b32.xlu0 %v600, 96
    %v604 = vpop.permute.xlu0 %603
    %v606 = vmul.f32 %v601, %v604
    %v607 = vmul.f32 %v588, %v504
    %v608 = vadd.f32 %v606, %v607
    %610 = vrot.lane.b32.xlu0 %v608, 96
    %v611 = vpop.permute.xlu0 %610
    %v612 = vsel %vm293, %v611, 0
    %614 = vmatprep.subr.mxu0 0.0
    %615 = vmatpush1.msra.mxu0 0.0
    %616 = vmatprep.subr.mxu0 0.0
    %617 = vmatpush1.msra.mxu0 0.0
    %618 = vmatprep.subr.mxu0 0.0
    %619 = vmatpush1.msra.mxu0 0.0
    %620 = vmatprep.subr.mxu0 0.0
    %621 = vmatpush1.msra.mxu0 0.0
    %622 = vmatprep.subr.mxu0 0.0
    %623 = vmatpush1.msra.mxu0 0.0
    %624 = vmatprep.subr.mxu0 0.0
    %625 = vmatpush1.msra.mxu0 0.0
    %626 = vmatprep.subr.mxu0 0.0
    %627 = vmatpush1.msra.mxu0 0.0
    %628 = vmatprep.subr.mxu0 0.0
    %629 = vmatpush1.msra.mxu0 0.0
    %630 = vmatprep.subr.mxu0 0.0
    %631 = vmatpush1.msra.mxu0 0.0
    %632 = vmatprep.subr.mxu0 0.0
    %633 = vmatpush1.msra.mxu0 0.0
    %634 = vmatprep.subr.mxu0 0.0
    %635 = vmatpush1.msra.mxu0 0.0
    %636 = vmatprep.subr.mxu0 0.0
    %637 = vmatpush1.msra.mxu0 0.0
    %638 = vmatprep.subr.mxu0 0.0
    %639 = vmatpush1.msra.mxu0 %v76
    %640 = vmatprep.subr.mxu0 0.0
    %641 = vmatpush1.msra.mxu0 %v75
    %642 = vmatprep.subr.mxu0 0.0
    %643 = vmatpush1.msra.mxu0 %v74
    %644 = vmatprep.subr.mxu0 0.0
    %645 = vmatpush1.msra.mxu0 %v73
    %646 = vmatprep.subr.mxu0 0.0
    %647 = vmatpush2.msra.mxu0 0.0
    %648 = vmatprep.subr.mxu0 0.0
    %649 = vmatpush2.msra.mxu0 0.0
    %650 = vmatprep.subr.mxu0 0.0
    %651 = vmatpush2.msra.mxu0 0.0
    %652 = vmatprep.subr.mxu0 0.0
    %653 = vmatpush2.msra.mxu0 0.0
    %654 = vmatprep.subr.mxu0 0.0
    %655 = vmatpush2.msra.mxu0 0.0
    %656 = vmatprep.subr.mxu0 0.0
    %657 = vmatpush2.msra.mxu0 0.0
    %658 = vmatprep.subr.mxu0 0.0
    %659 = vmatpush2.msra.mxu0 0.0
    %660 = vmatprep.subr.mxu0 0.0
    %661 = vmatpush2.msra.mxu0 0.0
    %662 = vmatprep.subr.mxu0 0.0
    %663 = vmatpush2.msra.mxu0 0.0
    %664 = vmatprep.subr.mxu0 0.0
    %665 = vmatpush2.msra.mxu0 0.0
    %666 = vmatprep.subr.mxu0 0.0
    %667 = vmatpush2.msra.mxu0 0.0
    %668 = vmatprep.subr.mxu0 0.0
    %669 = vmatpush2.msra.mxu0 0.0
    %670 = vmatprep.subr.mxu0 0.0
    %671 = vmatpush2.msra.mxu0 0.0
    %672 = vmatprep.subr.mxu0 0.0
    %673 = vmatpush2.msra.mxu0 0.0
    %674 = vmatprep.subr.mxu0 0.0
    %675 = vmatpush2.msra.mxu0 0.0
    %676 = vmatprep.subr.mxu0 0.0
    %677 = vmatpush2.msra.mxu0 0.0
    %678 = vmatprep.mubr.f32.mxu0 0.0
    %679 = vmatmul.mubr.f32.gmra.mxu0 %v612
    %v680 = vpop.f32.mrf.mxu0
    %v681 = vadd.f32 0.0, %v680
    %v682 = vpop.f32.mrf.mxu0
    %683 = vdwg.mxu0
    %s684 = scalar_lea.vmem [#allocation2], 16
    %v685 = vld [vmem:[%s684] sm:$0xff]
    %v686 = vadd.f32 %v685, %v681
    %v687 = vxor.u32 %v686, 2147483648
    %v688 = vmul.f32 %v687, 1.442695
    %v689 = vpow.pop %v688
    %v690 = vadd.f32 %v689, 1.0
    %v691 = vrcp.pop %v690
    %v692 = vmul.f32 1.0, %v691
    %v693 = vadd.f32 %v681, %v483
    %695 = vrot.lane.b32.xlu0 %v693, 64
    %v696 = vpop.permute.xlu0 %695
    %v698 = vmul.f32 %v692, %v696
    %700 = vrot.lane.b32.xlu0 %v698, 64
    %v701 = vpop.permute.xlu0 %700
    %v703 = vadd.f32 %v685, %v701
    %v704 = vtanh.pop %v703
    %v705 = vsub.f32 1.0, %v692
    %707 = vrot.lane.b32.xlu0 %v704, 96
    %v708 = vpop.permute.xlu0 %707
    %v710 = vmul.f32 %v705, %v708
    %v711 = vmul.f32 %v692, %v608
    %v712 = vadd.f32 %v710, %v711
    %714 = vrot.lane.b32.xlu0 %v712, 96
    %v715 = vpop.permute.xlu0 %714
    %v716 = vsel %vm293, %v715, 0
    %718 = vmatprep.subr.mxu0 0.0
    %719 = vmatpush1.msra.mxu0 0.0
    %720 = vmatprep.subr.mxu0 0.0
    %721 = vmatpush1.msra.mxu0 0.0
    %722 = vmatprep.subr.mxu0 0.0
    %723 = vmatpush1.msra.mxu0 0.0
    %724 = vmatprep.subr.mxu0 0.0
    %725 = vmatpush1.msra.mxu0 0.0
    %726 = vmatprep.subr.mxu0 0.0
    %727 = vmatpush1.msra.mxu0 0.0
    %728 = vmatprep.subr.mxu0 0.0
    %729 = vmatpush1.msra.mxu0 0.0
    %730 = vmatprep.subr.mxu0 0.0
    %731 = vmatpush1.msra.mxu0 0.0
    %732 = vmatprep.subr.mxu0 0.0
    %733 = vmatpush1.msra.mxu0 0.0
    %734 = vmatprep.subr.mxu0 0.0
    %735 = vmatpush1.msra.mxu0 0.0
    %736 = vmatprep.subr.mxu0 0.0
    %737 = vmatpush1.msra.mxu0 0.0
    %738 = vmatprep.subr.mxu0 0.0
    %739 = vmatpush1.msra.mxu0 0.0
    %740 = vmatprep.subr.mxu0 0.0
    %741 = vmatpush1.msra.mxu0 0.0
    %742 = vmatprep.subr.mxu0 0.0
    %743 = vmatpush1.msra.mxu0 %v76
    %744 = vmatprep.subr.mxu0 0.0
    %745 = vmatpush1.msra.mxu0 %v75
    %746 = vmatprep.subr.mxu0 0.0
    %747 = vmatpush1.msra.mxu0 %v74
    %748 = vmatprep.subr.mxu0 0.0
    %749 = vmatpush1.msra.mxu0 %v73
    %750 = vmatprep.subr.mxu0 0.0
    %751 = vmatpush2.msra.mxu0 0.0
    %752 = vmatprep.subr.mxu0 0.0
    %753 = vmatpush2.msra.mxu0 0.0
    %754 = vmatprep.subr.mxu0 0.0
    %755 = vmatpush2.msra.mxu0 0.0
    %756 = vmatprep.subr.mxu0 0.0
    %757 = vmatpush2.msra.mxu0 0.0
    %758 = vmatprep.subr.mxu0 0.0
    %759 = vmatpush2.msra.mxu0 0.0
    %760 = vmatprep.subr.mxu0 0.0
    %761 = vmatpush2.msra.mxu0 0.0
    %762 = vmatprep.subr.mxu0 0.0
    %763 = vmatpush2.msra.mxu0 0.0
    %764 = vmatprep.subr.mxu0 0.0
    %765 = vmatpush2.msra.mxu0 0.0
    %766 = vmatprep.subr.mxu0 0.0
    %767 = vmatpush2.msra.mxu0 0.0
    %768 = vmatprep.subr.mxu0 0.0
    %769 = vmatpush2.msra.mxu0 0.0
    %770 = vmatprep.subr.mxu0 0.0
    %771 = vmatpush2.msra.mxu0 0.0
    %772 = vmatprep.subr.mxu0 0.0
    %773 = vmatpush2.msra.mxu0 0.0
    %774 = vmatprep.subr.mxu0 0.0
    %775 = vmatpush2.msra.mxu0 0.0
    %776 = vmatprep.subr.mxu0 0.0
    %777 = vmatpush2.msra.mxu0 0.0
    %778 = vmatprep.subr.mxu0 0.0
    %779 = vmatpush2.msra.mxu0 0.0
    %780 = vmatprep.subr.mxu0 0.0
    %781 = vmatpush2.msra.mxu0 0.0
    %782 = vmatprep.mubr.f32.mxu0 0.0
    %783 = vmatmul.mubr.f32.gmra.mxu0 %v716
    %v784 = vpop.f32.mrf.mxu0
    %v785 = vadd.f32 0.0, %v784
    %v786 = vpop.f32.mrf.mxu0
    %787 = vdwg.mxu0
    %s788 = scalar_lea.vmem [#allocation2], 24
    %v789 = vld [vmem:[%s788] sm:$0xff]
    %v790 = vadd.f32 %v789, %v785
    %v791 = vxor.u32 %v790, 2147483648
    %v792 = vmul.f32 %v791, 1.442695
    %v793 = vpow.pop %v792
    %v794 = vadd.f32 %v793, 1.0
    %v795 = vrcp.pop %v794
    %v796 = vmul.f32 1.0, %v795
    %v797 = vadd.f32 %v785, %v483
    %799 = vrot.lane.b32.xlu0 %v797, 64
    %v800 = vpop.permute.xlu0 %799
    %v802 = vmul.f32 %v796, %v800
    %804 = vrot.lane.b32.xlu0 %v802, 64
    %v805 = vpop.permute.xlu0 %804
    %v807 = vadd.f32 %v789, %v805
    %v808 = vtanh.pop %v807
    %v809 = vsub.f32 1.0, %v796
    %811 = vrot.lane.b32.xlu0 %v808, 96
    %v812 = vpop.permute.xlu0 %811
    %v814 = vmul.f32 %v809, %v812
    %v815 = vmul.f32 %v796, %v712
    %v816 = vadd.f32 %v814, %v815
    %818 = vrot.lane.b32.xlu0 %v816, 96
    %v819 = vpop.permute.xlu0 %818
    %v820 = vsel %vm293, %v819, 0
    %822 = vmatprep.subr.mxu0 0.0
    %823 = vmatpush1.msra.mxu0 0.0
    %824 = vmatprep.subr.mxu0 0.0
    %825 = vmatpush1.msra.mxu0 0.0
    %826 = vmatprep.subr.mxu0 0.0
    %827 = vmatpush1.msra.mxu0 0.0
    %828 = vmatprep.subr.mxu0 0.0
    %829 = vmatpush1.msra.mxu0 0.0
    %830 = vmatprep.subr.mxu0 0.0
    %831 = vmatpush1.msra.mxu0 0.0
    %832 = vmatprep.subr.mxu0 0.0
    %833 = vmatpush1.msra.mxu0 0.0
    %834 = vmatprep.subr.mxu0 0.0
    %835 = vmatpush1.msra.mxu0 0.0
    %836 = vmatprep.subr.mxu0 0.0
    %837 = vmatpush1.msra.mxu0 0.0
    %838 = vmatprep.subr.mxu0 0.0
    %839 = vmatpush1.msra.mxu0 0.0
    %840 = vmatprep.subr.mxu0 0.0
    %841 = vmatpush1.msra.mxu0 0.0
    %842 = vmatprep.subr.mxu0 0.0
    %843 = vmatpush1.msra.mxu0 0.0
    %844 = vmatprep.subr.mxu0 0.0
    %845 = vmatpush1.msra.mxu0 0.0
    %846 = vmatprep.subr.mxu0 0.0
    %847 = vmatpush1.msra.mxu0 %v76
    %848 = vmatprep.subr.mxu0 0.0
    %849 = vmatpush1.msra.mxu0 %v75
    %850 = vmatprep.subr.mxu0 0.0
    %851 = vmatpush1.msra.mxu0 %v74
    %852 = vmatprep.subr.mxu0 0.0
    %853 = vmatpush1.msra.mxu0 %v73
    %854 = vmatprep.subr.mxu0 0.0
    %855 = vmatpush2.msra.mxu0 0.0
    %856 = vmatprep.subr.mxu0 0.0
    %857 = vmatpush2.msra.mxu0 0.0
    %858 = vmatprep.subr.mxu0 0.0
    %859 = vmatpush2.msra.mxu0 0.0
    %860 = vmatprep.subr.mxu0 0.0
    %861 = vmatpush2.msra.mxu0 0.0
    %862 = vmatprep.subr.mxu0 0.0
    %863 = vmatpush2.msra.mxu0 0.0
    %864 = vmatprep.subr.mxu0 0.0
    %865 = vmatpush2.msra.mxu0 0.0
    %866 = vmatprep.subr.mxu0 0.0
    %867 = vmatpush2.msra.mxu0 0.0
    %868 = vmatprep.subr.mxu0 0.0
    %869 = vmatpush2.msra.mxu0 0.0
    %870 = vmatprep.subr.mxu0 0.0
    %871 = vmatpush2.msra.mxu0 0.0
    %872 = vmatprep.subr.mxu0 0.0
    %873 = vmatpush2.msra.mxu0 0.0
    %874 = vmatprep.subr.mxu0 0.0
    %875 = vmatpush2.msra.mxu0 0.0
    %876 = vmatprep.subr.mxu0 0.0
    %877 = vmatpush2.msra.mxu0 0.0
    %878 = vmatprep.subr.mxu0 0.0
    %879 = vmatpush2.msra.mxu0 0.0
    %880 = vmatprep.subr.mxu0 0.0
    %881 = vmatpush2.msra.mxu0 0.0
    %882 = vmatprep.subr.mxu0 0.0
    %883 = vmatpush2.msra.mxu0 0.0
    %884 = vmatprep.subr.mxu0 0.0
    %885 = vmatpush2.msra.mxu0 0.0
    %886 = vmatprep.mubr.f32.mxu0 0.0
    %887 = vmatmul.mubr.f32.gmra.mxu0 %v820
    %v888 = vpop.f32.mrf.mxu0
    %v889 = vadd.f32 0.0, %v888
    %v890 = vpop.f32.mrf.mxu0
    %891 = vdwg.mxu0
    %v892 = vld [vmem:[%s8] sm:$0xf]
    %v893 = vld [vmem:[%s8 + $0x4] sm:$0xf]
    %v897 = vunpack.c.l.s4 1966171168
    %v898 = vunpack.c.0.s8 %v897
    %v899 = vlaneseq
    %v900 = vshrl.u32 %v899, 7
    %v901 = vsub.s32 %v898, %v900
    %v902 = vrot.slane %v892, %v901
    %v903 = vcombine.high %v902, %v902
    %v905 = vunpack.c.l.s4 1966171168
    %v906 = vunpack.c.0.s8 %v905
    %v907 = vlaneseq
    %v908 = vshrl.u32 %v907, 7
    %v909 = vsub.s32 %v906, %v908
    %v910 = vrot.slane %v902, %v909
    %v912 = vunpack.c.l.s4 1966171168
    %v913 = vunpack.c.0.s8 %v912
    %v914 = vlaneseq
    %v915 = vshrl.u32 %v914, 7
    %v916 = vsub.s32 %v913, %v915
    %v917 = vrot.slane %v903, %v916
    %v918 = vcombine.high %v910, %v910
    %v919 = vcombine.high %v917, %v917
    %v921 = vunpack.c.l.s4 1966171168
    %v922 = vunpack.c.0.s8 %v921
    %v923 = vlaneseq
    %v924 = vshrl.u32 %v923, 7
    %v925 = vsub.s32 %v922, %v924
    %v926 = vrot.slane %v893, %v925
    %v927 = vcombine.high %v926, %v926
    %v929 = vunpack.c.l.s4 1966171168
    %v930 = vunpack.c.0.s8 %v929
    %v931 = vlaneseq
    %v932 = vshrl.u32 %v931, 7
    %v933 = vsub.s32 %v930, %v932
    %v934 = vrot.slane %v926, %v933
    %v936 = vunpack.c.l.s4 1966171168
    %v937 = vunpack.c.0.s8 %v936
    %v938 = vlaneseq
    %v939 = vshrl.u32 %v938, 7
    %v940 = vsub.s32 %v937, %v939
    %v941 = vrot.slane %v927, %v940
    %v942 = vcombine.high %v934, %v934
    %v943 = vcombine.high %v941, %v941
    %v945 = vcombine.high %v889, %v889
    %v947 = vunpack.c.l.s4 1983009808
    %v948 = vunpack.c.0.s8 %v947
    %v949 = vlaneseq
    %v950 = vshrl.u32 %v949, 7
    %v951 = vsub.s32 %v948, %v950
    %v952 = vrot.slane %v889, %v951
    %v954 = vunpack.c.l.s4 1983009808
    %v955 = vunpack.c.0.s8 %v954
    %v956 = vlaneseq
    %v957 = vshrl.u32 %v956, 7
    %v958 = vsub.s32 %v955, %v957
    %v959 = vrot.slane %v945, %v958
    %v960 = vcombine.high %v952, %v952
    %v961 = vcombine.high %v959, %v959
    %v966 = vcombine.high %v816, %v816
    %v968 = vunpack.c.l.s4 1983009808
    %v969 = vunpack.c.0.s8 %v968
    %v970 = vlaneseq
    %v971 = vshrl.u32 %v970, 7
    %v972 = vsub.s32 %v969, %v971
    %v973 = vrot.slane %v816, %v972
    %v975 = vunpack.c.l.s4 1983009808
    %v976 = vunpack.c.0.s8 %v975
    %v977 = vlaneseq
    %v978 = vshrl.u32 %v977, 7
    %v979 = vsub.s32 %v976, %v978
    %v980 = vrot.slane %v966, %v979
    %v981 = vcombine.high %v973, %v973
    %v982 = vcombine.high %v980, %v980
    %v987 = vlaneseq
    %v988 = vshrl.u32 %v987, 7
    %v989 = vsub.s32 0, %v988
    %v990 = vrot.slane %v910, %v989
    %v991 = vlaneseq
    %v992 = vshrl.u32 %v991, 7
    %v993 = vsub.s32 0, %v992
    %v994 = vrot.slane %v917, %v993
    %v995 = vlaneseq
    %v996 = vshrl.u32 %v995, 7
    %v997 = vsub.s32 0, %v996
    %v998 = vrot.slane %v918, %v997
    %v999 = vlaneseq
    %v1000 = vshrl.u32 %v999, 7
    %v1001 = vsub.s32 0, %v1000
    %v1002 = vrot.slane %v919, %v1001
    %v1003 = vlaneseq
    %v1004 = vshrl.u32 %v1003, 7
    %v1005 = vsub.s32 0, %v1004
    %v1006 = vrot.slane %v934, %v1005
    %v1007 = vlaneseq
    %v1008 = vshrl.u32 %v1007, 7
    %v1009 = vsub.s32 0, %v1008
    %v1010 = vrot.slane %v941, %v1009
    %v1011 = vlaneseq
    %v1012 = vshrl.u32 %v1011, 7
    %v1013 = vsub.s32 0, %v1012
    %v1014 = vrot.slane %v942, %v1013
    %v1015 = vlaneseq
    %v1016 = vshrl.u32 %v1015, 7
    %v1017 = vsub.s32 0, %v1016
    %v1018 = vrot.slane %v943, %v1017
    %v1027 = vadd.f32 %v990, %v952
    %v1028 = vadd.f32 %v994, %v960
    %v1029 = vadd.f32 %v998, %v959
    %v1030 = vadd.f32 %v1002, %v961
    %v1031 = vadd.f32 %v1006, %v952
    %v1032 = vadd.f32 %v1010, %v960
    %v1033 = vadd.f32 %v1014, %v959
    %v1034 = vadd.f32 %v1018, %v961
    %v1035 = vxor.u32 %v1027, 2147483648
    %v1036 = vxor.u32 %v1028, 2147483648
    %v1037 = vxor.u32 %v1029, 2147483648
    %v1038 = vxor.u32 %v1030, 2147483648
    %v1039 = vxor.u32 %v1031, 2147483648
    %v1040 = vxor.u32 %v1032, 2147483648
    %v1041 = vxor.u32 %v1033, 2147483648
    %v1042 = vxor.u32 %v1034, 2147483648
    %v1043 = vmul.f32 %v1035, 1.442695
    %v1044 = vpow.pop %v1043
    %v1045 = vmul.f32 %v1036, 1.442695
    %v1046 = vpow.pop %v1045
    %v1047 = vmul.f32 %v1037, 1.442695
    %v1048 = vpow.pop %v1047
    %v1049 = vmul.f32 %v1038, 1.442695
    %v1050 = vpow.pop %v1049
    %v1051 = vmul.f32 %v1039, 1.442695
    %v1052 = vpow.pop %v1051
    %v1053 = vmul.f32 %v1040, 1.442695
    %v1054 = vpow.pop %v1053
    %v1055 = vmul.f32 %v1041, 1.442695
    %v1056 = vpow.pop %v1055
    %v1057 = vmul.f32 %v1042, 1.442695
    %v1058 = vpow.pop %v1057
    %v1059 = vadd.f32 %v1044, 1.0
    %v1060 = vadd.f32 %v1046, 1.0
    %v1061 = vadd.f32 %v1048, 1.0
    %v1062 = vadd.f32 %v1050, 1.0
    %v1063 = vadd.f32 %v1052, 1.0
    %v1064 = vadd.f32 %v1054, 1.0
    %v1065 = vadd.f32 %v1056, 1.0
    %v1066 = vadd.f32 %v1058, 1.0
    %v1067 = vrcp.pop %v1059
    %v1068 = vmul.f32 1.0, %v1067
    %v1069 = vrcp.pop %v1060
    %v1070 = vmul.f32 1.0, %v1069
    %v1071 = vrcp.pop %v1061
    %v1072 = vmul.f32 1.0, %v1071
    %v1073 = vrcp.pop %v1062
    %v1074 = vmul.f32 1.0, %v1073
    %v1075 = vrcp.pop %v1063
    %v1076 = vmul.f32 1.0, %v1075
    %v1077 = vrcp.pop %v1064
    %v1078 = vmul.f32 1.0, %v1077
    %v1079 = vrcp.pop %v1065
    %v1080 = vmul.f32 1.0, %v1079
    %v1081 = vrcp.pop %v1066
    %v1082 = vmul.f32 1.0, %v1081
    %v1084 = vunpack.c.l.s4 1983009808
    %v1085 = vunpack.c.0.s8 %v1084
    %v1086 = vlaneseq
    %v1087 = vshrl.u32 %v1086, 7
    %v1088 = vsub.s32 %v1085, %v1087
    %v1089 = vrot.slane %v481, %v1088
    %1090 = vrot.lane.b32.xlu0 %v1089, 64
    %v1091 = vpop.permute.xlu0 %1090
    %v1093 = vadd.f32 %v952, %v1091
    %v1094 = vadd.f32 %v960, %v1091
    %v1095 = vadd.f32 %v959, %v1091
    %v1096 = vadd.f32 %v961, %v1091
    %v1102 = vunpack.c.l.s4 1983009808
    %v1103 = vunpack.c.0.s8 %v1102
    %v1104 = vlaneseq
    %v1105 = vshrl.u32 %v1104, 7
    %v1106 = vsub.s32 %v1103, %v1105
    %v1107 = vrot.slane %v1093, %v1106
    %v1109 = vunpack.c.l.s4 1983009808
    %v1110 = vunpack.c.0.s8 %v1109
    %v1111 = vlaneseq
    %v1112 = vshrl.u32 %v1111, 7
    %v1113 = vsub.s32 %v1110, %v1112
    %v1114 = vrot.slane %v1094, %v1113
    %v1116 = vunpack.c.l.s4 1983009808
    %v1117 = vunpack.c.0.s8 %v1116
    %v1118 = vlaneseq
    %v1119 = vshrl.u32 %v1118, 7
    %v1120 = vsub.s32 %v1117, %v1119
    %v1121 = vrot.slane %v1095, %v1120
    %v1123 = vunpack.c.l.s4 1983009808
    %v1124 = vunpack.c.0.s8 %v1123
    %v1125 = vlaneseq
    %v1126 = vshrl.u32 %v1125, 7
    %v1127 = vsub.s32 %v1124, %v1126
    %v1128 = vrot.slane %v1096, %v1127
    %1129 = vrot.lane.b32.xlu0 %v1107, 64
    %v1130 = vpop.permute.xlu0 %1129
    %1131 = vrot.lane.b32.xlu0 %v1114, 64
    %v1132 = vpop.permute.xlu0 %1131
    %1133 = vrot.lane.b32.xlu0 %v1121, 64
    %v1134 = vpop.permute.xlu0 %1133
    %1135 = vrot.lane.b32.xlu0 %v1128, 64
    %v1136 = vpop.permute.xlu0 %1135
    %v1141 = vmul.f32 %v1068, %v1130
    %v1142 = vmul.f32 %v1070, %v1132
    %v1143 = vmul.f32 %v1072, %v1134
    %v1144 = vmul.f32 %v1074, %v1136
    %v1145 = vmul.f32 %v1076, %v1130
    %v1146 = vmul.f32 %v1078, %v1132
    %v1147 = vmul.f32 %v1080, %v1134
    %v1148 = vmul.f32 %v1082, %v1136
    %1157 = vrot.lane.b32.xlu0 %v1141, 64
    %v1158 = vpop.permute.xlu0 %1157
    %1159 = vrot.lane.b32.xlu0 %v1142, 64
    %v1160 = vpop.permute.xlu0 %1159
    %1161 = vrot.lane.b32.xlu0 %v1143, 64
    %v1162 = vpop.permute.xlu0 %1161
    %1163 = vrot.lane.b32.xlu0 %v1144, 64
    %v1164 = vpop.permute.xlu0 %1163
    %1165 = vrot.lane.b32.xlu0 %v1145, 64
    %v1166 = vpop.permute.xlu0 %1165
    %1167 = vrot.lane.b32.xlu0 %v1146, 64
    %v1168 = vpop.permute.xlu0 %1167
    %1169 = vrot.lane.b32.xlu0 %v1147, 64
    %v1170 = vpop.permute.xlu0 %1169
    %1171 = vrot.lane.b32.xlu0 %v1148, 64
    %v1172 = vpop.permute.xlu0 %1171
    %v1181 = vadd.f32 %v990, %v1158
    %v1182 = vadd.f32 %v994, %v1160
    %v1183 = vadd.f32 %v998, %v1162
    %v1184 = vadd.f32 %v1002, %v1164
    %v1185 = vadd.f32 %v1006, %v1166
    %v1186 = vadd.f32 %v1010, %v1168
    %v1187 = vadd.f32 %v1014, %v1170
    %v1188 = vadd.f32 %v1018, %v1172
    %v1189 = vtanh.pop %v1181
    %v1190 = vtanh.pop %v1182
    %v1191 = vtanh.pop %v1183
    %v1192 = vtanh.pop %v1184
    %v1193 = vtanh.pop %v1185
    %v1194 = vtanh.pop %v1186
    %v1195 = vtanh.pop %v1187
    %v1196 = vtanh.pop %v1188
    %v1197 = vsub.f32 1.0, %v1068
    %v1198 = vsub.f32 1.0, %v1070
    %v1199 = vsub.f32 1.0, %v1072
    %v1200 = vsub.f32 1.0, %v1074
    %v1201 = vsub.f32 1.0, %v1076
    %v1202 = vsub.f32 1.0, %v1078
    %v1203 = vsub.f32 1.0, %v1080
    %v1204 = vsub.f32 1.0, %v1082
    %1213 = vrot.lane.b32.xlu0 %v1189, 96
    %v1214 = vpop.permute.xlu0 %1213
    %1215 = vrot.lane.b32.xlu0 %v1190, 96
    %v1216 = vpop.permute.xlu0 %1215
    %1217 = vrot.lane.b32.xlu0 %v1191, 96
    %v1218 = vpop.permute.xlu0 %1217
    %1219 = vrot.lane.b32.xlu0 %v1192, 96
    %v1220 = vpop.permute.xlu0 %1219
    %1221 = vrot.lane.b32.xlu0 %v1193, 96
    %v1222 = vpop.permute.xlu0 %1221
    %1223 = vrot.lane.b32.xlu0 %v1194, 96
    %v1224 = vpop.permute.xlu0 %1223
    %1225 = vrot.lane.b32.xlu0 %v1195, 96
    %v1226 = vpop.permute.xlu0 %1225
    %1227 = vrot.lane.b32.xlu0 %v1196, 96
    %v1228 = vpop.permute.xlu0 %1227
    %v1237 = vmul.f32 %v1197, %v1214
    %v1238 = vmul.f32 %v1198, %v1216
    %v1239 = vmul.f32 %v1199, %v1218
    %v1240 = vmul.f32 %v1200, %v1220
    %v1241 = vmul.f32 %v1201, %v1222
    %v1242 = vmul.f32 %v1202, %v1224
    %v1243 = vmul.f32 %v1203, %v1226
    %v1244 = vmul.f32 %v1204, %v1228
    %v1245 = vmul.f32 %v1068, %v973
    %v1246 = vmul.f32 %v1070, %v981
    %v1247 = vmul.f32 %v1072, %v980
    %v1248 = vmul.f32 %v1074, %v982
    %v1249 = vmul.f32 %v1076, %v973
    %v1250 = vmul.f32 %v1078, %v981
    %v1251 = vmul.f32 %v1080, %v980
    %v1252 = vmul.f32 %v1082, %v982
    %v1253 = vadd.f32 %v1237, %v1245
    %v1254 = vadd.f32 %v1238, %v1246
    %v1255 = vadd.f32 %v1239, %v1247
    %v1256 = vadd.f32 %v1240, %v1248
    %v1257 = vadd.f32 %v1241, %v1249
    %v1258 = vadd.f32 %v1242, %v1250
    %v1259 = vadd.f32 %v1243, %v1251
    %v1260 = vadd.f32 %v1244, %v1252
    %v1261 = vld [vmem:[%s9] sm:$0xff]
    %v1262 = vld [vmem:[%s9 + $0x8] sm:$0xff]
    %v1263 = vld [vmem:[%s9 + $0x10] sm:$0xff]
    %v1264 = vld [vmem:[%s9 + $0x18] sm:$0xff]
    %v1265 = vld [vmem:[%s10] sm:$0x1]
    %v1267 = vlaneseq
    %v1268 = vshrl.u32 %v1267, 7
    %v1269 = vsub.s32 0, %v1268
    %v1270 = vrot.slane %v1265, %v1269
    %v1280 = vcombine.low %v1253, %v1254
    %v1281 = vcombine.low %v1255, %v1256
    %v1283 = vunpack.c.l.s4 1983009808
    %v1284 = vunpack.c.0.s8 %v1283
    %v1285 = vlaneseq
    %v1286 = vshrl.u32 %v1285, 7
    %v1287 = vsub.s32 %v1284, %v1286
    %v1288 = vrot.slane %v1280, %v1287
    %v1290 = vunpack.c.l.s4 1983009808
    %v1291 = vunpack.c.0.s8 %v1290
    %v1292 = vlaneseq
    %v1293 = vshrl.u32 %v1292, 7
    %v1294 = vsub.s32 %v1291, %v1293
    %v1295 = vrot.slane %v1281, %v1294
    %v1296 = vcombine.low %v1288, %v1295
    %v1297 = vcombine.low %v1257, %v1258
    %v1298 = vcombine.low %v1259, %v1260
    %v1300 = vunpack.c.l.s4 1983009808
    %v1301 = vunpack.c.0.s8 %v1300
    %v1302 = vlaneseq
    %v1303 = vshrl.u32 %v1302, 7
    %v1304 = vsub.s32 %v1301, %v1303
    %v1305 = vrot.slane %v1297, %v1304
    %v1307 = vunpack.c.l.s4 1983009808
    %v1308 = vunpack.c.0.s8 %v1307
    %v1309 = vlaneseq
    %v1310 = vshrl.u32 %v1309, 7
    %v1311 = vsub.s32 %v1308, %v1310
    %v1312 = vrot.slane %v1298, %v1311
    %v1313 = vcombine.low %v1305, %v1312
    %1314 = vrot.lane.b32.xlu0 %v1296, 96
    %v1315 = vpop.permute.xlu0 %1314
    %1316 = vrot.lane.b32.xlu0 %v1313, 96
    %v1317 = vpop.permute.xlu0 %1316
    %v1318 = vsel %vm293, %v1315, 0
    %v1320 = vsel %vm293, %v1317, 0
    %1322 = vmatprep.subr.mxu0 0.0
    %1323 = vmatpush1.msra.mxu0 0.0
    %1324 = vmatprep.subr.mxu0 0.0
    %1325 = vmatpush1.msra.mxu0 0.0
    %1326 = vmatprep.subr.mxu0 0.0
    %1327 = vmatpush1.msra.mxu0 0.0
    %1328 = vmatprep.subr.mxu0 0.0
    %1329 = vmatpush1.msra.mxu0 0.0
    %1330 = vmatprep.subr.mxu0 0.0
    %1331 = vmatpush1.msra.mxu0 0.0
    %1332 = vmatprep.subr.mxu0 0.0
    %1333 = vmatpush1.msra.mxu0 0.0
    %1334 = vmatprep.subr.mxu0 0.0
    %1335 = vmatpush1.msra.mxu0 0.0
    %1336 = vmatprep.subr.mxu0 0.0
    %1337 = vmatpush1.msra.mxu0 0.0
    %1338 = vmatprep.subr.mxu0 0.0
    %1339 = vmatpush1.msra.mxu0 0.0
    %1340 = vmatprep.subr.mxu0 0.0
    %1341 = vmatpush1.msra.mxu0 0.0
    %1342 = vmatprep.subr.mxu0 0.0
    %1343 = vmatpush1.msra.mxu0 0.0
    %1344 = vmatprep.subr.mxu0 0.0
    %1345 = vmatpush1.msra.mxu0 0.0
    %1346 = vmatprep.subr.mxu0 0.0
    %1347 = vmatpush1.msra.mxu0 %v1264
    %1348 = vmatprep.subr.mxu0 0.0
    %1349 = vmatpush1.msra.mxu0 %v1263
    %1350 = vmatprep.subr.mxu0 0.0
    %1351 = vmatpush1.msra.mxu0 %v1262
    %1352 = vmatprep.subr.mxu0 0.0
    %1353 = vmatpush1.msra.mxu0 %v1261
    %1354 = vmatprep.subr.mxu0 0.0
    %1355 = vmatpush2.msra.mxu0 0.0
    %1356 = vmatprep.subr.mxu0 0.0
    %1357 = vmatpush2.msra.mxu0 0.0
    %1358 = vmatprep.subr.mxu0 0.0
    %1359 = vmatpush2.msra.mxu0 0.0
    %1360 = vmatprep.subr.mxu0 0.0
    %1361 = vmatpush2.msra.mxu0 0.0
    %1362 = vmatprep.subr.mxu0 0.0
    %1363 = vmatpush2.msra.mxu0 0.0
    %1364 = vmatprep.subr.mxu0 0.0
    %1365 = vmatpush2.msra.mxu0 0.0
    %1366 = vmatprep.subr.mxu0 0.0
    %1367 = vmatpush2.msra.mxu0 0.0
    %1368 = vmatprep.subr.mxu0 0.0
    %1369 = vmatpush2.msra.mxu0 0.0
    %1370 = vmatprep.subr.mxu0 0.0
    %1371 = vmatpush2.msra.mxu0 0.0
    %1372 = vmatprep.subr.mxu0 0.0
    %1373 = vmatpush2.msra.mxu0 0.0
    %1374 = vmatprep.subr.mxu0 0.0
    %1375 = vmatpush2.msra.mxu0 0.0
    %1376 = vmatprep.subr.mxu0 0.0
    %1377 = vmatpush2.msra.mxu0 0.0
    %1378 = vmatprep.subr.mxu0 0.0
    %1379 = vmatpush2.msra.mxu0 0.0
    %1380 = vmatprep.subr.mxu0 0.0
    %1381 = vmatpush2.msra.mxu0 0.0
    %1382 = vmatprep.subr.mxu0 0.0
    %1383 = vmatpush2.msra.mxu0 0.0
    %1384 = vmatprep.subr.mxu0 0.0
    %1385 = vmatpush2.msra.mxu0 0.0
    %1386 = vmatprep.mubr.f32.mxu0 0.0
    %1387 = vmatmul.mubr.f32.gmra.mxu0 %v1318
    %v1388 = vpop.f32.mrf.mxu0
    %v1389 = vadd.f32 %v1270, %v1388
    %v1390 = vpop.f32.mrf.mxu0
    %1391 = vmatprep.mubr.f32.mxu0 0.0
    %1392 = vmatmul.mubr.f32.gmra.mxu0 %v1320
    %v1393 = vpop.f32.mrf.mxu0
    %v1394 = vadd.f32 %v1270, %v1393
    %v1395 = vpop.f32.mrf.mxu0
    %1396 = vdwg.mxu0
    %1398 = vrot.lane.b32.xlu0 %v1394, 4
    %v1399 = vpop.permute.xlu0 %1398
    %v1401 = vsel %vm185, %v1389, %v1399
    %v1402 = vld [vmem:[%s1] sm:$0x3]
    %v1403 = vld [vmem:[%s1 + $0x2] sm:$0x3]
    %v1404 = vld [vmem:[%s1 + $0x4] sm:$0x3]
    %v1405 = vld [vmem:[%s1 + $0x6] sm:$0x3]
    %1407 = vset.pattern.permute.xlu0 0
    %1408 = vperm.xlu0 %1407, %v1402
    %v1409 = vpop.permute.xlu0 %1408
    %v1412 = vunpack.c.l.s4 269488144
    %v1413 = vunpack.c.0.s8 %v1412
    %v1414 = vlaneseq
    %v1415 = vshrl.u32 %v1414, 7
    %v1416 = vsub.s32 %v1413, %v1415
    %v1417 = vrot.slane %v1409, %v1416
    %1419 = vset.pattern.permute.xlu0 0
    %1420 = vperm.xlu0 %1419, %v1403
    %v1421 = vpop.permute.xlu0 %1420
    %v1424 = vunpack.c.l.s4 269488144
    %v1425 = vunpack.c.0.s8 %v1424
    %v1426 = vlaneseq
    %v1427 = vshrl.u32 %v1426, 7
    %v1428 = vsub.s32 %v1425, %v1427
    %v1429 = vrot.slane %v1421, %v1428
    %1431 = vset.pattern.permute.xlu0 0
    %1432 = vperm.xlu0 %1431, %v1404
    %v1433 = vpop.permute.xlu0 %1432
    %v1436 = vunpack.c.l.s4 269488144
    %v1437 = vunpack.c.0.s8 %v1436
    %v1438 = vlaneseq
    %v1439 = vshrl.u32 %v1438, 7
    %v1440 = vsub.s32 %v1437, %v1439
    %v1441 = vrot.slane %v1433, %v1440
    %1443 = vset.pattern.permute.xlu0 0
    %1444 = vperm.xlu0 %1443, %v1405
    %v1445 = vpop.permute.xlu0 %1444
    %v1448 = vunpack.c.l.s4 269488144
    %v1449 = vunpack.c.0.s8 %v1448
    %v1450 = vlaneseq
    %v1451 = vshrl.u32 %v1450, 7
    %v1452 = vsub.s32 %v1449, %v1451
    %v1453 = vrot.slane %v1445, %v1452
    %v1458 = vcombine.low %v1417, %v1429
    %v1459 = vcombine.low %v1441, %v1453
    %v1461 = vunpack.c.l.s4 1983009808
    %v1462 = vunpack.c.0.s8 %v1461
    %v1463 = vlaneseq
    %v1464 = vshrl.u32 %v1463, 7
    %v1465 = vsub.s32 %v1462, %v1464
    %v1466 = vrot.slane %v1458, %v1465
    %v1468 = vunpack.c.l.s4 1983009808
    %v1469 = vunpack.c.0.s8 %v1468
    %v1470 = vlaneseq
    %v1471 = vshrl.u32 %v1470, 7
    %v1472 = vsub.s32 %v1469, %v1471
    %v1473 = vrot.slane %v1459, %v1472
    %v1474 = vcombine.low %v1466, %v1473
    %v1476 = vadd.f32 %v1401, %v1474
    %v1478 = vcombine.high %v1476, %v1476
    %v1480 = vunpack.c.l.s4 1983009808
    %v1481 = vunpack.c.0.s8 %v1480
    %v1482 = vlaneseq
    %v1483 = vshrl.u32 %v1482, 7
    %v1484 = vsub.s32 %v1481, %v1483
    %v1485 = vrot.slane %v1476, %v1484
    %v1487 = vunpack.c.l.s4 1983009808
    %v1488 = vunpack.c.0.s8 %v1487
    %v1489 = vlaneseq
    %v1490 = vshrl.u32 %v1489, 7
    %v1491 = vsub.s32 %v1488, %v1490
    %v1492 = vrot.slane %v1478, %v1491
    %v1493 = vcombine.high %v1485, %v1485
    %v1494 = vcombine.high %v1492, %v1492
    %vm1499 = vcmask 58368
    %1500 = vst.msk [vmem:[#allocation8] sm:$0x3] %vm1499, %v1485
    %1501 = vst.msk [vmem:[#allocation8 + $0x2] sm:$0x3] %vm1499, %v1493
    %1502 = vst.msk [vmem:[#allocation8 + $0x4] sm:$0x3] %vm1499, %v1492
    %1503 = vst.msk [vmem:[#allocation8 + $0x6] sm:$0x3] %vm1499, %v1494
    // Predicated region
    $region54: #{tpu_custom_call.1} parent=1 // pred_check
      _
    $region55: #{tpu_custom_call.1} parent=1 // pred_check_branch
      %1505 = sbr.rel (0) target = $region57
    $region56: #{tpu_custom_call.1} parent=1 // pred_region
      %s1507 = ssub.s32 128, 128
      %1508 = vsyncadd [#allocation5], %s1507
      %s1509 = sshll.u32 [#allocation8], 4
      %s1510 = int_to_ptr.vmem [resolvable:$true] %s1509
      %1515 = dma.vmem_to_hbm [thread:$0]  %s1510, 128, %s11, [#allocation5], 32, 32, 2
    $region57: #{tpu_custom_call.1} parent=1 // pred_fallthru
      _
    // Predicated region
    $region58: #{tpu_custom_call.1} parent=1 // pred_check
      _
    $region59: #{tpu_custom_call.1} parent=1 // pred_check_branch
      %1517 = sbr.rel (0) target = $region61
    $region60: #{tpu_custom_call.1} parent=1 // pred_region
      %1518 = dma.done [#allocation5], 128
    $region61: #{tpu_custom_call.1} parent=1 // pred_fallthru
      _
    %1519 = vsyncpa [#allocation4], 1
    %1520 = vsyncpa [#allocation7], 1
    %1521 = vsyncpa [#allocation5], 1

// kernel: tpu_custom_call.1
$region0: #{tpu_custom_call.1}
  #allocation0 [shape = 'u32[]', space=smem, size = 0x4, offset = 0x4, fixed_abs, tag = 'smem constant byte address 0x4 - core index']
  #allocation1 [shape = 'u32[144,128]{1,0:T(1,128)}', space=vmem, size = 0x12000, scoped, tag = 'internal scratch']
  #allocation2 [shape = 'f32[4,8,96]{2,1,0:T(8,128)}', space=vmem, size = 0x4000, scoped, tag = 'scratch operand']
  %s0 = inlined_call_operand.vmem [shape: f32[4,4,2,4], index: 0, kind: input, shape index: {}]
  %s1 = inlined_call_operand.vmem [shape: f32[4,2,1], index: 1, kind: input, shape index: {}]
  %s2 = inlined_call_operand.vmem [shape: f32[4,32], index: 2, kind: input, shape index: {}]
  %s3 = inlined_call_operand.vmem [shape: f32[1,32], index: 3, kind: input, shape index: {}]
  %s4 = inlined_call_operand.hbm [shape: f32[32,96], index: 4, kind: input, shape index: {}]
  %s5 = inlined_call_operand.hbm [shape: f32[32,96], index: 5, kind: input, shape index: {}]
  %s6 = inlined_call_operand.vmem [shape: f32[1,96], index: 6, kind: input, shape index: {}]
  %s7 = inlined_call_operand.vmem [shape: f32[1,32], index: 7, kind: input, shape index: {}]
  %s8 = inlined_call_operand.vmem [shape: f32[2,4,96], index: 8, kind: input, shape index: {}]
  %s9 = inlined_call_operand.vmem [shape: f32[32,4], index: 9, kind: input, shape index: {}]
  %s10 = inlined_call_operand.vmem [shape: f32[1,4], index: 10, kind: input, shape index: {}]
  %s11 = inlined_call_operand.hbm [shape: f32[4,2,8], index: 11, kind: output, shape index: {}]
  %s12 = sld [smem:[#allocation0]]
  $region62: #{tpu_custom_call.1} parent=0
    _
  %s14 = ssub.s32 1, %s12
  %s15 = scalar_select 0, %s14, %s12
  $region1: #{tpu_custom_call.1} parent=0
    #allocation3 [shape = 'u8[16384]{0}', space=vmem, size = 0x4000, scoped, tag = 'input window, operand 4, single buffered']
    #allocation4 [shape = 's32[1]{0}', space=sflag, size = 0x4, scoped, tag = 'scoped memory for tpu_custom_call.1']
    #allocation5 [shape = 's32[1]{0}', space=sflag, size = 0x4, scoped, tag = 'scoped memory for tpu_custom_call.1']
    #allocation6 [shape = 'u8[16384]{0}', space=vmem, size = 0x4000, scoped, tag = 'input window, operand 5, single buffered']
    #allocation7 [shape = 's32[1]{0}', space=sflag, size = 0x4, scoped, tag = 'scoped memory for tpu_custom_call.1']
    #allocation8 [shape = 'u8[4096]{0}', space=vmem, size = 0x1000, scoped, tag = 'output window, operand 0, single buffered']
    %16 = vsyncpa [#allocation4], 0
    %17 = vsyncpa [#allocation7], 0
    %18 = vsyncpa [#allocation5], 0
    // Predicated region
    $region2: #{tpu_custom_call.1} parent=1 // pred_check
      _
    $region3: #{tpu_custom_call.1} parent=1 // pred_check_branch
      %20 = sbr.rel (0) target = $region5
    $region4: #{tpu_custom_call.1} parent=1 // pred_region
      _
    $region5: #{tpu_custom_call.1} parent=1 // pred_fallthru
      _
    // Predicated region
    $region6: #{tpu_custom_call.1} parent=1 // pred_check
      _
    $region7: #{tpu_custom_call.1} parent=1 // pred_check_branch
      %22 = sbr.rel (0) target = $region9
    $region8: #{tpu_custom_call.1} parent=1 // pred_region
      _
    $region9: #{tpu_custom_call.1} parent=1 // pred_fallthru
      _
    // Predicated region
    $region10: #{tpu_custom_call.1} parent=1 // pred_check
      _
    $region11: #{tpu_custom_call.1} parent=1 // pred_check_branch
      %24 = sbr.rel (0) target = $region13
    $region12: #{tpu_custom_call.1} parent=1 // pred_region
      _
    $region13: #{tpu_custom_call.1} parent=1 // pred_fallthru
      _
    // Predicated region
    $region14: #{tpu_custom_call.1} parent=1 // pred_check
      _
    $region15: #{tpu_custom_call.1} parent=1 // pred_check_branch
      %26 = sbr.rel (0) target = $region17
    $region16: #{tpu_custom_call.1} parent=1 // pred_region
      _
    $region17: #{tpu_custom_call.1} parent=1 // pred_fallthru
      _
    // Predicated region
    $region18: #{tpu_custom_call.1} parent=1 // pred_check
      _
    $region19: #{tpu_custom_call.1} parent=1 // pred_check_branch
      %28 = sbr.rel (0) target = $region21
    $region20: #{tpu_custom_call.1} parent=1 // pred_region
      %s30 = ssub.s32 512, 512
      %31 = vsyncadd [#allocation4], %s30
      %s32 = sshll.u32 [#allocation3], 4
      %s33 = int_to_ptr.vmem [resolvable:$true] %s32
      %38 = dma.hbm_to_vmem [thread:$0]  %s4, 512, %s33, [#allocation4], 128, 128, 8
    $region21: #{tpu_custom_call.1} parent=1 // pred_fallthru
      _
    // Predicated region
    $region22: #{tpu_custom_call.1} parent=1 // pred_check
      _
    $region23: #{tpu_custom_call.1} parent=1 // pred_check_branch
      %40 = sbr.rel (0) target = $region25
    $region24: #{tpu_custom_call.1} parent=1 // pred_region
      %s42 = ssub.s32 512, 512
      %43 = vsyncadd [#allocation7], %s42
      %s44 = sshll.u32 [#allocation6], 4
      %s45 = int_to_ptr.vmem [resolvable:$true] %s44
      %50 = dma.hbm_to_vmem [thread:$0]  %s5, 512, %s45, [#allocation7], 128, 128, 8
    $region25: #{tpu_custom_call.1} parent=1 // pred_fallthru
      _
    // Predicated region
    $region26: #{tpu_custom_call.1} parent=1 // pred_check
      _
    $region27: #{tpu_custom_call.1} parent=1 // pred_check_branch
      %52 = sbr.rel (0) target = $region29
    $region28: #{tpu_custom_call.1} parent=1 // pred_region
      _
    $region29: #{tpu_custom_call.1} parent=1 // pred_fallthru
      _
    // Predicated region
    $region30: #{tpu_custom_call.1} parent=1 // pred_check
      _
    $region31: #{tpu_custom_call.1} parent=1 // pred_check_branch
      %54 = sbr.rel (0) target = $region33
    $region32: #{tpu_custom_call.1} parent=1 // pred_region
      _
    $region33: #{tpu_custom_call.1} parent=1 // pred_fallthru
      _
    // Predicated region
    $region34: #{tpu_custom_call.1} parent=1 // pred_check
      _
    $region35: #{tpu_custom_call.1} parent=1 // pred_check_branch
      %56 = sbr.rel (0) target = $region37
    $region36: #{tpu_custom_call.1} parent=1 // pred_region
      _
    $region37: #{tpu_custom_call.1} parent=1 // pred_fallthru
      _
    // Predicated region
    $region38: #{tpu_custom_call.1} parent=1 // pred_check
      _
    $region39: #{tpu_custom_call.1} parent=1 // pred_check_branch
      %58 = sbr.rel (0) target = $region41
    $region40: #{tpu_custom_call.1} parent=1 // pred_region
      _
    $region41: #{tpu_custom_call.1} parent=1 // pred_fallthru
      _
    // Predicated region
    $region42: #{tpu_custom_call.1} parent=1 // pred_check
      _
    $region43: #{tpu_custom_call.1} parent=1 // pred_check_branch
      %60 = sbr.rel (0) target = $region45
    $region44: #{tpu_custom_call.1} parent=1 // pred_region
      _
    $region45: #{tpu_custom_call.1} parent=1 // pred_fallthru
      _
    // Predicated region
    $region46: #{tpu_custom_call.1} parent=1 // pred_check
      _
    $region47: #{tpu_custom_call.1} parent=1 // pred_check_branch
      %62 = sbr.rel (0) target = $region49
    $region48: #{tpu_custom_call.1} parent=1 // pred_region
      %63 = dma.done [#allocation4], 512
    $region49: #{tpu_custom_call.1} parent=1 // pred_fallthru
      _
    // Predicated region
    $region50: #{tpu_custom_call.1} parent=1 // pred_check
      _
    $region51: #{tpu_custom_call.1} parent=1 // pred_check_branch
      %65 = sbr.rel (0) target = $region53
    $region52: #{tpu_custom_call.1} parent=1 // pred_region
      %66 = dma.done [#allocation7], 512
    $region53: #{tpu_custom_call.1} parent=1 // pred_fallthru
      _
    %v67 = vld [vmem:[%s2] sm:$0xf]
    %v68 = vld [vmem:[%s3] sm:$0x1]
    %v69 = vld [vmem:[#allocation3] sm:$0xff]
    %v70 = vld [vmem:[#allocation3 + $0x8] sm:$0xff]
    %v71 = vld [vmem:[#allocation3 + $0x10] sm:$0xff]
    %v72 = vld [vmem:[#allocation3 + $0x18] sm:$0xff]
    %v73 = vld [vmem:[#allocation6] sm:$0xff]
    %v74 = vld [vmem:[#allocation6 + $0x8] sm:$0xff]
    %v75 = vld [vmem:[#allocation6 + $0x10] sm:$0xff]
    %v76 = vld [vmem:[#allocation6 + $0x18] sm:$0xff]
    %v77 = vld [vmem:[%s6] sm:$0x1]
    %v78 = vld [vmem:[%s7] sm:$0x1]
    %v79 = vld [vmem:[%s0] sm:$0x3]
    %v80 = vld [vmem:[%s0 + $0x2] sm:$0x3]
    %v81 = vld [vmem:[%s0 + $0x4] sm:$0x3]
    %v82 = vld [vmem:[%s0 + $0x6] sm:$0x3]
    %v83 = vld [vmem:[%s0 + $0x8] sm:$0x3]
    %v84 = vld [vmem:[%s0 + $0xa] sm:$0x3]
    %v85 = vld [vmem:[%s0 + $0xc] sm:$0x3]
    %v86 = vld [vmem:[%s0 + $0xe] sm:$0x3]
    %v87 = vld [vmem:[%s0 + $0x10] sm:$0x3]
    %v88 = vld [vmem:[%s0 + $0x12] sm:$0x3]
    %v89 = vld [vmem:[%s0 + $0x14] sm:$0x3]
    %v90 = vld [vmem:[%s0 + $0x16] sm:$0x3]
    %v91 = vld [vmem:[%s0 + $0x18] sm:$0x3]
    %v92 = vld [vmem:[%s0 + $0x1a] sm:$0x3]
    %v93 = vld [vmem:[%s0 + $0x1c] sm:$0x3]
    %v94 = vld [vmem:[%s0 + $0x1e] sm:$0x3]
    %v96 = vlaneseq
    %v97 = vshrl.u32 %v96, 7
    %v98 = vsub.s32 0, %v97
    %v99 = vrot.slane %v68, %v98
    %v117 = vcombine.low %v79, %v80
    %v118 = vcombine.low %v81, %v82
    %v120 = vunpack.c.l.s4 1983009808
    %v121 = vunpack.c.0.s8 %v120
    %v122 = vlaneseq
    %v123 = vshrl.u32 %v122, 7
    %v124 = vsub.s32 %v121, %v123
    %v125 = vrot.slane %v117, %v124
    %v127 = vunpack.c.l.s4 1983009808
    %v128 = vunpack.c.0.s8 %v127
    %v129 = vlaneseq
    %v130 = vshrl.u32 %v129, 7
    %v131 = vsub.s32 %v128, %v130
    %v132 = vrot.slane %v118, %v131
    %v133 = vcombine.low %v125, %v132
    %v134 = vcombine.low %v83, %v84
    %v135 = vcombine.low %v85, %v86
    %v137 = vunpack.c.l.s4 1983009808
    %v138 = vunpack.c.0.s8 %v137
    %v139 = vlaneseq
    %v140 = vshrl.u32 %v139, 7
    %v141 = vsub.s32 %v138, %v140
    %v142 = vrot.slane %v134, %v141
    %v144 = vunpack.c.l.s4 1983009808
    %v145 = vunpack.c.0.s8 %v144
    %v146 = vlaneseq
    %v147 = vshrl.u32 %v146, 7
    %v148 = vsub.s32 %v145, %v147
    %v149 = vrot.slane %v135, %v148
    %v150 = vcombine.low %v142, %v149
    %v151 = vcombine.low %v87, %v88
    %v152 = vcombine.low %v89, %v90
    %v154 = vunpack.c.l.s4 1983009808
    %v155 = vunpack.c.0.s8 %v154
    %v156 = vlaneseq
    %v157 = vshrl.u32 %v156, 7
    %v158 = vsub.s32 %v155, %v157
    %v159 = vrot.slane %v151, %v158
    %v161 = vunpack.c.l.s4 1983009808
    %v162 = vunpack.c.0.s8 %v161
    %v163 = vlaneseq
    %v164 = vshrl.u32 %v163, 7
    %v165 = vsub.s32 %v162, %v164
    %v166 = vrot.slane %v152, %v165
    %v167 = vcombine.low %v159, %v166
    %v168 = vcombine.low %v91, %v92
    %v169 = vcombine.low %v93, %v94
    %v171 = vunpack.c.l.s4 1983009808
    %v172 = vunpack.c.0.s8 %v171
    %v173 = vlaneseq
    %v174 = vshrl.u32 %v173, 7
    %v175 = vsub.s32 %v172, %v174
    %v176 = vrot.slane %v168, %v175
    %v178 = vunpack.c.l.s4 1983009808
    %v179 = vunpack.c.0.s8 %v178
    %v180 = vlaneseq
    %v181 = vshrl.u32 %v180, 7
    %v182 = vsub.s32 %v179, %v181
    %v183 = vrot.slane %v169, %v182
    %v184 = vcombine.low %v176, %v183
    %vm185 = vcmask 31744
    %v186 = vsel %vm185, %v133, 0
    %v188 = vsel %vm185, %v150, 0
    %v190 = vsel %vm185, %v167, 0
    %v192 = vsel %vm185, %v184, 0
    %vm194 = vcmask 1043456
    %v196 = vsel %vm194, %v67, 0
    %198 = vmatprep.subr.mxu0 0.0
    %199 = vmatpush1.msra.mxu0 0.0
    %200 = vmatprep.subr.mxu0 0.0
    %201 = vmatpush1.msra.mxu0 0.0
    %202 = vmatprep.subr.mxu0 0.0
    %203 = vmatpush1.msra.mxu0 0.0
    %204 = vmatprep.subr.mxu0 0.0
    %205 = vmatpush1.msra.mxu0 0.0
    %206 = vmatprep.subr.mxu0 0.0
    %207 = vmatpush1.msra.mxu0 0.0
    %208 = vmatprep.subr.mxu0 0.0
    %209 = vmatpush1.msra.mxu0 0.0
    %210 = vmatprep.subr.mxu0 0.0
    %211 = vmatpush1.msra.mxu0 0.0
    %212 = vmatprep.subr.mxu0 0.0
    %213 = vmatpush1.msra.mxu0 0.0
    %214 = vmatprep.subr.mxu0 0.0
    %215 = vmatpush1.msra.mxu0 0.0
    %216 = vmatprep.subr.mxu0 0.0
    %217 = vmatpush1.msra.mxu0 0.0
    %218 = vmatprep.subr.mxu0 0.0
    %219 = vmatpush1.msra.mxu0 0.0
    %220 = vmatprep.subr.mxu0 0.0
    %221 = vmatpush1.msra.mxu0 0.0
    %222 = vmatprep.subr.mxu0 0.0
    %223 = vmatpush1.msra.mxu0 0.0
    %224 = vmatprep.subr.mxu0 0.0
    %225 = vmatpush1.msra.mxu0 0.0
    %226 = vmatprep.subr.mxu0 0.0
    %227 = vmatpush1.msra.mxu0 0.0
    %228 = vmatprep.subr.mxu0 0.0
    %229 = vmatpush1.msra.mxu0 %v196
    %230 = vmatprep.subr.mxu0 0.0
    %231 = vmatpush2.msra.mxu0 0.0
    %232 = vmatprep.subr.mxu0 0.0
    %233 = vmatpush2.msra.mxu0 0.0
    %234 = vmatprep.subr.mxu0 0.0
    %235 = vmatpush2.msra.mxu0 0.0
    %236 = vmatprep.subr.mxu0 0.0
    %237 = vmatpush2.msra.mxu0 0.0
    %238 = vmatprep.subr.mxu0 0.0
    %239 = vmatpush2.msra.mxu0 0.0
    %240 = vmatprep.subr.mxu0 0.0
    %241 = vmatpush2.msra.mxu0 0.0
    %242 = vmatprep.subr.mxu0 0.0
    %243 = vmatpush2.msra.mxu0 0.0
    %244 = vmatprep.subr.mxu0 0.0
    %245 = vmatpush2.msra.mxu0 0.0
    %246 = vmatprep.subr.mxu0 0.0
    %247 = vmatpush2.msra.mxu0 0.0
    %248 = vmatprep.subr.mxu0 0.0
    %249 = vmatpush2.msra.mxu0 0.0
    %250 = vmatprep.subr.mxu0 0.0
    %251 = vmatpush2.msra.mxu0 0.0
    %252 = vmatprep.subr.mxu0 0.0
    %253 = vmatpush2.msra.mxu0 0.0
    %254 = vmatprep.subr.mxu0 0.0
    %255 = vmatpush2.msra.mxu0 0.0
    %256 = vmatprep.subr.mxu0 0.0
    %257 = vmatpush2.msra.mxu0 0.0
    %258 = vmatprep.subr.mxu0 0.0
    %259 = vmatpush2.msra.mxu0 0.0
    %260 = vmatprep.subr.mxu0 0.0
    %261 = vmatpush2.msra.mxu0 0.0
    %262 = vmatprep.mubr.f32.mxu0 0.0
    %263 = vmatmul.mubr.f32.gmra.mxu0 %v186
    %v264 = vpop.f32.mrf.mxu0
    %v265 = vadd.f32 %v99, %v264
    %v266 = vpop.f32.mrf.mxu0
    %267 = vmatprep.mubr.f32.mxu0 0.0
    %268 = vmatmul.mubr.f32.gmra.mxu0 %v188
    %v269 = vpop.f32.mrf.mxu0
    %v270 = vadd.f32 %v99, %v269
    %v271 = vpop.f32.mrf.mxu0
    %272 = vmatprep.mubr.f32.mxu0 0.0
    %273 = vmatmul.mubr.f32.gmra.mxu0 %v190
    %v274 = vpop.f32.mrf.mxu0
    %v275 = vadd.f32 %v99, %v274
    %v276 = vpop.f32.mrf.mxu0
    %277 = vmatprep.mubr.f32.mxu0 0.0
    %278 = vmatmul.mubr.f32.gmra.mxu0 %v192
    %v279 = vpop.f32.mrf.mxu0
    %v280 = vadd.f32 %v99, %v279
    %v281 = vpop.f32.mrf.mxu0
    %282 = vdwg.mxu0
    %v283 = vmax.f32 %v265, 0.0
    %v284 = vmax.f32 %v270, 0.0
    %v285 = vmax.f32 %v275, 0.0
    %v286 = vmax.f32 %v280, 0.0
    %v288 = vlaneseq
    %v289 = vshrl.u32 %v288, 7
    %v290 = vsub.s32 0, %v289
    %v291 = vrot.slane %v77, %v290
    %vm293 = vcmask 261120
    %v295 = vsel %vm293, %v283, 0
    %v298 = vsel %vm293, %v284, 0
    %v301 = vsel %vm293, %v285, 0
    %v304 = vsel %vm293, %v286, 0
    %306 = vmatprep.subr.mxu0 0.0
    %307 = vmatpush1.msra.mxu0 0.0
    %308 = vmatprep.subr.mxu0 0.0
    %309 = vmatpush1.msra.mxu0 0.0
    %310 = vmatprep.subr.mxu0 0.0
    %311 = vmatpush1.msra.mxu0 0.0
    %312 = vmatprep.subr.mxu0 0.0
    %313 = vmatpush1.msra.mxu0 0.0
    %314 = vmatprep.subr.mxu0 0.0
    %315 = vmatpush1.msra.mxu0 0.0
    %316 = vmatprep.subr.mxu0 0.0
    %317 = vmatpush1.msra.mxu0 0.0
    %318 = vmatprep.subr.mxu0 0.0
    %319 = vmatpush1.msra.mxu0 0.0
    %320 = vmatprep.subr.mxu0 0.0
    %321 = vmatpush1.msra.mxu0 0.0
    %322 = vmatprep.subr.mxu0 0.0
    %323 = vmatpush1.msra.mxu0 0.0
    %324 = vmatprep.subr.mxu0 0.0
    %325 = vmatpush1.msra.mxu0 0.0
    %326 = vmatprep.subr.mxu0 0.0
    %327 = vmatpush1.msra.mxu0 0.0
    %328 = vmatprep.subr.mxu0 0.0
    %329 = vmatpush1.msra.mxu0 0.0
    %330 = vmatprep.subr.mxu0 0.0
    %331 = vmatpush1.msra.mxu0 %v72
    %332 = vmatprep.subr.mxu0 0.0
    %333 = vmatpush1.msra.mxu0 %v71
    %334 = vmatprep.subr.mxu0 0.0
    %335 = vmatpush1.msra.mxu0 %v70
    %336 = vmatprep.subr.mxu0 0.0
    %337 = vmatpush1.msra.mxu0 %v69
    %338 = vmatprep.subr.mxu0 0.0
    %339 = vmatpush2.msra.mxu0 0.0
    %340 = vmatprep.subr.mxu0 0.0
    %341 = vmatpush2.msra.mxu0 0.0
    %342 = vmatprep.subr.mxu0 0.0
    %343 = vmatpush2.msra.mxu0 0.0
    %344 = vmatprep.subr.mxu0 0.0
    %345 = vmatpush2.msra.mxu0 0.0
    %346 = vmatprep.subr.mxu0 0.0
    %347 = vmatpush2.msra.mxu0 0.0
    %348 = vmatprep.subr.mxu0 0.0
    %349 = vmatpush2.msra.mxu0 0.0
    %350 = vmatprep.subr.mxu0 0.0
    %351 = vmatpush2.msra.mxu0 0.0
    %352 = vmatprep.subr.mxu0 0.0
    %353 = vmatpush2.msra.mxu0 0.0
    %354 = vmatprep.subr.mxu0 0.0
    %355 = vmatpush2.msra.mxu0 0.0
    %356 = vmatprep.subr.mxu0 0.0
    %357 = vmatpush2.msra.mxu0 0.0
    %358 = vmatprep.subr.mxu0 0.0
    %359 = vmatpush2.msra.mxu0 0.0
    %360 = vmatprep.subr.mxu0 0.0
    %361 = vmatpush2.msra.mxu0 0.0
    %362 = vmatprep.subr.mxu0 0.0
    %363 = vmatpush2.msra.mxu0 0.0
    %364 = vmatprep.subr.mxu0 0.0
    %365 = vmatpush2.msra.mxu0 0.0
    %366 = vmatprep.subr.mxu0 0.0
    %367 = vmatpush2.msra.mxu0 0.0
    %368 = vmatprep.subr.mxu0 0.0
    %369 = vmatpush2.msra.mxu0 0.0
    %370 = vmatprep.mubr.f32.mxu0 0.0
    %371 = vmatmul.mubr.f32.gmra.mxu0 %v295
    %v372 = vpop.f32.mrf.mxu0
    %v373 = vadd.f32 %v291, %v372
    %v374 = vpop.f32.mrf.mxu0
    %375 = vmatprep.mubr.f32.mxu0 0.0
    %376 = vmatmul.mubr.f32.gmra.mxu0 %v298
    %v377 = vpop.f32.mrf.mxu0
    %v378 = vadd.f32 %v291, %v377
    %v379 = vpop.f32.mrf.mxu0
    %380 = vmatprep.mubr.f32.mxu0 0.0
    %381 = vmatmul.mubr.f32.gmra.mxu0 %v301
    %v382 = vpop.f32.mrf.mxu0
    %v383 = vadd.f32 %v291, %v382
    %v384 = vpop.f32.mrf.mxu0
    %385 = vmatprep.mubr.f32.mxu0 0.0
    %386 = vmatmul.mubr.f32.gmra.mxu0 %v304
    %v387 = vpop.f32.mrf.mxu0
    %v388 = vadd.f32 %v291, %v387
    %v389 = vpop.f32.mrf.mxu0
    %390 = vdwg.mxu0
    %vm391 = vcmask 785408
    %392 = vst.msk [vmem:[#allocation2] sm:$0xff] %vm391, %v373
    %393 = vst.msk [vmem:[#allocation2 + $0x8] sm:$0xff] %vm391, %v378
    %394 = vst.msk [vmem:[#allocation2 + $0x10] sm:$0xff] %vm391, %v383
    %395 = vst.msk [vmem:[#allocation2 + $0x18] sm:$0xff] %vm391, %v388
    %v397 = vsel %vm293, 0.0, 0
    %399 = vmatprep.subr.mxu0 0.0
    %400 = vmatpush1.msra.mxu0 0.0
    %401 = vmatprep.subr.mxu0 0.0
    %402 = vmatpush1.msra.mxu0 0.0
    %403 = vmatprep.subr.mxu0 0.0
    %404 = vmatpush1.msra.mxu0 0.0
    %405 = vmatprep.subr.mxu0 0.0
    %406 = vmatpush1.msra.mxu0 0.0
    %407 = vmatprep.subr.mxu0 0.0
    %408 = vmatpush1.msra.mxu0 0.0
    %409 = vmatprep.subr.mxu0 0.0
    %410 = vmatpush1.msra.mxu0 0.0
    %411 = vmatprep.subr.mxu0 0.0
    %412 = vmatpush1.msra.mxu0 0.0
    %413 = vmatprep.subr.mxu0 0.0
    %414 = vmatpush1.msra.mxu0 0.0
    %415 = vmatprep.subr.mxu0 0.0
    %416 = vmatpush1.msra.mxu0 0.0
    %417 = vmatprep.subr.mxu0 0.0
    %418 = vmatpush1.msra.mxu0 0.0
    %419 = vmatprep.subr.mxu0 0.0
    %420 = vmatpush1.msra.mxu0 0.0
    %421 = vmatprep.subr.mxu0 0.0
    %422 = vmatpush1.msra.mxu0 0.0
    %423 = vmatprep.subr.mxu0 0.0
    %424 = vmatpush1.msra.mxu0 %v76
    %425 = vmatprep.subr.mxu0 0.0
    %426 = vmatpush1.msra.mxu0 %v75
    %427 = vmatprep.subr.mxu0 0.0
    %428 = vmatpush1.msra.mxu0 %v74
    %429 = vmatprep.subr.mxu0 0.0
    %430 = vmatpush1.msra.mxu0 %v73
    %431 = vmatprep.subr.mxu0 0.0
    %432 = vmatpush2.msra.mxu0 0.0
    %433 = vmatprep.subr.mxu0 0.0
    %434 = vmatpush2.msra.mxu0 0.0
    %435 = vmatprep.subr.mxu0 0.0
    %436 = vmatpush2.msra.mxu0 0.0
    %437 = vmatprep.subr.mxu0 0.0
    %438 = vmatpush2.msra.mxu0 0.0
    %439 = vmatprep.subr.mxu0 0.0
    %440 = vmatpush2.msra.mxu0 0.0
    %441 = vmatprep.subr.mxu0 0.0
    %442 = vmatpush2.msra.mxu0 0.0
    %443 = vmatprep.subr.mxu0 0.0
    %444 = vmatpush2.msra.mxu0 0.0
    %445 = vmatprep.subr.mxu0 0.0
    %446 = vmatpush2.msra.mxu0 0.0
    %447 = vmatprep.subr.mxu0 0.0
    %448 = vmatpush2.msra.mxu0 0.0
    %449 = vmatprep.subr.mxu0 0.0
    %450 = vmatpush2.msra.mxu0 0.0
    %451 = vmatprep.subr.mxu0 0.0
    %452 = vmatpush2.msra.mxu0 0.0
    %453 = vmatprep.subr.mxu0 0.0
    %454 = vmatpush2.msra.mxu0 0.0
    %455 = vmatprep.subr.mxu0 0.0
    %456 = vmatpush2.msra.mxu0 0.0
    %457 = vmatprep.subr.mxu0 0.0
    %458 = vmatpush2.msra.mxu0 0.0
    %459 = vmatprep.subr.mxu0 0.0
    %460 = vmatpush2.msra.mxu0 0.0
    %461 = vmatprep.subr.mxu0 0.0
    %462 = vmatpush2.msra.mxu0 0.0
    %463 = vmatprep.mubr.f32.mxu0 0.0
    %464 = vmatmul.mubr.f32.gmra.mxu0 %v397
    %v465 = vpop.f32.mrf.mxu0
    %v466 = vadd.f32 0.0, %v465
    %v467 = vpop.f32.mrf.mxu0
    %468 = vdwg.mxu0
    %v469 = vld [vmem:[#allocation2] sm:$0xff]
    %v470 = vadd.f32 %v469, %v466
    %v471 = vxor.u32 %v470, 2147483648
    %v472 = vmul.f32 %v471, 1.442695
    %v473 = vpow.pop %v472
    %v474 = vadd.f32 %v473, 1.0
    %v475 = vrcp.pop %v474
    %v476 = vmul.f32 1.0, %v475
    %v478 = vlaneseq
    %v479 = vshrl.u32 %v478, 7
    %v480 = vsub.s32 0, %v479
    %v481 = vrot.slane %v78, %v480
    %482 = vrot.lane.b32.xlu0 %v481, 64
    %v483 = vpop.permute.xlu0 %482
    %v485 = vadd.f32 %v466, %v483
    %487 = vrot.lane.b32.xlu0 %v485, 64
    %v488 = vpop.permute.xlu0 %487
    %v490 = vmul.f32 %v476, %v488
    %492 = vrot.lane.b32.xlu0 %v490, 64
    %v493 = vpop.permute.xlu0 %492
    %v495 = vadd.f32 %v469, %v493
    %v496 = vtanh.pop %v495
    %v497 = vsub.f32 1.0, %v476
    %499 = vrot.lane.b32.xlu0 %v496, 96
    %v500 = vpop.permute.xlu0 %499
    %v502 = vmul.f32 %v497, %v500
    %v503 = vmul.f32 %v476, 0.0
    %v504 = vadd.f32 %v502, %v503
    %506 = vrot.lane.b32.xlu0 %v504, 96
    %v507 = vpop.permute.xlu0 %506
    %v508 = vsel %vm293, %v507, 0
    %510 = vmatprep.subr.mxu0 0.0
    %511 = vmatpush1.msra.mxu0 0.0
    %512 = vmatprep.subr.mxu0 0.0
    %513 = vmatpush1.msra.mxu0 0.0
    %514 = vmatprep.subr.mxu0 0.0
    %515 = vmatpush1.msra.mxu0 0.0
    %516 = vmatprep.subr.mxu0 0.0
    %517 = vmatpush1.msra.mxu0 0.0
    %518 = vmatprep.subr.mxu0 0.0
    %519 = vmatpush1.msra.mxu0 0.0
    %520 = vmatprep.subr.mxu0 0.0
    %521 = vmatpush1.msra.mxu0 0.0
    %522 = vmatprep.subr.mxu0 0.0
    %523 = vmatpush1.msra.mxu0 0.0
    %524 = vmatprep.subr.mxu0 0.0
    %525 = vmatpush1.msra.mxu0 0.0
    %526 = vmatprep.subr.mxu0 0.0
    %527 = vmatpush1.msra.mxu0 0.0
    %528 = vmatprep.subr.mxu0 0.0
    %529 = vmatpush1.msra.mxu0 0.0
    %530 = vmatprep.subr.mxu0 0.0
    %531 = vmatpush1.msra.mxu0 0.0
    %532 = vmatprep.subr.mxu0 0.0
    %533 = vmatpush1.msra.mxu0 0.0
    %534 = vmatprep.subr.mxu0 0.0
    %535 = vmatpush1.msra.mxu0 %v76
    %536 = vmatprep.subr.mxu0 0.0
    %537 = vmatpush1.msra.mxu0 %v75
    %538 = vmatprep.subr.mxu0 0.0
    %539 = vmatpush1.msra.mxu0 %v74
    %540 = vmatprep.subr.mxu0 0.0
    %541 = vmatpush1.msra.mxu0 %v73
    %542 = vmatprep.subr.mxu0 0.0
    %543 = vmatpush2.msra.mxu0 0.0
    %544 = vmatprep.subr.mxu0 0.0
    %545 = vmatpush2.msra.mxu0 0.0
    %546 = vmatprep.subr.mxu0 0.0
    %547 = vmatpush2.msra.mxu0 0.0
    %548 = vmatprep.subr.mxu0 0.0
    %549 = vmatpush2.msra.mxu0 0.0
    %550 = vmatprep.subr.mxu0 0.0
    %551 = vmatpush2.msra.mxu0 0.0
    %552 = vmatprep.subr.mxu0 0.0
    %553 = vmatpush2.msra.mxu0 0.0
    %554 = vmatprep.subr.mxu0 0.0
    %555 = vmatpush2.msra.mxu0 0.0
    %556 = vmatprep.subr.mxu0 0.0
    %557 = vmatpush2.msra.mxu0 0.0
    %558 = vmatprep.subr.mxu0 0.0
    %559 = vmatpush2.msra.mxu0 0.0
    %560 = vmatprep.subr.mxu0 0.0
    %561 = vmatpush2.msra.mxu0 0.0
    %562 = vmatprep.subr.mxu0 0.0
    %563 = vmatpush2.msra.mxu0 0.0
    %564 = vmatprep.subr.mxu0 0.0
    %565 = vmatpush2.msra.mxu0 0.0
    %566 = vmatprep.subr.mxu0 0.0
    %567 = vmatpush2.msra.mxu0 0.0
    %568 = vmatprep.subr.mxu0 0.0
    %569 = vmatpush2.msra.mxu0 0.0
    %570 = vmatprep.subr.mxu0 0.0
    %571 = vmatpush2.msra.mxu0 0.0
    %572 = vmatprep.subr.mxu0 0.0
    %573 = vmatpush2.msra.mxu0 0.0
    %574 = vmatprep.mubr.f32.mxu0 0.0
    %575 = vmatmul.mubr.f32.gmra.mxu0 %v508
    %v576 = vpop.f32.mrf.mxu0
    %v577 = vadd.f32 0.0, %v576
    %v578 = vpop.f32.mrf.mxu0
    %579 = vdwg.mxu0
    %s580 = scalar_lea.vmem [#allocation2], 8
    %v581 = vld [vmem:[%s580] sm:$0xff]
    %v582 = vadd.f32 %v581, %v577
    %v583 = vxor.u32 %v582, 2147483648
    %v584 = vmul.f32 %v583, 1.442695
    %v585 = vpow.pop %v584
    %v586 = vadd.f32 %v585, 1.0
    %v587 = vrcp.pop %v586
    %v588 = vmul.f32 1.0, %v587
    %v589 = vadd.f32 %v577, %v483
    %591 = vrot.lane.b32.xlu0 %v589, 64
    %v592 = vpop.permute.xlu0 %591
    %v594 = vmul.f32 %v588, %v592
    %596 = vrot.lane.b32.xlu0 %v594, 64
    %v597 = vpop.permute.xlu0 %596
    %v599 = vadd.f32 %v581, %v597
    %v600 = vtanh.pop %v599
    %v601 = vsub.f32 1.0, %v588
    %603 = vrot.lane.b32.xlu0 %v600, 96
    %v604 = vpop.permute.xlu0 %603
    %v606 = vmul.f32 %v601, %v604
    %v607 = vmul.f32 %v588, %v504
    %v608 = vadd.f32 %v606, %v607
    %610 = vrot.lane.b32.xlu0 %v608, 96
    %v611 = vpop.permute.xlu0 %610
    %v612 = vsel %vm293, %v611, 0
    %614 = vmatprep.subr.mxu0 0.0
    %615 = vmatpush1.msra.mxu0 0.0
    %616 = vmatprep.subr.mxu0 0.0
    %617 = vmatpush1.msra.mxu0 0.0
    %618 = vmatprep.subr.mxu0 0.0
    %619 = vmatpush1.msra.mxu0 0.0
    %620 = vmatprep.subr.mxu0 0.0
    %621 = vmatpush1.msra.mxu0 0.0
    %622 = vmatprep.subr.mxu0 0.0
    %623 = vmatpush1.msra.mxu0 0.0
    %624 = vmatprep.subr.mxu0 0.0
    %625 = vmatpush1.msra.mxu0 0.0
    %626 = vmatprep.subr.mxu0 0.0
    %627 = vmatpush1.msra.mxu0 0.0
    %628 = vmatprep.subr.mxu0 0.0
    %629 = vmatpush1.msra.mxu0 0.0
    %630 = vmatprep.subr.mxu0 0.0
    %631 = vmatpush1.msra.mxu0 0.0
    %632 = vmatprep.subr.mxu0 0.0
    %633 = vmatpush1.msra.mxu0 0.0
    %634 = vmatprep.subr.mxu0 0.0
    %635 = vmatpush1.msra.mxu0 0.0
    %636 = vmatprep.subr.mxu0 0.0
    %637 = vmatpush1.msra.mxu0 0.0
    %638 = vmatprep.subr.mxu0 0.0
    %639 = vmatpush1.msra.mxu0 %v76
    %640 = vmatprep.subr.mxu0 0.0
    %641 = vmatpush1.msra.mxu0 %v75
    %642 = vmatprep.subr.mxu0 0.0
    %643 = vmatpush1.msra.mxu0 %v74
    %644 = vmatprep.subr.mxu0 0.0
    %645 = vmatpush1.msra.mxu0 %v73
    %646 = vmatprep.subr.mxu0 0.0
    %647 = vmatpush2.msra.mxu0 0.0
    %648 = vmatprep.subr.mxu0 0.0
    %649 = vmatpush2.msra.mxu0 0.0
    %650 = vmatprep.subr.mxu0 0.0
    %651 = vmatpush2.msra.mxu0 0.0
    %652 = vmatprep.subr.mxu0 0.0
    %653 = vmatpush2.msra.mxu0 0.0
    %654 = vmatprep.subr.mxu0 0.0
    %655 = vmatpush2.msra.mxu0 0.0
    %656 = vmatprep.subr.mxu0 0.0
    %657 = vmatpush2.msra.mxu0 0.0
    %658 = vmatprep.subr.mxu0 0.0
    %659 = vmatpush2.msra.mxu0 0.0
    %660 = vmatprep.subr.mxu0 0.0
    %661 = vmatpush2.msra.mxu0 0.0
    %662 = vmatprep.subr.mxu0 0.0
    %663 = vmatpush2.msra.mxu0 0.0
    %664 = vmatprep.subr.mxu0 0.0
    %665 = vmatpush2.msra.mxu0 0.0
    %666 = vmatprep.subr.mxu0 0.0
    %667 = vmatpush2.msra.mxu0 0.0
    %668 = vmatprep.subr.mxu0 0.0
    %669 = vmatpush2.msra.mxu0 0.0
    %670 = vmatprep.subr.mxu0 0.0
    %671 = vmatpush2.msra.mxu0 0.0
    %672 = vmatprep.subr.mxu0 0.0
    %673 = vmatpush2.msra.mxu0 0.0
    %674 = vmatprep.subr.mxu0 0.0
    %675 = vmatpush2.msra.mxu0 0.0
    %676 = vmatprep.subr.mxu0 0.0
    %677 = vmatpush2.msra.mxu0 0.0
    %678 = vmatprep.mubr.f32.mxu0 0.0
    %679 = vmatmul.mubr.f32.gmra.mxu0 %v612
    %v680 = vpop.f32.mrf.mxu0
    %v681 = vadd.f32 0.0, %v680
    %v682 = vpop.f32.mrf.mxu0
    %683 = vdwg.mxu0
    %s684 = scalar_lea.vmem [#allocation2], 16
    %v685 = vld [vmem:[%s684] sm:$0xff]
    %v686 = vadd.f32 %v685, %v681
    %v687 = vxor.u32 %v686, 2147483648
    %v688 = vmul.f32 %v687, 1.442695
    %v689 = vpow.pop %v688
    %v690 = vadd.f32 %v689, 1.0
    %v691 = vrcp.pop %v690
    %v692 = vmul.f32 1.0, %v691
    %v693 = vadd.f32 %v681, %v483
    %695 = vrot.lane.b32.xlu0 %v693, 64
    %v696 = vpop.permute.xlu0 %695
    %v698 = vmul.f32 %v692, %v696
    %700 = vrot.lane.b32.xlu0 %v698, 64
    %v701 = vpop.permute.xlu0 %700
    %v703 = vadd.f32 %v685, %v701
    %v704 = vtanh.pop %v703
    %v705 = vsub.f32 1.0, %v692
    %707 = vrot.lane.b32.xlu0 %v704, 96
    %v708 = vpop.permute.xlu0 %707
    %v710 = vmul.f32 %v705, %v708
    %v711 = vmul.f32 %v692, %v608
    %v712 = vadd.f32 %v710, %v711
    %714 = vrot.lane.b32.xlu0 %v712, 96
    %v715 = vpop.permute.xlu0 %714
    %v716 = vsel %vm293, %v715, 0
    %718 = vmatprep.subr.mxu0 0.0
    %719 = vmatpush1.msra.mxu0 0.0
    %720 = vmatprep.subr.mxu0 0.0
    %721 = vmatpush1.msra.mxu0 0.0
    %722 = vmatprep.subr.mxu0 0.0
    %723 = vmatpush1.msra.mxu0 0.0
    %724 = vmatprep.subr.mxu0 0.0
    %725 = vmatpush1.msra.mxu0 0.0
    %726 = vmatprep.subr.mxu0 0.0
    %727 = vmatpush1.msra.mxu0 0.0
    %728 = vmatprep.subr.mxu0 0.0
    %729 = vmatpush1.msra.mxu0 0.0
    %730 = vmatprep.subr.mxu0 0.0
    %731 = vmatpush1.msra.mxu0 0.0
    %732 = vmatprep.subr.mxu0 0.0
    %733 = vmatpush1.msra.mxu0 0.0
    %734 = vmatprep.subr.mxu0 0.0
    %735 = vmatpush1.msra.mxu0 0.0
    %736 = vmatprep.subr.mxu0 0.0
    %737 = vmatpush1.msra.mxu0 0.0
    %738 = vmatprep.subr.mxu0 0.0
    %739 = vmatpush1.msra.mxu0 0.0
    %740 = vmatprep.subr.mxu0 0.0
    %741 = vmatpush1.msra.mxu0 0.0
    %742 = vmatprep.subr.mxu0 0.0
    %743 = vmatpush1.msra.mxu0 %v76
    %744 = vmatprep.subr.mxu0 0.0
    %745 = vmatpush1.msra.mxu0 %v75
    %746 = vmatprep.subr.mxu0 0.0
    %747 = vmatpush1.msra.mxu0 %v74
    %748 = vmatprep.subr.mxu0 0.0
    %749 = vmatpush1.msra.mxu0 %v73
    %750 = vmatprep.subr.mxu0 0.0
    %751 = vmatpush2.msra.mxu0 0.0
    %752 = vmatprep.subr.mxu0 0.0
    %753 = vmatpush2.msra.mxu0 0.0
    %754 = vmatprep.subr.mxu0 0.0
    %755 = vmatpush2.msra.mxu0 0.0
    %756 = vmatprep.subr.mxu0 0.0
    %757 = vmatpush2.msra.mxu0 0.0
    %758 = vmatprep.subr.mxu0 0.0
    %759 = vmatpush2.msra.mxu0 0.0
    %760 = vmatprep.subr.mxu0 0.0
    %761 = vmatpush2.msra.mxu0 0.0
    %762 = vmatprep.subr.mxu0 0.0
    %763 = vmatpush2.msra.mxu0 0.0
    %764 = vmatprep.subr.mxu0 0.0
    %765 = vmatpush2.msra.mxu0 0.0
    %766 = vmatprep.subr.mxu0 0.0
    %767 = vmatpush2.msra.mxu0 0.0
    %768 = vmatprep.subr.mxu0 0.0
    %769 = vmatpush2.msra.mxu0 0.0
    %770 = vmatprep.subr.mxu0 0.0
    %771 = vmatpush2.msra.mxu0 0.0
    %772 = vmatprep.subr.mxu0 0.0
    %773 = vmatpush2.msra.mxu0 0.0
    %774 = vmatprep.subr.mxu0 0.0
    %775 = vmatpush2.msra.mxu0 0.0
    %776 = vmatprep.subr.mxu0 0.0
    %777 = vmatpush2.msra.mxu0 0.0
    %778 = vmatprep.subr.mxu0 0.0
    %779 = vmatpush2.msra.mxu0 0.0
    %780 = vmatprep.subr.mxu0 0.0
    %781 = vmatpush2.msra.mxu0 0.0
    %782 = vmatprep.mubr.f32.mxu0 0.0
    %783 = vmatmul.mubr.f32.gmra.mxu0 %v716
    %v784 = vpop.f32.mrf.mxu0
    %v785 = vadd.f32 0.0, %v784
    %v786 = vpop.f32.mrf.mxu0
    %787 = vdwg.mxu0
    %s788 = scalar_lea.vmem [#allocation2], 24
    %v789 = vld [vmem:[%s788] sm:$0xff]
    %v790 = vadd.f32 %v789, %v785
    %v791 = vxor.u32 %v790, 2147483648
    %v792 = vmul.f32 %v791, 1.442695
    %v793 = vpow.pop %v792
    %v794 = vadd.f32 %v793, 1.0
    %v795 = vrcp.pop %v794
    %v796 = vmul.f32 1.0, %v795
    %v797 = vadd.f32 %v785, %v483
    %799 = vrot.lane.b32.xlu0 %v797, 64
    %v800 = vpop.permute.xlu0 %799
    %v802 = vmul.f32 %v796, %v800
    %804 = vrot.lane.b32.xlu0 %v802, 64
    %v805 = vpop.permute.xlu0 %804
    %v807 = vadd.f32 %v789, %v805
    %v808 = vtanh.pop %v807
    %v809 = vsub.f32 1.0, %v796
    %811 = vrot.lane.b32.xlu0 %v808, 96
    %v812 = vpop.permute.xlu0 %811
    %v814 = vmul.f32 %v809, %v812
    %v815 = vmul.f32 %v796, %v712
    %v816 = vadd.f32 %v814, %v815
    %818 = vrot.lane.b32.xlu0 %v816, 96
    %v819 = vpop.permute.xlu0 %818
    %v820 = vsel %vm293, %v819, 0
    %822 = vmatprep.subr.mxu0 0.0
    %823 = vmatpush1.msra.mxu0 0.0
    %824 = vmatprep.subr.mxu0 0.0
    %825 = vmatpush1.msra.mxu0 0.0
    %826 = vmatprep.subr.mxu0 0.0
    %827 = vmatpush1.msra.mxu0 0.0
    %828 = vmatprep.subr.mxu0 0.0
    %829 = vmatpush1.msra.mxu0 0.0
    %830 = vmatprep.subr.mxu0 0.0
    %831 = vmatpush1.msra.mxu0 0.0
    %832 = vmatprep.subr.mxu0 0.0
    %833 = vmatpush1.msra.mxu0 0.0
    %834 = vmatprep.subr.mxu0 0.0
    %835 = vmatpush1.msra.mxu0 0.0
    %836 = vmatprep.subr.mxu0 0.0
    %837 = vmatpush1.msra.mxu0 0.0
    %838 = vmatprep.subr.mxu0 0.0
    %839 = vmatpush1.msra.mxu0 0.0
    %840 = vmatprep.subr.mxu0 0.0
    %841 = vmatpush1.msra.mxu0 0.0
    %842 = vmatprep.subr.mxu0 0.0
    %843 = vmatpush1.msra.mxu0 0.0
    %844 = vmatprep.subr.mxu0 0.0
    %845 = vmatpush1.msra.mxu0 0.0
    %846 = vmatprep.subr.mxu0 0.0
    %847 = vmatpush1.msra.mxu0 %v76
    %848 = vmatprep.subr.mxu0 0.0
    %849 = vmatpush1.msra.mxu0 %v75
    %850 = vmatprep.subr.mxu0 0.0
    %851 = vmatpush1.msra.mxu0 %v74
    %852 = vmatprep.subr.mxu0 0.0
    %853 = vmatpush1.msra.mxu0 %v73
    %854 = vmatprep.subr.mxu0 0.0
    %855 = vmatpush2.msra.mxu0 0.0
    %856 = vmatprep.subr.mxu0 0.0
    %857 = vmatpush2.msra.mxu0 0.0
    %858 = vmatprep.subr.mxu0 0.0
    %859 = vmatpush2.msra.mxu0 0.0
    %860 = vmatprep.subr.mxu0 0.0
    %861 = vmatpush2.msra.mxu0 0.0
    %862 = vmatprep.subr.mxu0 0.0
    %863 = vmatpush2.msra.mxu0 0.0
    %864 = vmatprep.subr.mxu0 0.0
    %865 = vmatpush2.msra.mxu0 0.0
    %866 = vmatprep.subr.mxu0 0.0
    %867 = vmatpush2.msra.mxu0 0.0
    %868 = vmatprep.subr.mxu0 0.0
    %869 = vmatpush2.msra.mxu0 0.0
    %870 = vmatprep.subr.mxu0 0.0
    %871 = vmatpush2.msra.mxu0 0.0
    %872 = vmatprep.subr.mxu0 0.0
    %873 = vmatpush2.msra.mxu0 0.0
    %874 = vmatprep.subr.mxu0 0.0
    %875 = vmatpush2.msra.mxu0 0.0
    %876 = vmatprep.subr.mxu0 0.0
    %877 = vmatpush2.msra.mxu0 0.0
    %878 = vmatprep.subr.mxu0 0.0
    %879 = vmatpush2.msra.mxu0 0.0
    %880 = vmatprep.subr.mxu0 0.0
    %881 = vmatpush2.msra.mxu0 0.0
    %882 = vmatprep.subr.mxu0 0.0
    %883 = vmatpush2.msra.mxu0 0.0
    %884 = vmatprep.subr.mxu0 0.0
    %885 = vmatpush2.msra.mxu0 0.0
    %886 = vmatprep.mubr.f32.mxu0 0.0
    %887 = vmatmul.mubr.f32.gmra.mxu0 %v820
    %v888 = vpop.f32.mrf.mxu0
    %v889 = vadd.f32 0.0, %v888
    %v890 = vpop.f32.mrf.mxu0
    %891 = vdwg.mxu0
    %v892 = vld [vmem:[%s8] sm:$0xf]
    %v893 = vld [vmem:[%s8 + $0x4] sm:$0xf]
    %v897 = vunpack.c.l.s4 1966171168
    %v898 = vunpack.c.0.s8 %v897
    %v899 = vlaneseq
    %v900 = vshrl.u32 %v899, 7
    %v901 = vsub.s32 %v898, %v900
    %v902 = vrot.slane %v892, %v901
    %v903 = vcombine.high %v902, %v902
    %v905 = vunpack.c.l.s4 1966171168
    %v906 = vunpack.c.0.s8 %v905
    %v907 = vlaneseq
    %v908 = vshrl.u32 %v907, 7
    %v909 = vsub.s32 %v906, %v908
    %v910 = vrot.slane %v902, %v909
    %v912 = vunpack.c.l.s4 1966171168
    %v913 = vunpack.c.0.s8 %v912
    %v914 = vlaneseq
    %v915 = vshrl.u32 %v914, 7
    %v916 = vsub.s32 %v913, %v915
    %v917 = vrot.slane %v903, %v916
    %v918 = vcombine.high %v910, %v910
    %v919 = vcombine.high %v917, %v917
    %v921 = vunpack.c.l.s4 1966171168
    %v922 = vunpack.c.0.s8 %v921
    %v923 = vlaneseq
    %v924 = vshrl.u32 %v923, 7
    %v925 = vsub.s32 %v922, %v924
    %v926 = vrot.slane %v893, %v925
    %v927 = vcombine.high %v926, %v926
    %v929 = vunpack.c.l.s4 1966171168
    %v930 = vunpack.c.0.s8 %v929
    %v931 = vlaneseq
    %v932 = vshrl.u32 %v931, 7
    %v933 = vsub.s32 %v930, %v932
    %v934 = vrot.slane %v926, %v933
    %v936 = vunpack.c.l.s4 1966171168
    %v937 = vunpack.c.0.s8 %v936
    %v938 = vlaneseq
    %v939 = vshrl.u32 %v938, 7
    %v940 = vsub.s32 %v937, %v939
    %v941 = vrot.slane %v927, %v940
    %v942 = vcombine.high %v934, %v934
    %v943 = vcombine.high %v941, %v941
    %v945 = vcombine.high %v889, %v889
    %v947 = vunpack.c.l.s4 1983009808
    %v948 = vunpack.c.0.s8 %v947
    %v949 = vlaneseq
    %v950 = vshrl.u32 %v949, 7
    %v951 = vsub.s32 %v948, %v950
    %v952 = vrot.slane %v889, %v951
    %v954 = vunpack.c.l.s4 1983009808
    %v955 = vunpack.c.0.s8 %v954
    %v956 = vlaneseq
    %v957 = vshrl.u32 %v956, 7
    %v958 = vsub.s32 %v955, %v957
    %v959 = vrot.slane %v945, %v958
    %v960 = vcombine.high %v952, %v952
    %v961 = vcombine.high %v959, %v959
    %v966 = vcombine.high %v816, %v816
    %v968 = vunpack.c.l.s4 1983009808
    %v969 = vunpack.c.0.s8 %v968
    %v970 = vlaneseq
    %v971 = vshrl.u32 %v970, 7
    %v972 = vsub.s32 %v969, %v971
    %v973 = vrot.slane %v816, %v972
    %v975 = vunpack.c.l.s4 1983009808
    %v976 = vunpack.c.0.s8 %v975
    %v977 = vlaneseq
    %v978 = vshrl.u32 %v977, 7
    %v979 = vsub.s32 %v976, %v978
    %v980 = vrot.slane %v966, %v979
    %v981 = vcombine.high %v973, %v973
    %v982 = vcombine.high %v980, %v980
    %v987 = vlaneseq
    %v988 = vshrl.u32 %v987, 7
    %v989 = vsub.s32 0, %v988
    %v990 = vrot.slane %v910, %v989
    %v991 = vlaneseq
    %v992 = vshrl.u32 %v991, 7
    %v993 = vsub.s32 0, %v992
    %v994 = vrot.slane %v917, %v993
    %v995 = vlaneseq
    %v996 = vshrl.u32 %v995, 7
    %v997 = vsub.s32 0, %v996
    %v998 = vrot.slane %v918, %v997
    %v999 = vlaneseq
    %v1000 = vshrl.u32 %v999, 7
    %v1001 = vsub.s32 0, %v1000
    %v1002 = vrot.slane %v919, %v1001
    %v1003 = vlaneseq
    %v1004 = vshrl.u32 %v1003, 7
    %v1005 = vsub.s32 0, %v1004
    %v1006 = vrot.slane %v934, %v1005
    %v1007 = vlaneseq
    %v1008 = vshrl.u32 %v1007, 7
    %v1009 = vsub.s32 0, %v1008
    %v1010 = vrot.slane %v941, %v1009
    %v1011 = vlaneseq
    %v1012 = vshrl.u32 %v1011, 7
    %v1013 = vsub.s32 0, %v1012
    %v1014 = vrot.slane %v942, %v1013
    %v1015 = vlaneseq
    %v1016 = vshrl.u32 %v1015, 7
    %v1017 = vsub.s32 0, %v1016
    %v1018 = vrot.slane %v943, %v1017
    %v1027 = vadd.f32 %v990, %v952
    %v1028 = vadd.f32 %v994, %v960
    %v1029 = vadd.f32 %v998, %v959
    %v1030 = vadd.f32 %v1002, %v961
    %v1031 = vadd.f32 %v1006, %v952
    %v1032 = vadd.f32 %v1010, %v960
    %v1033 = vadd.f32 %v1014, %v959
    %v1034 = vadd.f32 %v1018, %v961
    %v1035 = vxor.u32 %v1027, 2147483648
    %v1036 = vxor.u32 %v1028, 2147483648
    %v1037 = vxor.u32 %v1029, 2147483648
    %v1038 = vxor.u32 %v1030, 2147483648
    %v1039 = vxor.u32 %v1031, 2147483648
    %v1040 = vxor.u32 %v1032, 2147483648
    %v1041 = vxor.u32 %v1033, 2147483648
    %v1042 = vxor.u32 %v1034, 2147483648
    %v1043 = vmul.f32 %v1035, 1.442695
    %v1044 = vpow.pop %v1043
    %v1045 = vmul.f32 %v1036, 1.442695
    %v1046 = vpow.pop %v1045
    %v1047 = vmul.f32 %v1037, 1.442695
    %v1048 = vpow.pop %v1047
    %v1049 = vmul.f32 %v1038, 1.442695
    %v1050 = vpow.pop %v1049
    %v1051 = vmul.f32 %v1039, 1.442695
    %v1052 = vpow.pop %v1051
    %v1053 = vmul.f32 %v1040, 1.442695
    %v1054 = vpow.pop %v1053
    %v1055 = vmul.f32 %v1041, 1.442695
    %v1056 = vpow.pop %v1055
    %v1057 = vmul.f32 %v1042, 1.442695
    %v1058 = vpow.pop %v1057
    %v1059 = vadd.f32 %v1044, 1.0
    %v1060 = vadd.f32 %v1046, 1.0
    %v1061 = vadd.f32 %v1048, 1.0
    %v1062 = vadd.f32 %v1050, 1.0
    %v1063 = vadd.f32 %v1052, 1.0
    %v1064 = vadd.f32 %v1054, 1.0
    %v1065 = vadd.f32 %v1056, 1.0
    %v1066 = vadd.f32 %v1058, 1.0
    %v1067 = vrcp.pop %v1059
    %v1068 = vmul.f32 1.0, %v1067
    %v1069 = vrcp.pop %v1060
    %v1070 = vmul.f32 1.0, %v1069
    %v1071 = vrcp.pop %v1061
    %v1072 = vmul.f32 1.0, %v1071
    %v1073 = vrcp.pop %v1062
    %v1074 = vmul.f32 1.0, %v1073
    %v1075 = vrcp.pop %v1063
    %v1076 = vmul.f32 1.0, %v1075
    %v1077 = vrcp.pop %v1064
    %v1078 = vmul.f32 1.0, %v1077
    %v1079 = vrcp.pop %v1065
    %v1080 = vmul.f32 1.0, %v1079
    %v1081 = vrcp.pop %v1066
    %v1082 = vmul.f32 1.0, %v1081
    %v1084 = vunpack.c.l.s4 1983009808
    %v1085 = vunpack.c.0.s8 %v1084
    %v1086 = vlaneseq
    %v1087 = vshrl.u32 %v1086, 7
    %v1088 = vsub.s32 %v1085, %v1087
    %v1089 = vrot.slane %v481, %v1088
    %1090 = vrot.lane.b32.xlu0 %v1089, 64
    %v1091 = vpop.permute.xlu0 %1090
    %v1093 = vadd.f32 %v952, %v1091
    %v1094 = vadd.f32 %v960, %v1091
    %v1095 = vadd.f32 %v959, %v1091
    %v1096 = vadd.f32 %v961, %v1091
    %v1102 = vunpack.c.l.s4 1983009808
    %v1103 = vunpack.c.0.s8 %v1102
    %v1104 = vlaneseq
    %v1105 = vshrl.u32 %v1104, 7
    %v1106 = vsub.s32 %v1103, %v1105
    %v1107 = vrot.slane %v1093, %v1106
    %v1109 = vunpack.c.l.s4 1983009808
    %v1110 = vunpack.c.0.s8 %v1109
    %v1111 = vlaneseq
    %v1112 = vshrl.u32 %v1111, 7
    %v1113 = vsub.s32 %v1110, %v1112
    %v1114 = vrot.slane %v1094, %v1113
    %v1116 = vunpack.c.l.s4 1983009808
    %v1117 = vunpack.c.0.s8 %v1116
    %v1118 = vlaneseq
    %v1119 = vshrl.u32 %v1118, 7
    %v1120 = vsub.s32 %v1117, %v1119
    %v1121 = vrot.slane %v1095, %v1120
    %v1123 = vunpack.c.l.s4 1983009808
    %v1124 = vunpack.c.0.s8 %v1123
    %v1125 = vlaneseq
    %v1126 = vshrl.u32 %v1125, 7
    %v1127 = vsub.s32 %v1124, %v1126
    %v1128 = vrot.slane %v1096, %v1127
    %1129 = vrot.lane.b32.xlu0 %v1107, 64
    %v1130 = vpop.permute.xlu0 %1129
    %1131 = vrot.lane.b32.xlu0 %v1114, 64
    %v1132 = vpop.permute.xlu0 %1131
    %1133 = vrot.lane.b32.xlu0 %v1121, 64
    %v1134 = vpop.permute.xlu0 %1133
    %1135 = vrot.lane.b32.xlu0 %v1128, 64
    %v1136 = vpop.permute.xlu0 %1135
    %v1141 = vmul.f32 %v1068, %v1130
    %v1142 = vmul.f32 %v1070, %v1132
    %v1143 = vmul.f32 %v1072, %v1134
    %v1144 = vmul.f32 %v1074, %v1136
    %v1145 = vmul.f32 %v1076, %v1130
    %v1146 = vmul.f32 %v1078, %v1132
    %v1147 = vmul.f32 %v1080, %v1134
    %v1148 = vmul.f32 %v1082, %v1136
    %1157 = vrot.lane.b32.xlu0 %v1141, 64
    %v1158 = vpop.permute.xlu0 %1157
    %1159 = vrot.lane.b32.xlu0 %v1142, 64
    %v1160 = vpop.permute.xlu0 %1159
    %1161 = vrot.lane.b32.xlu0 %v1143, 64
    %v1162 = vpop.permute.xlu0 %1161
    %1163 = vrot.lane.b32.xlu0 %v1144, 64
    %v1164 = vpop.permute.xlu0 %1163
    %1165 = vrot.lane.b32.xlu0 %v1145, 64
    %v1166 = vpop.permute.xlu0 %1165
    %1167 = vrot.lane.b32.xlu0 %v1146, 64
    %v1168 = vpop.permute.xlu0 %1167
    %1169 = vrot.lane.b32.xlu0 %v1147, 64
    %v1170 = vpop.permute.xlu0 %1169
    %1171 = vrot.lane.b32.xlu0 %v1148, 64
    %v1172 = vpop.permute.xlu0 %1171
    %v1181 = vadd.f32 %v990, %v1158
    %v1182 = vadd.f32 %v994, %v1160
    %v1183 = vadd.f32 %v998, %v1162
    %v1184 = vadd.f32 %v1002, %v1164
    %v1185 = vadd.f32 %v1006, %v1166
    %v1186 = vadd.f32 %v1010, %v1168
    %v1187 = vadd.f32 %v1014, %v1170
    %v1188 = vadd.f32 %v1018, %v1172
    %v1189 = vtanh.pop %v1181
    %v1190 = vtanh.pop %v1182
    %v1191 = vtanh.pop %v1183
    %v1192 = vtanh.pop %v1184
    %v1193 = vtanh.pop %v1185
    %v1194 = vtanh.pop %v1186
    %v1195 = vtanh.pop %v1187
    %v1196 = vtanh.pop %v1188
    %v1197 = vsub.f32 1.0, %v1068
    %v1198 = vsub.f32 1.0, %v1070
    %v1199 = vsub.f32 1.0, %v1072
    %v1200 = vsub.f32 1.0, %v1074
    %v1201 = vsub.f32 1.0, %v1076
    %v1202 = vsub.f32 1.0, %v1078
    %v1203 = vsub.f32 1.0, %v1080
    %v1204 = vsub.f32 1.0, %v1082
    %1213 = vrot.lane.b32.xlu0 %v1189, 96
    %v1214 = vpop.permute.xlu0 %1213
    %1215 = vrot.lane.b32.xlu0 %v1190, 96
    %v1216 = vpop.permute.xlu0 %1215
    %1217 = vrot.lane.b32.xlu0 %v1191, 96
    %v1218 = vpop.permute.xlu0 %1217
    %1219 = vrot.lane.b32.xlu0 %v1192, 96
    %v1220 = vpop.permute.xlu0 %1219
    %1221 = vrot.lane.b32.xlu0 %v1193, 96
    %v1222 = vpop.permute.xlu0 %1221
    %1223 = vrot.lane.b32.xlu0 %v1194, 96
    %v1224 = vpop.permute.xlu0 %1223
    %1225 = vrot.lane.b32.xlu0 %v1195, 96
    %v1226 = vpop.permute.xlu0 %1225
    %1227 = vrot.lane.b32.xlu0 %v1196, 96
    %v1228 = vpop.permute.xlu0 %1227
    %v1237 = vmul.f32 %v1197, %v1214
    %v1238 = vmul.f32 %v1198, %v1216
    %v1239 = vmul.f32 %v1199, %v1218
    %v1240 = vmul.f32 %v1200, %v1220
    %v1241 = vmul.f32 %v1201, %v1222
    %v1242 = vmul.f32 %v1202, %v1224
    %v1243 = vmul.f32 %v1203, %v1226
    %v1244 = vmul.f32 %v1204, %v1228
    %v1245 = vmul.f32 %v1068, %v973
    %v1246 = vmul.f32 %v1070, %v981
    %v1247 = vmul.f32 %v1072, %v980
    %v1248 = vmul.f32 %v1074, %v982
    %v1249 = vmul.f32 %v1076, %v973
    %v1250 = vmul.f32 %v1078, %v981
    %v1251 = vmul.f32 %v1080, %v980
    %v1252 = vmul.f32 %v1082, %v982
    %v1253 = vadd.f32 %v1237, %v1245
    %v1254 = vadd.f32 %v1238, %v1246
    %v1255 = vadd.f32 %v1239, %v1247
    %v1256 = vadd.f32 %v1240, %v1248
    %v1257 = vadd.f32 %v1241, %v1249
    %v1258 = vadd.f32 %v1242, %v1250
    %v1259 = vadd.f32 %v1243, %v1251
    %v1260 = vadd.f32 %v1244, %v1252
    %v1261 = vld [vmem:[%s9] sm:$0xff]
    %v1262 = vld [vmem:[%s9 + $0x8] sm:$0xff]
    %v1263 = vld [vmem:[%s9 + $0x10] sm:$0xff]
    %v1264 = vld [vmem:[%s9 + $0x18] sm:$0xff]
    %v1265 = vld [vmem:[%s10] sm:$0x1]
    %v1267 = vlaneseq
    %v1268 = vshrl.u32 %v1267, 7
    %v1269 = vsub.s32 0, %v1268
    %v1270 = vrot.slane %v1265, %v1269
    %v1280 = vcombine.low %v1253, %v1254
    %v1281 = vcombine.low %v1255, %v1256
    %v1283 = vunpack.c.l.s4 1983009808
    %v1284 = vunpack.c.0.s8 %v1283
    %v1285 = vlaneseq
    %v1286 = vshrl.u32 %v1285, 7
    %v1287 = vsub.s32 %v1284, %v1286
    %v1288 = vrot.slane %v1280, %v1287
    %v1290 = vunpack.c.l.s4 1983009808
    %v1291 = vunpack.c.0.s8 %v1290
    %v1292 = vlaneseq
    %v1293 = vshrl.u32 %v1292, 7
    %v1294 = vsub.s32 %v1291, %v1293
    %v1295 = vrot.slane %v1281, %v1294
    %v1296 = vcombine.low %v1288, %v1295
    %v1297 = vcombine.low %v1257, %v1258
    %v1298 = vcombine.low %v1259, %v1260
    %v1300 = vunpack.c.l.s4 1983009808
    %v1301 = vunpack.c.0.s8 %v1300
    %v1302 = vlaneseq
    %v1303 = vshrl.u32 %v1302, 7
    %v1304 = vsub.s32 %v1301, %v1303
    %v1305 = vrot.slane %v1297, %v1304
    %v1307 = vunpack.c.l.s4 1983009808
    %v1308 = vunpack.c.0.s8 %v1307
    %v1309 = vlaneseq
    %v1310 = vshrl.u32 %v1309, 7
    %v1311 = vsub.s32 %v1308, %v1310
    %v1312 = vrot.slane %v1298, %v1311
    %v1313 = vcombine.low %v1305, %v1312
    %1314 = vrot.lane.b32.xlu0 %v1296, 96
    %v1315 = vpop.permute.xlu0 %1314
    %1316 = vrot.lane.b32.xlu0 %v1313, 96
    %v1317 = vpop.permute.xlu0 %1316
    %v1318 = vsel %vm293, %v1315, 0
    %v1320 = vsel %vm293, %v1317, 0
    %1322 = vmatprep.subr.mxu0 0.0
    %1323 = vmatpush1.msra.mxu0 0.0
    %1324 = vmatprep.subr.mxu0 0.0
    %1325 = vmatpush1.msra.mxu0 0.0
    %1326 = vmatprep.subr.mxu0 0.0
    %1327 = vmatpush1.msra.mxu0 0.0
    %1328 = vmatprep.subr.mxu0 0.0
    %1329 = vmatpush1.msra.mxu0 0.0
    %1330 = vmatprep.subr.mxu0 0.0
    %1331 = vmatpush1.msra.mxu0 0.0
    %1332 = vmatprep.subr.mxu0 0.0
    %1333 = vmatpush1.msra.mxu0 0.0
    %1334 = vmatprep.subr.mxu0 0.0
    %1335 = vmatpush1.msra.mxu0 0.0
    %1336 = vmatprep.subr.mxu0 0.0
    %1337 = vmatpush1.msra.mxu0 0.0
    %1338 = vmatprep.subr.mxu0 0.0
    %1339 = vmatpush1.msra.mxu0 0.0
    %1340 = vmatprep.subr.mxu0 0.0
    %1341 = vmatpush1.msra.mxu0 0.0
    %1342 = vmatprep.subr.mxu0 0.0
    %1343 = vmatpush1.msra.mxu0 0.0
    %1344 = vmatprep.subr.mxu0 0.0
    %1345 = vmatpush1.msra.mxu0 0.0
    %1346 = vmatprep.subr.mxu0 0.0
    %1347 = vmatpush1.msra.mxu0 %v1264
    %1348 = vmatprep.subr.mxu0 0.0
    %1349 = vmatpush1.msra.mxu0 %v1263
    %1350 = vmatprep.subr.mxu0 0.0
    %1351 = vmatpush1.msra.mxu0 %v1262
    %1352 = vmatprep.subr.mxu0 0.0
    %1353 = vmatpush1.msra.mxu0 %v1261
    %1354 = vmatprep.subr.mxu0 0.0
    %1355 = vmatpush2.msra.mxu0 0.0
    %1356 = vmatprep.subr.mxu0 0.0
    %1357 = vmatpush2.msra.mxu0 0.0
    %1358 = vmatprep.subr.mxu0 0.0
    %1359 = vmatpush2.msra.mxu0 0.0
    %1360 = vmatprep.subr.mxu0 0.0
    %1361 = vmatpush2.msra.mxu0 0.0
    %1362 = vmatprep.subr.mxu0 0.0
    %1363 = vmatpush2.msra.mxu0 0.0
    %1364 = vmatprep.subr.mxu0 0.0
    %1365 = vmatpush2.msra.mxu0 0.0
    %1366 = vmatprep.subr.mxu0 0.0
    %1367 = vmatpush2.msra.mxu0 0.0
    %1368 = vmatprep.subr.mxu0 0.0
    %1369 = vmatpush2.msra.mxu0 0.0
    %1370 = vmatprep.subr.mxu0 0.0
    %1371 = vmatpush2.msra.mxu0 0.0
    %1372 = vmatprep.subr.mxu0 0.0
    %1373 = vmatpush2.msra.mxu0 0.0
    %1374 = vmatprep.subr.mxu0 0.0
    %1375 = vmatpush2.msra.mxu0 0.0
    %1376 = vmatprep.subr.mxu0 0.0
    %1377 = vmatpush2.msra.mxu0 0.0
    %1378 = vmatprep.subr.mxu0 0.0
    %1379 = vmatpush2.msra.mxu0 0.0
    %1380 = vmatprep.subr.mxu0 0.0
    %1381 = vmatpush2.msra.mxu0 0.0
    %1382 = vmatprep.subr.mxu0 0.0
    %1383 = vmatpush2.msra.mxu0 0.0
    %1384 = vmatprep.subr.mxu0 0.0
    %1385 = vmatpush2.msra.mxu0 0.0
    %1386 = vmatprep.mubr.f32.mxu0 0.0
    %1387 = vmatmul.mubr.f32.gmra.mxu0 %v1318
    %v1388 = vpop.f32.mrf.mxu0
    %v1389 = vadd.f32 %v1270, %v1388
    %v1390 = vpop.f32.mrf.mxu0
    %1391 = vmatprep.mubr.f32.mxu0 0.0
    %1392 = vmatmul.mubr.f32.gmra.mxu0 %v1320
    %v1393 = vpop.f32.mrf.mxu0
    %v1394 = vadd.f32 %v1270, %v1393
    %v1395 = vpop.f32.mrf.mxu0
    %1396 = vdwg.mxu0
    %1398 = vrot.lane.b32.xlu0 %v1394, 4
    %v1399 = vpop.permute.xlu0 %1398
    %v1401 = vsel %vm185, %v1389, %v1399
    %v1402 = vld [vmem:[%s1] sm:$0x3]
    %v1403 = vld [vmem:[%s1 + $0x2] sm:$0x3]
    %v1404 = vld [vmem:[%s1 + $0x4] sm:$0x3]
    %v1405 = vld [vmem:[%s1 + $0x6] sm:$0x3]
    %1407 = vset.pattern.permute.xlu0 0
    %1408 = vperm.xlu0 %1407, %v1402
    %v1409 = vpop.permute.xlu0 %1408
    %v1412 = vunpack.c.l.s4 269488144
    %v1413 = vunpack.c.0.s8 %v1412
    %v1414 = vlaneseq
    %v1415 = vshrl.u32 %v1414, 7
    %v1416 = vsub.s32 %v1413, %v1415
    %v1417 = vrot.slane %v1409, %v1416
    %1419 = vset.pattern.permute.xlu0 0
    %1420 = vperm.xlu0 %1419, %v1403
    %v1421 = vpop.permute.xlu0 %1420
    %v1424 = vunpack.c.l.s4 269488144
    %v1425 = vunpack.c.0.s8 %v1424
    %v1426 = vlaneseq
    %v1427 = vshrl.u32 %v1426, 7
    %v1428 = vsub.s32 %v1425, %v1427
    %v1429 = vrot.slane %v1421, %v1428
    %1431 = vset.pattern.permute.xlu0 0
    %1432 = vperm.xlu0 %1431, %v1404
    %v1433 = vpop.permute.xlu0 %1432
    %v1436 = vunpack.c.l.s4 269488144
    %v1437 = vunpack.c.0.s8 %v1436
    %v1438 = vlaneseq
    %v1439 = vshrl.u32 %v1438, 7
    %v1440 = vsub.s32 %v1437, %v1439
    %v1441 = vrot.slane %v1433, %v1440
    %1443 = vset.pattern.permute.xlu0 0
    %1444 = vperm.xlu0 %1443, %v1405
    %v1445 = vpop.permute.xlu0 %1444
    %v1448 = vunpack.c.l.s4 269488144
    %v1449 = vunpack.c.0.s8 %v1448
    %v1450 = vlaneseq
    %v1451 = vshrl.u32 %v1450, 7
    %v1452 = vsub.s32 %v1449, %v1451
    %v1453 = vrot.slane %v1445, %v1452
    %v1458 = vcombine.low %v1417, %v1429
    %v1459 = vcombine.low %v1441, %v1453
    %v1461 = vunpack.c.l.s4 1983009808
    %v1462 = vunpack.c.0.s8 %v1461
    %v1463 = vlaneseq
    %v1464 = vshrl.u32 %v1463, 7
    %v1465 = vsub.s32 %v1462, %v1464
    %v1466 = vrot.slane %v1458, %v1465
    %v1468 = vunpack.c.l.s4 1983009808
    %v1469 = vunpack.c.0.s8 %v1468
    %v1470 = vlaneseq
    %v1471 = vshrl.u32 %v1470, 7
    %v1472 = vsub.s32 %v1469, %v1471
    %v1473 = vrot.slane %v1459, %v1472
    %v1474 = vcombine.low %v1466, %v1473
    %v1476 = vadd.f32 %v1401, %v1474
    %v1478 = vcombine.high %v1476, %v1476
    %v1480 = vunpack.c.l.s4 1983009808
    %v1481 = vunpack.c.0.s8 %v1480
    %v1482 = vlaneseq
    %v1483 = vshrl.u32 %v1482, 7
    %v1484 = vsub.s32 %v1481, %v1483
    %v1485 = vrot.slane %v1476, %v1484
    %v1487 = vunpack.c.l.s4 1983009808
    %v1488 = vunpack.c.0.s8 %v1487
    %v1489 = vlaneseq
    %v1490 = vshrl.u32 %v1489, 7
    %v1491 = vsub.s32 %v1488, %v1490
    %v1492 = vrot.slane %v1478, %v1491
    %v1493 = vcombine.high %v1485, %v1485
    %v1494 = vcombine.high %v1492, %v1492
    %vm1499 = vcmask 58368
    %1500 = vst.msk [vmem:[#allocation8] sm:$0x3] %vm1499, %v1485
    %1501 = vst.msk [vmem:[#allocation8 + $0x2] sm:$0x3] %vm1499, %v1493
    %1502 = vst.msk [vmem:[#allocation8 + $0x4] sm:$0x3] %vm1499, %v1492
    %1503 = vst.msk [vmem:[#allocation8 + $0x6] sm:$0x3] %vm1499, %v1494
    // Predicated region
    $region54: #{tpu_custom_call.1} parent=1 // pred_check
      _
    $region55: #{tpu_custom_call.1} parent=1 // pred_check_branch
      %1505 = sbr.rel (0) target = $region57
    $region56: #{tpu_custom_call.1} parent=1 // pred_region
      %s1507 = ssub.s32 128, 128
      %1508 = vsyncadd [#allocation5], %s1507
      %s1509 = sshll.u32 [#allocation8], 4
      %s1510 = int_to_ptr.vmem [resolvable:$true] %s1509
      %1515 = dma.vmem_to_hbm [thread:$0]  %s1510, 128, %s11, [#allocation5], 32, 32, 2
    $region57: #{tpu_custom_call.1} parent=1 // pred_fallthru
      _
    // Predicated region
    $region58: #{tpu_custom_call.1} parent=1 // pred_check
      _
    $region59: #{tpu_custom_call.1} parent=1 // pred_check_branch
      %1517 = sbr.rel (0) target = $region61
    $region60: #{tpu_custom_call.1} parent=1 // pred_region
      %1518 = dma.done [#allocation5], 128
    $region61: #{tpu_custom_call.1} parent=1 // pred_fallthru
      _
    %1519 = vsyncpa [#allocation4], 1
    %1520 = vsyncpa [#allocation7], 1
    %1521 = vsyncpa [#allocation5], 1

</llo_original>
